<compile_context>
chip_gen: v7x
topology: tpu7x:2x2x1
jax: 0.10.0
libtpu: 0.0.40
codegen_flags: <defaults>
</compile_context>

<pallas_src>
import functools
import math

import jax
import jax.numpy as jnp
from jax.experimental import pallas as pl
from jax.experimental.pallas import tpu as pltpu

FPN_STRIDES = [4, 8, 16, 32]
_WPAD = 8  # sublane-aligned zero padding used for the conv halo along W


# -----------------------------------------------------------------------------
# In-kernel building blocks
# -----------------------------------------------------------------------------
def _conv3x3(a, w_ref, H, W):
    """3x3 'same' conv as 3 MXU matmuls (one per kernel row, K = 3*Cin).

    a:     (H, W, Cin) float32 activation value.
    w_ref: (3, 3*Cin, Cout) bfloat16 weight Ref; row dy holds columns ordered
           (dx * Cin + cin), i.e. the HWIO weight reshaped to (3, 3*Cin, Cout).
    returns (H*W, Cout) float32.
    """
    cin = a.shape[-1]
    cout = w_ref.shape[-1]
    f32 = jnp.float32

    # Zero halo: +1 row top/bottom (leading axis), +_WPAD cols left/right
    # (sublane axis, kept 8-aligned so the concatenation stays tile-aligned).
    zrow = jnp.zeros((1, W, cin), f32)
    ap = jnp.concatenate([zrow, a, zrow], axis=0)              # (H+2, W, Cin)
    zcol = jnp.zeros((H + 2, _WPAD, cin), f32)
    ap = jnp.concatenate([zcol, ap, zcol], axis=1)             # (H+2, W+2*_WPAD, Cin)

    acc = jnp.zeros((H * W, cout), jnp.float32)
    for dy in range(3):
        rows = ap[dy:dy + H]                                   # (H, W+2*_WPAD, Cin)
        # dx taps concatenated along the contraction dim -> K = 3*Cin.
        patch = jnp.concatenate(
            [rows[:, _WPAD - 1:_WPAD - 1 + W],
             rows[:, _WPAD:_WPAD + W],
             rows[:, _WPAD + 1:_WPAD + 1 + W]], axis=-1)       # (H, W, 3*Cin)
        patch = patch.reshape(H * W, 3 * cin).astype(jnp.bfloat16)
        acc = acc + jnp.dot(patch, w_ref[dy],
                            preferred_element_type=jnp.float32)
    return acc


def _group_norm_relu(h, gamma, beta, n_groups, eps):
    """GroupNorm (biased variance over spatial x group-channels) + ReLU.

    h: (H*W, C) float32; gamma/beta: (1, C) float32.
    """
    hw_n, c = h.shape
    cg = c // n_groups
    s1 = jnp.sum(h, axis=0, keepdims=True)        # (1, C)
    s2 = jnp.sum(h * h, axis=0, keepdims=True)    # (1, C)
    if cg > 1:
        gs1 = jnp.sum(s1.reshape(n_groups, cg), axis=1, keepdims=True)
        gs2 = jnp.sum(s2.reshape(n_groups, cg), axis=1, keepdims=True)
        cnt = float(hw_n * cg)
        mean = jnp.broadcast_to(gs1 / cnt, (n_groups, cg)).reshape(1, c)
        ex2 = jnp.broadcast_to(gs2 / cnt, (n_groups, cg)).reshape(1, c)
    else:  # one channel per group (e.g. GroupNorm(32, 32))
        cnt = float(hw_n)
        mean = s1 / cnt
        ex2 = s2 / cnt
    var = ex2 - mean * mean
    inv = jax.lax.rsqrt(var + eps)
    y = (h - mean) * (inv * gamma) + beta
    return jnp.maximum(y, 0.0)


# -----------------------------------------------------------------------------
# Fused per-level kernel: both towers + both heads, one sample per grid step
# -----------------------------------------------------------------------------
def fused_level_kernel(*refs, num_convs, n_groups, eps, H, W):
    x_ref = refs[0]
    layer_refs = [refs[1 + 4 * i: 1 + 4 * (i + 1)] for i in range(num_convs)]
    base = 1 + 4 * num_convs
    head_w_ref = refs[base]
    head_b_ref = refs[base + 1]
    scale_ref = refs[base + 2]     # SMEM (1, 1) scalar
    o_ref = refs[base + 3]

    a = x_ref[0]                                               # (H, W, Cin) f32
    for w_ref, b_ref, g_ref, be_ref in layer_refs:
        cout = b_ref.shape[1]
        h = _conv3x3(a, w_ref, H, W) + b_ref[...]              # (H*W, Ctot) f32
        y = _group_norm_relu(h, g_ref[...], be_ref[...], n_groups, eps)
        a = y.reshape(H, W, cout)                              # stays in VMEM

    # Fused heads: 8 channels = [cls_logits(2) | exp(scale * bbox_pred)(4) | pad(2)]
    ho = _conv3x3(a, head_w_ref, H, W) + head_b_ref[...]       # (H*W, 8) f32
    s = scale_ref[0, 0]
    ch = jax.lax.broadcasted_iota(jnp.int32, ho.shape, 1)
    is_box = jnp.logical_and(ch >= 2, ch < 6)
    hv = ho * jnp.where(is_box, s, 1.0)
    o_ref[0] = jnp.where(is_box, jnp.exp(hv), hv)


# -----------------------------------------------------------------------------
# Host-side parameter fusion + pallas_call wrapper
# -----------------------------------------------------------------------------
def build_fused_params(params, *, groups=32):
    cls_layers = params['cls_tower']
    box_layers = params['bbox_tower']
    num_convs = len(cls_layers)
    c_cls = cls_layers[0]['w'].shape[-1]
    c_reg = box_layers[0]['w'].shape[-1]
    assert c_cls == c_reg and c_cls % groups == 0, (
        "fused tower assumes cls_channels == reg_channels, divisible by 32")
    ctot = c_cls + c_reg

    layers = []
    for i in range(num_convs):
        cw, bw = cls_layers[i], box_layers[i]
        if i == 0:
            w = jnp.concatenate([cw['w'], bw['w']], axis=-1)            # (3,3,Cin,Ctot)
        else:
            # block-diagonal: cls branch reads channels [:c_cls], box reads [c_cls:]
            top = jnp.concatenate(
                [cw['w'], jnp.zeros((3, 3, c_cls, c_reg), cw['w'].dtype)], axis=-1)
            bot = jnp.concatenate(
                [jnp.zeros((3, 3, c_reg, c_cls), bw['w'].dtype), bw['w']], axis=-1)
            w = jnp.concatenate([top, bot], axis=2)                     # (3,3,Ctot,Ctot)
        kin = w.shape[2]
        layers.append(dict(
            w=w.reshape(3, 3 * kin, ctot).astype(jnp.bfloat16),
            b=jnp.concatenate([cw['b'], bw['b']]).reshape(1, ctot),
            g=jnp.concatenate([cw['gamma'], bw['gamma']]).reshape(1, ctot),
            be=jnp.concatenate([cw['beta'], bw['beta']]).reshape(1, ctot)))

    hw = jnp.zeros((3, 3, ctot, 8), jnp.float32)
    hw = hw.at[:, :, :c_cls, 0:2].set(params['cls_logits']['w'])
    hw = hw.at[:, :, c_cls:, 2:6].set(params['bbox_pred']['w'])
    hb = jnp.zeros((8,), jnp.float32)
    hb = hb.at[0:2].set(params['cls_logits']['b'])
    hb = hb.at[2:6].set(params['bbox_pred']['b'])
    return dict(layers=layers,
                head_w=hw.reshape(3, 3 * ctot, 8).astype(jnp.bfloat16),
                head_b=hb.reshape(1, 8),
                n_groups=2 * groups)


def _const_index_map(ndim):
    return lambda n: (0,) * ndim


def _run_fused_level(fused, x_nhwc, scale, *, eps=1e-5):
    N, H, W, cin = x_nhwc.shape
    layers = fused['layers']

    inputs = [x_nhwc]
    in_specs = [pl.BlockSpec((1, H, W, cin), lambda n: (n, 0, 0, 0))]
    for lyr in layers:
        for name in ('w', 'b', 'g', 'be'):
            arr = lyr[name]
            inputs.append(arr)
            in_specs.append(pl.BlockSpec(tuple(arr.shape),
                                         _const_index_map(arr.ndim)))
    for arr in (fused['head_w'], fused['head_b']):
        inputs.append(arr)
        in_specs.append(pl.BlockSpec(tuple(arr.shape), _const_index_map(arr.ndim)))
    inputs.append(jnp.asarray(scale, jnp.float32).reshape(1, 1))
    in_specs.append(pl.BlockSpec(memory_space=pltpu.MemorySpace.SMEM))

    kern = functools.partial(fused_level_kernel, num_convs=len(layers),
                             n_groups=fused['n_groups'], eps=eps, H=H, W=W)
    out = pl.pallas_call(
        kern,
        out_shape=jax.ShapeDtypeStruct((N, H * W, 8), jnp.float32),
        grid=(N,),
        in_specs=in_specs,
        out_specs=pl.BlockSpec((1, H * W, 8), lambda n: (n, 0, 0)),
        compiler_params=pltpu.CompilerParams(
            dimension_semantics=("parallel",)),
    )(*inputs)

    out = out.reshape(N, H, W, 8)
    return out[..., 0:2], out[..., 2:6]          # cls logits, exp(scale*bbox)


# -----------------------------------------------------------------------------
# Parameters (deterministic, mirrors PulseHead.__init__ / init_weights)
# -----------------------------------------------------------------------------
def init_pulse_head_params(key, cfg):
    num_convs = cfg['num_convs']
    in_ch = cfg['in_channels']
    cls_ch = cfg['cls_channels']
    reg_ch = cfg['reg_channels']
    prior_prob = 0.01
    bias_value = -math.log((1 - prior_prob) / prior_prob)

    keys = jax.random.split(key, 2 * num_convs + 2)
    params = {'cls_tower': [], 'bbox_tower': []}
    for i in range(num_convs):
        cin_c = in_ch if i == 0 else cls_ch
        cin_r = in_ch if i == 0 else reg_ch
        params['cls_tower'].append(dict(
            w=0.01 * jax.random.normal(keys[2 * i], (3, 3, cin_c, cls_ch),
                                       jnp.float32),
            b=jnp.zeros((cls_ch,), jnp.float32),
            gamma=jnp.ones((cls_ch,), jnp.float32),
            beta=jnp.zeros((cls_ch,), jnp.float32)))
        params['bbox_tower'].append(dict(
            w=0.01 * jax.random.normal(keys[2 * i + 1], (3, 3, cin_r, reg_ch),
                                       jnp.float32),
            b=jnp.zeros((reg_ch,), jnp.float32),
            gamma=jnp.ones((reg_ch,), jnp.float32),
            beta=jnp.zeros((reg_ch,), jnp.float32)))
    params['cls_logits'] = dict(
        w=0.01 * jax.random.normal(keys[-2], (3, 3, cls_ch, 2), jnp.float32),
        b=jnp.full((2,), bias_value, jnp.float32))
    params['bbox_pred'] = dict(
        w=0.01 * jax.random.normal(keys[-1], (3, 3, reg_ch, 4), jnp.float32),
        b=jnp.zeros((4,), jnp.float32))
    # The PyTorch module registers 5 Scale modules (only len(fpn_strides) are used).
    params['scales'] = [jnp.ones((1,), jnp.float32) for _ in range(5)]
    return params


# -----------------------------------------------------------------------------
# Forward (inference path: returns (locations, logits, bbox_reg))
# -----------------------------------------------------------------------------
def compute_locations_per_level(h, w, stride):
    shifts_x = jnp.arange(0, w * stride, step=stride, dtype=jnp.float32)
    shifts_y = jnp.arange(0, h * stride, step=stride, dtype=jnp.float32)
    shift_y, shift_x = jnp.meshgrid(shifts_y, shifts_x, indexing='ij')
    return jnp.stack((shift_x.reshape(-1), shift_y.reshape(-1)),
                     axis=1) + stride // 2


def pulse_head_forward(params, features_nchw, *, groups=32, eps=1e-5):
    fused = build_fused_params(params, groups=groups)
    logits, bbox_reg, locations = [], [], []
    for l, feat in enumerate(features_nchw):
        x = jnp.transpose(feat, (0, 2, 3, 1))      # NCHW -> NHWC for the kernel
        cls_out, box_out = _run_fused_level(fused, x, params['scales'][l], eps=eps)
        logits.append(jnp.transpose(cls_out, (0, 3, 1, 2)))   # back to NCHW
        bbox_reg.append(jnp.transpose(box_out, (0, 3, 1, 2)))
        h, w = feat.shape[-2:]
        locations.append(compute_locations_per_level(h, w, FPN_STRIDES[l]))
    # TODO(synk): FCOSLossComputation (training-only loss) is not implemented;
    # this reproduces the eval/inference return path.
    return locations, logits, bbox_reg


# -----------------------------------------------------------------------------
# Demo
# -----------------------------------------------------------------------------
if __name__ == "__main__":
    cfg = {'num_convs': 1, 'in_channels': 32,
           'cls_channels': 32, 'reg_channels': 32}

    key = jax.random.PRNGKey(0)
    pkey, xkey1, xkey2 = jax.random.split(key, 3)
    params = init_pulse_head_params(pkey, cfg)

    # Two FPN levels, batch=2, NCHW inputs like the PyTorch module.
    feats = [
        jax.random.normal(xkey1, (2, cfg['in_channels'], 16, 16), jnp.float32),
        jax.random.normal(xkey2, (2, cfg['in_channels'], 8, 8), jnp.float32),
    ]

    locations, logits, bbox_reg = pulse_head_forward(params, feats)
    for t in locations + logits + bbox_reg:
        jax.block_until_ready(t)

    print("KERNEL_OK")
</pallas_src>

<mosaic_0001>
module attributes {stable_mosaic.version = 11 : i64} {
  func.func @fused_level_kernel(%arg0: i32, %arg1: memref<1x16x16x32xf32, #tpu.memory_space<vmem>>, %arg2: memref<3x96x64xbf16, #tpu.memory_space<vmem>>, %arg3: memref<1x64xf32, #tpu.memory_space<vmem>>, %arg4: memref<1x64xf32, #tpu.memory_space<vmem>>, %arg5: memref<1x64xf32, #tpu.memory_space<vmem>>, %arg6: memref<3x192x8xbf16, #tpu.memory_space<vmem>>, %arg7: memref<1x8xf32, #tpu.memory_space<vmem>>, %arg8: memref<1x1xf32, #tpu.memory_space<smem>>, %arg9: memref<1x256x8xf32, #tpu.memory_space<vmem>>) attributes {dimension_semantics = [#tpu.dimension_semantics<parallel>], iteration_bounds = array<i64: 2>, scalar_prefetch = 0 : i64, scratch_operands = 0 : i64, tpu.core_type = #tpu.core_type<tc>, window_params = [{transform_indices = @transform_0, window_bounds = array<i64: 1, 16, 16, 32>}, {pipeline_mode = #tpu.pipeline_mode<synchronous>, transform_indices = @transform_1, window_bounds = array<i64: 3, 96, 64>}, {pipeline_mode = #tpu.pipeline_mode<synchronous>, transform_indices = @transform_2, window_bounds = array<i64: 1, 64>}, {pipeline_mode = #tpu.pipeline_mode<synchronous>, transform_indices = @transform_3, window_bounds = array<i64: 1, 64>}, {pipeline_mode = #tpu.pipeline_mode<synchronous>, transform_indices = @transform_4, window_bounds = array<i64: 1, 64>}, {pipeline_mode = #tpu.pipeline_mode<synchronous>, transform_indices = @transform_5, window_bounds = array<i64: 3, 192, 8>}, {pipeline_mode = #tpu.pipeline_mode<synchronous>, transform_indices = @transform_6, window_bounds = array<i64: 1, 8>}, {transform_indices = @transform_7, window_bounds = array<i64: 1, 1>}, {transform_indices = @transform_8, window_bounds = array<i64: 1, 256, 8>}]} {
    %c0 = arith.constant 0 : index
    %c0_0 = arith.constant 0 : index
    %c0_1 = arith.constant 0 : index
    %c0_2 = arith.constant 0 : index
    %0 = vector.load %arg1[%c0, %c0_0, %c0_1, %c0_2] : memref<1x16x16x32xf32, #tpu.memory_space<vmem>>, vector<1x16x16x32xf32>
    %1 = vector.shape_cast %0 : vector<1x16x16x32xf32> to vector<16x16x32xf32>
    %cst = arith.constant 0.000000e+00 : f32
    %2 = vector.broadcast %cst : f32 to vector<1x16x32xf32>
    %3 = tpu.concatenate %2, %1, %2 in 0 : vector<1x16x32xf32>, vector<16x16x32xf32>, vector<1x16x32xf32> -> vector<18x16x32xf32>
    %cst_3 = arith.constant 0.000000e+00 : f32
    %4 = vector.broadcast %cst_3 : f32 to vector<18x8x32xf32>
    %5 = tpu.concatenate %4, %3, %4 in 1 : vector<18x8x32xf32>, vector<18x16x32xf32>, vector<18x8x32xf32> -> vector<18x32x32xf32>
    %cst_4 = arith.constant 0.000000e+00 : f32
    %6 = vector.broadcast %cst_4 : f32 to vector<256x64xf32>
    %7 = vector.extract_strided_slice %5 {offsets = [0, 0, 0], sizes = [16, 32, 32], strides = [1, 1, 1]} : vector<18x32x32xf32> to vector<16x32x32xf32>
    %8 = vector.extract_strided_slice %7 {offsets = [0, 7, 0], sizes = [16, 16, 32], strides = [1, 1, 1]} : vector<16x32x32xf32> to vector<16x16x32xf32>
    %9 = vector.extract_strided_slice %7 {offsets = [0, 8, 0], sizes = [16, 16, 32], strides = [1, 1, 1]} : vector<16x32x32xf32> to vector<16x16x32xf32>
    %10 = vector.extract_strided_slice %7 {offsets = [0, 9, 0], sizes = [16, 16, 32], strides = [1, 1, 1]} : vector<16x32x32xf32> to vector<16x16x32xf32>
    %11 = tpu.concatenate %8, %9, %10 in 2 : vector<16x16x32xf32>, vector<16x16x32xf32>, vector<16x16x32xf32> -> vector<16x16x96xf32>
    %12 = vector.shape_cast %11 : vector<16x16x96xf32> to vector<256x96xf32>
    %13 = arith.truncf %12 : vector<256x96xf32> to vector<256x96xbf16>
    %c0_5 = arith.constant 0 : index
    %c0_6 = arith.constant 0 : index
    %c0_7 = arith.constant 0 : index
    %14 = vector.load %arg2[%c0_5, %c0_6, %c0_7] : memref<3x96x64xbf16, #tpu.memory_space<vmem>>, vector<1x96x64xbf16>
    %15 = vector.shape_cast %14 : vector<1x96x64xbf16> to vector<96x64xbf16>
    %cst_8 = arith.constant dense<0.000000e+00> : vector<256x64xf32>
    %16 = tpu.matmul %13, %15, %cst_8 {dimension_numbers = #tpu.dot_dimension_numbers<[1], [0], [0], [1], [0, 0, 1, 1], [], []>} : vector<256x96xbf16>, vector<96x64xbf16>, vector<256x64xf32> -> vector<256x64xf32>
    %17 = arith.addf %6, %16 : vector<256x64xf32>
    %18 = vector.extract_strided_slice %5 {offsets = [1, 0, 0], sizes = [16, 32, 32], strides = [1, 1, 1]} : vector<18x32x32xf32> to vector<16x32x32xf32>
    %19 = vector.extract_strided_slice %18 {offsets = [0, 7, 0], sizes = [16, 16, 32], strides = [1, 1, 1]} : vector<16x32x32xf32> to vector<16x16x32xf32>
    %20 = vector.extract_strided_slice %18 {offsets = [0, 8, 0], sizes = [16, 16, 32], strides = [1, 1, 1]} : vector<16x32x32xf32> to vector<16x16x32xf32>
    %21 = vector.extract_strided_slice %18 {offsets = [0, 9, 0], sizes = [16, 16, 32], strides = [1, 1, 1]} : vector<16x32x32xf32> to vector<16x16x32xf32>
    %22 = tpu.concatenate %19, %20, %21 in 2 : vector<16x16x32xf32>, vector<16x16x32xf32>, vector<16x16x32xf32> -> vector<16x16x96xf32>
    %23 = vector.shape_cast %22 : vector<16x16x96xf32> to vector<256x96xf32>
    %24 = arith.truncf %23 : vector<256x96xf32> to vector<256x96xbf16>
    %c1 = arith.constant 1 : index
    %c0_9 = arith.constant 0 : index
    %c0_10 = arith.constant 0 : index
    %25 = vector.load %arg2[%c1, %c0_9, %c0_10] : memref<3x96x64xbf16, #tpu.memory_space<vmem>>, vector<1x96x64xbf16>
    %26 = vector.shape_cast %25 : vector<1x96x64xbf16> to vector<96x64xbf16>
    %cst_11 = arith.constant dense<0.000000e+00> : vector<256x64xf32>
    %27 = tpu.matmul %24, %26, %cst_11 {dimension_numbers = #tpu.dot_dimension_numbers<[1], [0], [0], [1], [0, 0, 1, 1], [], []>} : vector<256x96xbf16>, vector<96x64xbf16>, vector<256x64xf32> -> vector<256x64xf32>
    %28 = arith.addf %17, %27 : vector<256x64xf32>
    %29 = vector.extract_strided_slice %5 {offsets = [2, 0, 0], sizes = [16, 32, 32], strides = [1, 1, 1]} : vector<18x32x32xf32> to vector<16x32x32xf32>
    %30 = vector.extract_strided_slice %29 {offsets = [0, 7, 0], sizes = [16, 16, 32], strides = [1, 1, 1]} : vector<16x32x32xf32> to vector<16x16x32xf32>
    %31 = vector.extract_strided_slice %29 {offsets = [0, 8, 0], sizes = [16, 16, 32], strides = [1, 1, 1]} : vector<16x32x32xf32> to vector<16x16x32xf32>
    %32 = vector.extract_strided_slice %29 {offsets = [0, 9, 0], sizes = [16, 16, 32], strides = [1, 1, 1]} : vector<16x32x32xf32> to vector<16x16x32xf32>
    %33 = tpu.concatenate %30, %31, %32 in 2 : vector<16x16x32xf32>, vector<16x16x32xf32>, vector<16x16x32xf32> -> vector<16x16x96xf32>
    %34 = vector.shape_cast %33 : vector<16x16x96xf32> to vector<256x96xf32>
    %35 = arith.truncf %34 : vector<256x96xf32> to vector<256x96xbf16>
    %c2 = arith.constant 2 : index
    %c0_12 = arith.constant 0 : index
    %c0_13 = arith.constant 0 : index
    %36 = vector.load %arg2[%c2, %c0_12, %c0_13] : memref<3x96x64xbf16, #tpu.memory_space<vmem>>, vector<1x96x64xbf16>
    %37 = vector.shape_cast %36 : vector<1x96x64xbf16> to vector<96x64xbf16>
    %cst_14 = arith.constant dense<0.000000e+00> : vector<256x64xf32>
    %38 = tpu.matmul %35, %37, %cst_14 {dimension_numbers = #tpu.dot_dimension_numbers<[1], [0], [0], [1], [0, 0, 1, 1], [], []>} : vector<256x96xbf16>, vector<96x64xbf16>, vector<256x64xf32> -> vector<256x64xf32>
    %39 = arith.addf %28, %38 : vector<256x64xf32>
    %c0_15 = arith.constant 0 : index
    %c0_16 = arith.constant 0 : index
    %40 = vector.load %arg3[%c0_15, %c0_16] : memref<1x64xf32, #tpu.memory_space<vmem>>, vector<1x64xf32>
    %41 = vector.broadcast %40 : vector<1x64xf32> to vector<256x64xf32>
    %42 = arith.addf %39, %41 : vector<256x64xf32>
    %c0_17 = arith.constant 0 : index
    %c0_18 = arith.constant 0 : index
    %43 = vector.load %arg4[%c0_17, %c0_18] : memref<1x64xf32, #tpu.memory_space<vmem>>, vector<1x64xf32>
    %c0_19 = arith.constant 0 : index
    %c0_20 = arith.constant 0 : index
    %44 = vector.load %arg5[%c0_19, %c0_20] : memref<1x64xf32, #tpu.memory_space<vmem>>, vector<1x64xf32>
    %cst_21 = arith.constant dense<0.000000e+00> : vector<64xf32>
    %45 = vector.multi_reduction <add>, %42, %cst_21 [0] : vector<256x64xf32> to vector<64xf32>
    %46 = vector.shape_cast %45 : vector<64xf32> to vector<1x64xf32>
    %47 = arith.mulf %42, %42 : vector<256x64xf32>
    %cst_22 = arith.constant dense<0.000000e+00> : vector<64xf32>
    %48 = vector.multi_reduction <add>, %47, %cst_22 [0] : vector<256x64xf32> to vector<64xf32>
    %49 = vector.shape_cast %48 : vector<64xf32> to vector<1x64xf32>
    %cst_23 = arith.constant 2.560000e+02 : f32
    %50 = vector.broadcast %cst_23 : f32 to vector<1x64xf32>
    %51 = arith.divf %46, %50 : vector<1x64xf32>
    %cst_24 = arith.constant 2.560000e+02 : f32
    %52 = vector.broadcast %cst_24 : f32 to vector<1x64xf32>
    %53 = arith.divf %49, %52 : vector<1x64xf32>
    %54 = arith.mulf %51, %51 : vector<1x64xf32>
    %55 = arith.subf %53, %54 : vector<1x64xf32>
    %cst_25 = arith.constant 9.99999974E-6 : f32
    %56 = vector.broadcast %cst_25 : f32 to vector<1x64xf32>
    %57 = arith.addf %55, %56 : vector<1x64xf32>
    %58 = math.rsqrt %57 : vector<1x64xf32>
    %59 = vector.broadcast %51 : vector<1x64xf32> to vector<256x64xf32>
    %60 = arith.subf %42, %59 : vector<256x64xf32>
    %61 = arith.mulf %58, %43 : vector<1x64xf32>
    %62 = vector.broadcast %61 : vector<1x64xf32> to vector<256x64xf32>
    %63 = arith.mulf %60, %62 : vector<256x64xf32>
    %64 = vector.broadcast %44 : vector<1x64xf32> to vector<256x64xf32>
    %65 = arith.addf %63, %64 : vector<256x64xf32>
    %cst_26 = arith.constant 0.000000e+00 : f32
    %66 = vector.broadcast %cst_26 : f32 to vector<256x64xf32>
    %67 = arith.maximumf %65, %66 : vector<256x64xf32>
    %68 = vector.shape_cast %67 : vector<256x64xf32> to vector<16x16x64xf32>
    %cst_27 = arith.constant 0.000000e+00 : f32
    %69 = vector.broadcast %cst_27 : f32 to vector<1x16x64xf32>
    %70 = tpu.concatenate %69, %68, %69 in 0 : vector<1x16x64xf32>, vector<16x16x64xf32>, vector<1x16x64xf32> -> vector<18x16x64xf32>
    %cst_28 = arith.constant 0.000000e+00 : f32
    %71 = vector.broadcast %cst_28 : f32 to vector<18x8x64xf32>
    %72 = tpu.concatenate %71, %70, %71 in 1 : vector<18x8x64xf32>, vector<18x16x64xf32>, vector<18x8x64xf32> -> vector<18x32x64xf32>
    %cst_29 = arith.constant 0.000000e+00 : f32
    %73 = vector.broadcast %cst_29 : f32 to vector<256x8xf32>
    %74 = vector.extract_strided_slice %72 {offsets = [0, 0, 0], sizes = [16, 32, 64], strides = [1, 1, 1]} : vector<18x32x64xf32> to vector<16x32x64xf32>
    %75 = vector.extract_strided_slice %74 {offsets = [0, 7, 0], sizes = [16, 16, 64], strides = [1, 1, 1]} : vector<16x32x64xf32> to vector<16x16x64xf32>
    %76 = vector.extract_strided_slice %74 {offsets = [0, 8, 0], sizes = [16, 16, 64], strides = [1, 1, 1]} : vector<16x32x64xf32> to vector<16x16x64xf32>
    %77 = vector.extract_strided_slice %74 {offsets = [0, 9, 0], sizes = [16, 16, 64], strides = [1, 1, 1]} : vector<16x32x64xf32> to vector<16x16x64xf32>
    %78 = tpu.concatenate %75, %76, %77 in 2 : vector<16x16x64xf32>, vector<16x16x64xf32>, vector<16x16x64xf32> -> vector<16x16x192xf32>
    %79 = vector.shape_cast %78 : vector<16x16x192xf32> to vector<256x192xf32>
    %80 = arith.truncf %79 : vector<256x192xf32> to vector<256x192xbf16>
    %c0_30 = arith.constant 0 : index
    %c0_31 = arith.constant 0 : index
    %c0_32 = arith.constant 0 : index
    %81 = vector.load %arg6[%c0_30, %c0_31, %c0_32] : memref<3x192x8xbf16, #tpu.memory_space<vmem>>, vector<1x192x8xbf16>
    %82 = vector.shape_cast %81 : vector<1x192x8xbf16> to vector<192x8xbf16>
    %cst_33 = arith.constant dense<0.000000e+00> : vector<256x8xf32>
    %83 = tpu.matmul %80, %82, %cst_33 {dimension_numbers = #tpu.dot_dimension_numbers<[1], [0], [0], [1], [0, 0, 1, 1], [], []>} : vector<256x192xbf16>, vector<192x8xbf16>, vector<256x8xf32> -> vector<256x8xf32>
    %84 = arith.addf %73, %83 : vector<256x8xf32>
    %85 = vector.extract_strided_slice %72 {offsets = [1, 0, 0], sizes = [16, 32, 64], strides = [1, 1, 1]} : vector<18x32x64xf32> to vector<16x32x64xf32>
    %86 = vector.extract_strided_slice %85 {offsets = [0, 7, 0], sizes = [16, 16, 64], strides = [1, 1, 1]} : vector<16x32x64xf32> to vector<16x16x64xf32>
    %87 = vector.extract_strided_slice %85 {offsets = [0, 8, 0], sizes = [16, 16, 64], strides = [1, 1, 1]} : vector<16x32x64xf32> to vector<16x16x64xf32>
    %88 = vector.extract_strided_slice %85 {offsets = [0, 9, 0], sizes = [16, 16, 64], strides = [1, 1, 1]} : vector<16x32x64xf32> to vector<16x16x64xf32>
    %89 = tpu.concatenate %86, %87, %88 in 2 : vector<16x16x64xf32>, vector<16x16x64xf32>, vector<16x16x64xf32> -> vector<16x16x192xf32>
    %90 = vector.shape_cast %89 : vector<16x16x192xf32> to vector<256x192xf32>
    %91 = arith.truncf %90 : vector<256x192xf32> to vector<256x192xbf16>
    %c1_34 = arith.constant 1 : index
    %c0_35 = arith.constant 0 : index
    %c0_36 = arith.constant 0 : index
    %92 = vector.load %arg6[%c1_34, %c0_35, %c0_36] : memref<3x192x8xbf16, #tpu.memory_space<vmem>>, vector<1x192x8xbf16>
    %93 = vector.shape_cast %92 : vector<1x192x8xbf16> to vector<192x8xbf16>
    %cst_37 = arith.constant dense<0.000000e+00> : vector<256x8xf32>
    %94 = tpu.matmul %91, %93, %cst_37 {dimension_numbers = #tpu.dot_dimension_numbers<[1], [0], [0], [1], [0, 0, 1, 1], [], []>} : vector<256x192xbf16>, vector<192x8xbf16>, vector<256x8xf32> -> vector<256x8xf32>
    %95 = arith.addf %84, %94 : vector<256x8xf32>
    %96 = vector.extract_strided_slice %72 {offsets = [2, 0, 0], sizes = [16, 32, 64], strides = [1, 1, 1]} : vector<18x32x64xf32> to vector<16x32x64xf32>
    %97 = vector.extract_strided_slice %96 {offsets = [0, 7, 0], sizes = [16, 16, 64], strides = [1, 1, 1]} : vector<16x32x64xf32> to vector<16x16x64xf32>
    %98 = vector.extract_strided_slice %96 {offsets = [0, 8, 0], sizes = [16, 16, 64], strides = [1, 1, 1]} : vector<16x32x64xf32> to vector<16x16x64xf32>
    %99 = vector.extract_strided_slice %96 {offsets = [0, 9, 0], sizes = [16, 16, 64], strides = [1, 1, 1]} : vector<16x32x64xf32> to vector<16x16x64xf32>
    %100 = tpu.concatenate %97, %98, %99 in 2 : vector<16x16x64xf32>, vector<16x16x64xf32>, vector<16x16x64xf32> -> vector<16x16x192xf32>
    %101 = vector.shape_cast %100 : vector<16x16x192xf32> to vector<256x192xf32>
    %102 = arith.truncf %101 : vector<256x192xf32> to vector<256x192xbf16>
    %c2_38 = arith.constant 2 : index
    %c0_39 = arith.constant 0 : index
    %c0_40 = arith.constant 0 : index
    %103 = vector.load %arg6[%c2_38, %c0_39, %c0_40] : memref<3x192x8xbf16, #tpu.memory_space<vmem>>, vector<1x192x8xbf16>
    %104 = vector.shape_cast %103 : vector<1x192x8xbf16> to vector<192x8xbf16>
    %cst_41 = arith.constant dense<0.000000e+00> : vector<256x8xf32>
    %105 = tpu.matmul %102, %104, %cst_41 {dimension_numbers = #tpu.dot_dimension_numbers<[1], [0], [0], [1], [0, 0, 1, 1], [], []>} : vector<256x192xbf16>, vector<192x8xbf16>, vector<256x8xf32> -> vector<256x8xf32>
    %106 = arith.addf %95, %105 : vector<256x8xf32>
    %c0_42 = arith.constant 0 : index
    %c0_43 = arith.constant 0 : index
    %107 = vector.load %arg7[%c0_42, %c0_43] : memref<1x8xf32, #tpu.memory_space<vmem>>, vector<1x8xf32>
    %108 = vector.broadcast %107 : vector<1x8xf32> to vector<256x8xf32>
    %109 = arith.addf %106, %108 : vector<256x8xf32>
    %c0_44 = arith.constant 0 : index
    %c0_45 = arith.constant 0 : index
    %110 = memref.load %arg8[%c0_44, %c0_45] : memref<1x1xf32, #tpu.memory_space<smem>>
    %111 = tpu.iota {dimensions = array<i32: 1>} : vector<256x8xi32>
    %c2_i32 = arith.constant 2 : i32
    %112 = vector.broadcast %c2_i32 : i32 to vector<256x8xi32>
    %113 = arith.cmpi sge, %111, %112 : vector<256x8xi32>
    %c6_i32 = arith.constant 6 : i32
    %114 = vector.broadcast %c6_i32 : i32 to vector<256x8xi32>
    %115 = arith.cmpi slt, %111, %114 : vector<256x8xi32>
    %116 = arith.andi %113, %115 : vector<256x8xi1>
    %cst_46 = arith.constant 1.000000e+00 : f32
    %117 = vector.broadcast %110 : f32 to vector<256x8xf32>
    %118 = vector.broadcast %cst_46 : f32 to vector<256x8xf32>
    %119 = arith.select %116, %117, %118 : vector<256x8xi1>, vector<256x8xf32>
    %120 = arith.mulf %109, %119 : vector<256x8xf32>
    %121 = math.exp %120 : vector<256x8xf32>
    %122 = arith.select %116, %121, %120 : vector<256x8xi1>, vector<256x8xf32>
    %c0_47 = arith.constant 0 : index
    %c0_48 = arith.constant 0 : index
    %c0_49 = arith.constant 0 : index
    %123 = vector.load %arg9[%c0_47, %c0_48, %c0_49] : memref<1x256x8xf32, #tpu.memory_space<vmem>>, vector<1x256x8xf32>
    %124 = vector.shape_cast %123 : vector<1x256x8xf32> to vector<256x8xf32>
    %125 = vector.shape_cast %122 : vector<256x8xf32> to vector<1x256x8xf32>
    tpu.vector_store %arg9[%c0_47, %c0_48, %c0_49], %125 {strides = array<i32>} : memref<1x256x8xf32, #tpu.memory_space<vmem>>, vector<1x256x8xf32>,
    return
  }
  func.func @transform_0(%arg0: i32) -> (i32, i32, i32, i32) {
    %c0_i32 = arith.constant 0 : i32
    %c0_i32_0 = arith.constant 0 : i32
    %c0_i32_1 = arith.constant 0 : i32
    %c0_i32_2 = arith.constant 0 : i32
    return %arg0, %c0_i32, %c0_i32_0, %c0_i32_1 : i32, i32, i32, i32
  }
  func.func @transform_1(%arg0: i32) -> (i32, i32, i32) {
    %c0_i32 = arith.constant 0 : i32
    %c0_i32_0 = arith.constant 0 : i32
    %c0_i32_1 = arith.constant 0 : i32
    %c0_i32_2 = arith.constant 0 : i32
    return %c0_i32, %c0_i32_0, %c0_i32_1 : i32, i32, i32
  }
  func.func @transform_2(%arg0: i32) -> (i32, i32) {
    %c0_i32 = arith.constant 0 : i32
    %c0_i32_0 = arith.constant 0 : i32
    %c0_i32_1 = arith.constant 0 : i32
    return %c0_i32, %c0_i32_0 : i32, i32
  }
  func.func @transform_3(%arg0: i32) -> (i32, i32) {
    %c0_i32 = arith.constant 0 : i32
    %c0_i32_0 = arith.constant 0 : i32
    %c0_i32_1 = arith.constant 0 : i32
    return %c0_i32, %c0_i32_0 : i32, i32
  }
  func.func @transform_4(%arg0: i32) -> (i32, i32) {
    %c0_i32 = arith.constant 0 : i32
    %c0_i32_0 = arith.constant 0 : i32
    %c0_i32_1 = arith.constant 0 : i32
    return %c0_i32, %c0_i32_0 : i32, i32
  }
  func.func @transform_5(%arg0: i32) -> (i32, i32, i32) {
    %c0_i32 = arith.constant 0 : i32
    %c0_i32_0 = arith.constant 0 : i32
    %c0_i32_1 = arith.constant 0 : i32
    %c0_i32_2 = arith.constant 0 : i32
    return %c0_i32, %c0_i32_0, %c0_i32_1 : i32, i32, i32
  }
  func.func @transform_6(%arg0: i32) -> (i32, i32) {
    %c0_i32 = arith.constant 0 : i32
    %c0_i32_0 = arith.constant 0 : i32
    %c0_i32_1 = arith.constant 0 : i32
    return %c0_i32, %c0_i32_0 : i32, i32
  }
  func.func @transform_7(%arg0: i32) -> (i32, i32) {
    %c0_i32 = arith.constant 0 : i32
    %c0_i32_0 = arith.constant 0 : i32
    %c0_i32_1 = arith.constant 0 : i32
    return %c0_i32, %c0_i32_0 : i32, i32
  }
  func.func @transform_8(%arg0: i32) -> (i32, i32, i32) {
    %c0_i32 = arith.constant 0 : i32
    %c0_i32_0 = arith.constant 0 : i32
    %c0_i32_1 = arith.constant 0 : i32
    return %arg0, %c0_i32, %c0_i32_0 : i32, i32, i32
  }
}

</mosaic_0001>

<llo_original>
// kernel: tpu_custom_call.1
$region0: #{tpu_custom_call.1}
  #allocation0 [shape = 'u32[]', space=smem, size = 0x4, offset = 0x4, fixed_abs, tag = 'smem constant byte address 0x4 - core index']
  #allocation1 [shape = 'u32[144,128]{1,0:T(1,128)}', space=vmem, size = 0x12000, scoped, tag = 'internal scratch']
  #allocation2 [shape = 'f32[1,1]{1,0:T(1,128)S(6)}', space=smem, size = 0x200, scoped, tag = 'scoped memory for tpu_custom_call.1']
  %s0 = inlined_call_operand.vmem [shape: f32[2,16,16,32], index: 0, kind: input, shape index: {}]
  %s1 = inlined_call_operand.vmem [shape: bf16[3,96,64], index: 1, kind: input, shape index: {}]
  %s2 = inlined_call_operand.vmem [shape: f32[1,64], index: 2, kind: input, shape index: {}]
  %s3 = inlined_call_operand.vmem [shape: f32[1,64], index: 3, kind: input, shape index: {}]
  %s4 = inlined_call_operand.vmem [shape: f32[1,64], index: 4, kind: input, shape index: {}]
  %s5 = inlined_call_operand.vmem [shape: bf16[3,192,8], index: 5, kind: input, shape index: {}]
  %s6 = inlined_call_operand.vmem [shape: f32[1,8], index: 6, kind: input, shape index: {}]
  %s7 = inlined_call_operand.<no memory space> [shape: f32[1,1], index: 7, kind: input, shape index: {}]
  %s8 = inlined_call_operand.vmem [shape: f32[2,256,8], index: 8, kind: output, shape index: {}]
  %s9 = sld [smem:[#allocation0]]
  $region65: #{tpu_custom_call.1} parent=0
    _
  %s11 = ssub.s32 1, %s9
  %s12 = scalar_select 0, %s11, %s9
  %13 = sst [smem:[#allocation2]] %s7
  loop: start=0, step=1, limit=4
  $region2: #{tpu_custom_call.1} parent=0 // loop_pre_header
    _
  $region3: #{tpu_custom_call.1} parent=0 // loop_header
    %s15 = sphi 0, %s19
    %p16 = scmp.ge.s32.totalorder %s15, 4
    %s25 = sphi 0, %s27
    %s28 = sphi 0, %s25
    %s29 = sphi 0, %s28
    %s45 = sphi 0, %s29
    %s49 = sphi 0, %s49
    %s51 = sphi 0, %s49
    %s52 = sphi 0, %s51
    %s66 = sphi 0, %s52
    %s70 = sphi 0, %s70
    %s72 = sphi 0, %s70
    %s73 = sphi 0, %s72
    %s87 = sphi 0, %s73
    %s91 = sphi 0, %s91
    %s93 = sphi 0, %s91
    %s94 = sphi 0, %s93
    %s108 = sphi 0, %s94
    %s112 = sphi 0, %s112
    %s114 = sphi 0, %s112
    %s115 = sphi 0, %s114
    %s129 = sphi 0, %s115
    %s133 = sphi 0, %s133
    %s135 = sphi 0, %s133
    %s136 = sphi 0, %s135
    %s150 = sphi 0, %s136
    %s154 = sphi 0, %s154
    %s156 = sphi 0, %s154
    %s157 = sphi 0, %s156
    %s171 = sphi 0, %s157
    %s175 = sphi 0, %s175
    %s177 = sphi 0, %s175
    %s178 = sphi 0, %s177
    %s192 = sphi 0, %s178
    %s198 = sphi 0, %s200
    %s201 = sphi 0, %s198
    %s202 = sphi 0, %s201
    %s218 = sphi 0, %s202
  $region4: #{tpu_custom_call.1} parent=0 // loop_header_branch
    %18 = sbr.rel (%p16) target = $region8
  $region5: #{tpu_custom_call.1} parent=0 // loop_body
    %s20 = ssub.s32 %s15, 1
    %s21 = ssub.s32 %s15, 2
    %s22 = sadd.s32 %s15, 1
    %s23 = ssub.s32 %s15, %s22
    %p24 = scmp.eq.s32.totalorder %s23, 0
    %s26 = sadd.s32 %s25, 1
    %s27 = scalar_select %p24, %s25, %s26
    %p30 = pneg %p24
    %p31 = scmp.eq.s32.totalorder %s15, 1
    %p32 = por %p30, %p31
    %p33 = scmp.ne.s32.totalorder %s25, %s28
    %p34 = scmp.eq.s32.totalorder %s15, 0
    %p35 = por %p33, %p34
    %p36 = scmp.ne.s32.totalorder %s25, %s28
    %p37 = scmp.eq.s32.totalorder %s20, 1
    %p38 = por %p36, %p37
    %p39 = scmp.ne.s32.totalorder %s28, %s29
    %p40 = scmp.eq.s32.totalorder %s20, 0
    %p41 = por %p39, %p40
    %p42 = scmp.ne.s32.totalorder %s28, %s29
    %p43 = scmp.eq.s32.totalorder %s21, 1
    %p44 = por %p42, %p43
    %p46 = scmp.ne.s32.totalorder %s29, %s45
    %p47 = scmp.eq.s32.totalorder %s21, 0
    %p48 = por %p46, %p47
    %s50 = sadd.s32 %s49, 1
    %p53 = scmp.eq.s32.totalorder %s15, 1
    %p54 = scmp.ne.s32.totalorder %s49, %s51
    %p55 = scmp.eq.s32.totalorder %s15, 0
    %p56 = por %p54, %p55
    %p57 = scmp.ne.s32.totalorder %s49, %s51
    %p58 = scmp.eq.s32.totalorder %s20, 1
    %p59 = por %p57, %p58
    %p60 = scmp.ne.s32.totalorder %s51, %s52
    %p61 = scmp.eq.s32.totalorder %s20, 0
    %p62 = por %p60, %p61
    %p63 = scmp.ne.s32.totalorder %s51, %s52
    %p64 = scmp.eq.s32.totalorder %s21, 1
    %p65 = por %p63, %p64
    %p67 = scmp.ne.s32.totalorder %s52, %s66
    %p68 = scmp.eq.s32.totalorder %s21, 0
    %p69 = por %p67, %p68
    %s71 = sadd.s32 %s70, 1
    %p74 = scmp.eq.s32.totalorder %s15, 1
    %p75 = scmp.ne.s32.totalorder %s70, %s72
    %p76 = scmp.eq.s32.totalorder %s15, 0
    %p77 = por %p75, %p76
    %p78 = scmp.ne.s32.totalorder %s70, %s72
    %p79 = scmp.eq.s32.totalorder %s20, 1
    %p80 = por %p78, %p79
    %p81 = scmp.ne.s32.totalorder %s72, %s73
    %p82 = scmp.eq.s32.totalorder %s20, 0
    %p83 = por %p81, %p82
    %p84 = scmp.ne.s32.totalorder %s72, %s73
    %p85 = scmp.eq.s32.totalorder %s21, 1
    %p86 = por %p84, %p85
    %p88 = scmp.ne.s32.totalorder %s73, %s87
    %p89 = scmp.eq.s32.totalorder %s21, 0
    %p90 = por %p88, %p89
    %s92 = sadd.s32 %s91, 1
    %p95 = scmp.eq.s32.totalorder %s15, 1
    %p96 = scmp.ne.s32.totalorder %s91, %s93
    %p97 = scmp.eq.s32.totalorder %s15, 0
    %p98 = por %p96, %p97
    %p99 = scmp.ne.s32.totalorder %s91, %s93
    %p100 = scmp.eq.s32.totalorder %s20, 1
    %p101 = por %p99, %p100
    %p102 = scmp.ne.s32.totalorder %s93, %s94
    %p103 = scmp.eq.s32.totalorder %s20, 0
    %p104 = por %p102, %p103
    %p105 = scmp.ne.s32.totalorder %s93, %s94
    %p106 = scmp.eq.s32.totalorder %s21, 1
    %p107 = por %p105, %p106
    %p109 = scmp.ne.s32.totalorder %s94, %s108
    %p110 = scmp.eq.s32.totalorder %s21, 0
    %p111 = por %p109, %p110
    %s113 = sadd.s32 %s112, 1
    %p116 = scmp.eq.s32.totalorder %s15, 1
    %p117 = scmp.ne.s32.totalorder %s112, %s114
    %p118 = scmp.eq.s32.totalorder %s15, 0
    %p119 = por %p117, %p118
    %p120 = scmp.ne.s32.totalorder %s112, %s114
    %p121 = scmp.eq.s32.totalorder %s20, 1
    %p122 = por %p120, %p121
    %p123 = scmp.ne.s32.totalorder %s114, %s115
    %p124 = scmp.eq.s32.totalorder %s20, 0
    %p125 = por %p123, %p124
    %p126 = scmp.ne.s32.totalorder %s114, %s115
    %p127 = scmp.eq.s32.totalorder %s21, 1
    %p128 = por %p126, %p127
    %p130 = scmp.ne.s32.totalorder %s115, %s129
    %p131 = scmp.eq.s32.totalorder %s21, 0
    %p132 = por %p130, %p131
    %s134 = sadd.s32 %s133, 1
    %p137 = scmp.eq.s32.totalorder %s15, 1
    %p138 = scmp.ne.s32.totalorder %s133, %s135
    %p139 = scmp.eq.s32.totalorder %s15, 0
    %p140 = por %p138, %p139
    %p141 = scmp.ne.s32.totalorder %s133, %s135
    %p142 = scmp.eq.s32.totalorder %s20, 1
    %p143 = por %p141, %p142
    %p144 = scmp.ne.s32.totalorder %s135, %s136
    %p145 = scmp.eq.s32.totalorder %s20, 0
    %p146 = por %p144, %p145
    %p147 = scmp.ne.s32.totalorder %s135, %s136
    %p148 = scmp.eq.s32.totalorder %s21, 1
    %p149 = por %p147, %p148
    %p151 = scmp.ne.s32.totalorder %s136, %s150
    %p152 = scmp.eq.s32.totalorder %s21, 0
    %p153 = por %p151, %p152
    %s155 = sadd.s32 %s154, 1
    %p158 = scmp.eq.s32.totalorder %s15, 1
    %p159 = scmp.ne.s32.totalorder %s154, %s156
    %p160 = scmp.eq.s32.totalorder %s15, 0
    %p161 = por %p159, %p160
    %p162 = scmp.ne.s32.totalorder %s154, %s156
    %p163 = scmp.eq.s32.totalorder %s20, 1
    %p164 = por %p162, %p163
    %p165 = scmp.ne.s32.totalorder %s156, %s157
    %p166 = scmp.eq.s32.totalorder %s20, 0
    %p167 = por %p165, %p166
    %p168 = scmp.ne.s32.totalorder %s156, %s157
    %p169 = scmp.eq.s32.totalorder %s21, 1
    %p170 = por %p168, %p169
    %p172 = scmp.ne.s32.totalorder %s157, %s171
    %p173 = scmp.eq.s32.totalorder %s21, 0
    %p174 = por %p172, %p173
    %s176 = sadd.s32 %s175, 1
    %p179 = scmp.eq.s32.totalorder %s15, 1
    %p180 = scmp.ne.s32.totalorder %s175, %s177
    %p181 = scmp.eq.s32.totalorder %s15, 0
    %p182 = por %p180, %p181
    %p183 = scmp.ne.s32.totalorder %s175, %s177
    %p184 = scmp.eq.s32.totalorder %s20, 1
    %p185 = por %p183, %p184
    %p186 = scmp.ne.s32.totalorder %s177, %s178
    %p187 = scmp.eq.s32.totalorder %s20, 0
    %p188 = por %p186, %p187
    %p189 = scmp.ne.s32.totalorder %s177, %s178
    %p190 = scmp.eq.s32.totalorder %s21, 1
    %p191 = por %p189, %p190
    %p193 = scmp.ne.s32.totalorder %s178, %s192
    %p194 = scmp.eq.s32.totalorder %s21, 0
    %p195 = por %p193, %p194
    %s196 = ssub.s32 %s15, %s22
    %p197 = scmp.eq.s32.totalorder %s196, 0
    %s199 = sadd.s32 %s198, 1
    %s200 = scalar_select %p197, %s198, %s199
    %p203 = pneg %p197
    %p204 = scmp.eq.s32.totalorder %s15, 1
    %p205 = por %p203, %p204
    %p206 = scmp.ne.s32.totalorder %s198, %s201
    %p207 = scmp.eq.s32.totalorder %s15, 0
    %p208 = por %p206, %p207
    %p209 = scmp.ne.s32.totalorder %s198, %s201
    %p210 = scmp.eq.s32.totalorder %s20, 1
    %p211 = por %p209, %p210
    %p212 = scmp.ne.s32.totalorder %s201, %s202
    %p213 = scmp.eq.s32.totalorder %s20, 0
    %p214 = por %p212, %p213
    %p215 = scmp.ne.s32.totalorder %s201, %s202
    %p216 = scmp.eq.s32.totalorder %s21, 1
    %p217 = por %p215, %p216
    %p219 = scmp.ne.s32.totalorder %s202, %s218
    %p220 = scmp.eq.s32.totalorder %s21, 0
    %p221 = por %p219, %p220
    %p222 = scmp.le.s32.totalorder 1, %s15
    %p223 = scmp.lt.s32.totalorder %s15, 3
    %p224 = pnand %p222, %p223
    %p225 = pneg %p224
    // Predicated region
    $region9: #{tpu_custom_call.1} parent=5 // pred_check
      _
    $region10: #{tpu_custom_call.1} parent=5 // pred_check_branch
      %227 = sbr.rel (%p224) target = $region12
    $region11: #{tpu_custom_call.1} parent=5 // pred_region
      %s228 = ssub.s32 %s15, 1
      // Predicated region
      $region13: #{tpu_custom_call.1} parent=11 // pred_check
        %p229 = pneg %p62
      $region14: #{tpu_custom_call.1} parent=11 // pred_check_branch
        %231 = sbr.rel (%p229) target = $region16
      $region15: #{tpu_custom_call.1} parent=11 // pred_region
        _
      $region16: #{tpu_custom_call.1} parent=11 // pred_fallthru
        _
      // Predicated region
      $region17: #{tpu_custom_call.1} parent=11 // pred_check
        %p232 = pneg %p83
      $region18: #{tpu_custom_call.1} parent=11 // pred_check_branch
        %234 = sbr.rel (%p232) target = $region20
      $region19: #{tpu_custom_call.1} parent=11 // pred_region
        _
      $region20: #{tpu_custom_call.1} parent=11 // pred_fallthru
        _
      // Predicated region
      $region21: #{tpu_custom_call.1} parent=11 // pred_check
        %p235 = pneg %p104
      $region22: #{tpu_custom_call.1} parent=11 // pred_check_branch
        %237 = sbr.rel (%p235) target = $region24
      $region23: #{tpu_custom_call.1} parent=11 // pred_region
        _
      $region24: #{tpu_custom_call.1} parent=11 // pred_fallthru
        _
      // Predicated region
      $region25: #{tpu_custom_call.1} parent=11 // pred_check
        %p238 = pneg %p125
      $region26: #{tpu_custom_call.1} parent=11 // pred_check_branch
        %240 = sbr.rel (%p238) target = $region28
      $region27: #{tpu_custom_call.1} parent=11 // pred_region
        _
      $region28: #{tpu_custom_call.1} parent=11 // pred_fallthru
        _
      // Predicated region
      $region29: #{tpu_custom_call.1} parent=11 // pred_check
        %p241 = pneg %p146
      $region30: #{tpu_custom_call.1} parent=11 // pred_check_branch
        %243 = sbr.rel (%p241) target = $region32
      $region31: #{tpu_custom_call.1} parent=11 // pred_region
        _
      $region32: #{tpu_custom_call.1} parent=11 // pred_fallthru
        _
      // Predicated region
      $region33: #{tpu_custom_call.1} parent=11 // pred_check
        %p244 = pneg %p167
      $region34: #{tpu_custom_call.1} parent=11 // pred_check_branch
        %246 = sbr.rel (%p244) target = $region36
      $region35: #{tpu_custom_call.1} parent=11 // pred_region
        _
      $region36: #{tpu_custom_call.1} parent=11 // pred_fallthru
        _
      // Predicated region
      $region37: #{tpu_custom_call.1} parent=11 // pred_check
        %p247 = pneg %p188
      $region38: #{tpu_custom_call.1} parent=11 // pred_check_branch
        %249 = sbr.rel (%p247) target = $region40
      $region39: #{tpu_custom_call.1} parent=11 // pred_region
        _
      $region40: #{tpu_custom_call.1} parent=11 // pred_fallthru
        _
    $region12: #{tpu_custom_call.1} parent=5 // pred_fallthru
      _
    %p250 = scmp.lt.s32.totalorder %s15, 2
    // Predicated region
    $region41: #{tpu_custom_call.1} parent=5 // pred_check
      %p251 = pneg %p250
    $region42: #{tpu_custom_call.1} parent=5 // pred_check_branch
      %253 = sbr.rel (%p251) target = $region44
    $region43: #{tpu_custom_call.1} parent=5 // pred_region
      // Predicated region
      $region45: #{tpu_custom_call.1} parent=43 // pred_check
        %p254 = pneg %p35
      $region46: #{tpu_custom_call.1} parent=43 // pred_check_branch
        %256 = sbr.rel (%p254) target = $region48
      $region47: #{tpu_custom_call.1} parent=43 // pred_region
        %p257 = scmp.lt.s32.totalorder %s15, 1
        %s258 = scalar_select %p257, %s15, 1
        %s259 = smul.addr %s258, 32
        %s260 = smul.addr %s259, 8
        %s261 = scalar_lea.vmem %s0, %s260
      $region48: #{tpu_custom_call.1} parent=43 // pred_fallthru
        _
    $region44: #{tpu_custom_call.1} parent=5 // pred_fallthru
      _
    %p262 = scmp.le.s32.totalorder 1, %s15
    %p263 = scmp.lt.s32.totalorder %s15, 3
    %p264 = pnand %p262, %p263
    %p265 = pneg %p264
    // Predicated region
    $region49: #{tpu_custom_call.1} parent=5 // pred_check
      _
    $region50: #{tpu_custom_call.1} parent=5 // pred_check_branch
      %267 = sbr.rel (%p264) target = $region52
    $region51: #{tpu_custom_call.1} parent=5 // pred_region
      %s268 = ssub.s32 %s15, 1
      %p269 = scmp.lt.s32.totalorder %s20, 1
      %s270 = scalar_select %p269, %s20, 1
      %s271 = smul.addr %s270, 32
      %s272 = smul.addr %s271, 8
      %s273 = scalar_lea.vmem %s0, %s272
      %p274 = pneg %p41
      %p275 = pneg %p38
      %p276 = pneg %p62
      %p277 = pneg %p59
      %p278 = pneg %p83
      %p279 = pneg %p80
      %p280 = pneg %p104
      %p281 = pneg %p101
      %p282 = pneg %p125
      %p283 = pneg %p122
      %p284 = pneg %p146
      %p285 = pneg %p143
      %p286 = pneg %p167
      %p287 = pneg %p164
      %p288 = pneg %p188
      %p289 = pneg %p185
      %p290 = pneg %p214
      %p291 = pneg %p211
      %p292 = scmp.lt.s32.totalorder %s20, 1
      %s293 = scalar_select %p292, %s20, 1
      %s294 = smul.addr %s293, 32
      %s295 = smul.addr %s294, 8
      %s296 = scalar_lea.vmem %s8, %s295
      %p297 = scmp.lt.s32.totalorder %s20, 1
      %s298 = scalar_select %p297, %s20, 1
      %s299 = smul.addr %s298, 32
      %s300 = smul.addr %s299, 8
      %s301 = scalar_lea.vmem %s0, %s300
      %p302 = scmp.lt.s32.totalorder %s20, 1
      %s303 = scalar_select %p302, %s20, 1
      %s304 = smul.addr %s303, 32
      %s305 = smul.addr %s304, 8
      %s306 = scalar_lea.vmem %s8, %s305
      %v308 = vld [vmem:[%s301] sm:$0xff]
      %v309 = vld [vmem:[%s301 + $0x8] sm:$0xff]
      %v310 = vld [vmem:[%s301 + $0x10] sm:$0xff]
      %v311 = vld [vmem:[%s301 + $0x18] sm:$0xff]
      %v312 = vld [vmem:[%s301 + $0x20] sm:$0xff]
      %v313 = vld [vmem:[%s301 + $0x28] sm:$0xff]
      %v314 = vld [vmem:[%s301 + $0x30] sm:$0xff]
      %v315 = vld [vmem:[%s301 + $0x38] sm:$0xff]
      %v316 = vld [vmem:[%s301 + $0x40] sm:$0xff]
      %v317 = vld [vmem:[%s301 + $0x48] sm:$0xff]
      %v318 = vld [vmem:[%s301 + $0x50] sm:$0xff]
      %v319 = vld [vmem:[%s301 + $0x58] sm:$0xff]
      %v320 = vld [vmem:[%s301 + $0x60] sm:$0xff]
      %v321 = vld [vmem:[%s301 + $0x68] sm:$0xff]
      %v322 = vld [vmem:[%s301 + $0x70] sm:$0xff]
      %v323 = vld [vmem:[%s301 + $0x78] sm:$0xff]
      %v324 = vld [vmem:[%s301 + $0x80] sm:$0xff]
      %v325 = vld [vmem:[%s301 + $0x88] sm:$0xff]
      %v326 = vld [vmem:[%s301 + $0x90] sm:$0xff]
      %v327 = vld [vmem:[%s301 + $0x98] sm:$0xff]
      %v328 = vld [vmem:[%s301 + $0xa0] sm:$0xff]
      %v329 = vld [vmem:[%s301 + $0xa8] sm:$0xff]
      %v330 = vld [vmem:[%s301 + $0xb0] sm:$0xff]
      %v331 = vld [vmem:[%s301 + $0xb8] sm:$0xff]
      %v332 = vld [vmem:[%s301 + $0xc0] sm:$0xff]
      %v333 = vld [vmem:[%s301 + $0xc8] sm:$0xff]
      %v334 = vld [vmem:[%s301 + $0xd0] sm:$0xff]
      %v335 = vld [vmem:[%s301 + $0xd8] sm:$0xff]
      %v336 = vld [vmem:[%s301 + $0xe0] sm:$0xff]
      %v337 = vld [vmem:[%s301 + $0xe8] sm:$0xff]
      %v338 = vld [vmem:[%s301 + $0xf0] sm:$0xff]
      %v339 = vld [vmem:[%s301 + $0xf8] sm:$0xff]
      %vm371 = vcmask 1046528
      %v372 = vrot.slane 0.0, 1
      %v373 = vsel %vm371, %v372, %v372
      %v374 = vrot.slane %v308, 1
      %v375 = vrot.slane %v309, 1
      %v376 = vsel %vm371, %v374, %v375
      %v377 = vrot.slane %v310, 1
      %v378 = vrot.slane %v311, 1
      %v379 = vsel %vm371, %v377, %v378
      %v380 = vrot.slane %v312, 1
      %v381 = vrot.slane %v313, 1
      %v382 = vsel %vm371, %v380, %v381
      %v383 = vrot.slane %v314, 1
      %v384 = vrot.slane %v315, 1
      %v385 = vsel %vm371, %v383, %v384
      %v386 = vrot.slane %v316, 1
      %v387 = vrot.slane %v317, 1
      %v388 = vsel %vm371, %v386, %v387
      %v389 = vrot.slane %v318, 1
      %v390 = vrot.slane %v319, 1
      %v391 = vsel %vm371, %v389, %v390
      %v392 = vrot.slane %v320, 1
      %v393 = vrot.slane %v321, 1
      %v394 = vsel %vm371, %v392, %v393
      %v395 = vrot.slane %v322, 1
      %v396 = vrot.slane %v323, 1
      %v397 = vsel %vm371, %v395, %v396
      %v398 = vrot.slane %v324, 1
      %v399 = vrot.slane %v325, 1
      %v400 = vsel %vm371, %v398, %v399
      %v401 = vrot.slane %v326, 1
      %v402 = vrot.slane %v327, 1
      %v403 = vsel %vm371, %v401, %v402
      %v404 = vrot.slane %v328, 1
      %v405 = vrot.slane %v329, 1
      %v406 = vsel %vm371, %v404, %v405
      %v407 = vrot.slane %v330, 1
      %v408 = vrot.slane %v331, 1
      %v409 = vsel %vm371, %v407, %v408
      %v410 = vrot.slane %v332, 1
      %v411 = vrot.slane %v333, 1
      %v412 = vsel %vm371, %v410, %v411
      %v413 = vrot.slane %v334, 1
      %v414 = vrot.slane %v335, 1
      %v415 = vsel %vm371, %v413, %v414
      %v416 = vrot.slane %v336, 1
      %v417 = vrot.slane %v337, 1
      %v418 = vsel %vm371, %v416, %v417
      %419 = vrot.lane.b32.xlu0 %v372, 32
      %v420 = vpop.permute.xlu0 %419
      %421 = vrot.lane.b32.xlu0 %v373, 32
      %v422 = vpop.permute.xlu0 %421
      %423 = vrot.lane.b32.xlu0 %v374, 32
      %v424 = vpop.permute.xlu0 %423
      %425 = vrot.lane.b32.xlu0 %v376, 32
      %v426 = vpop.permute.xlu0 %425
      %427 = vrot.lane.b32.xlu0 %v375, 32
      %v428 = vpop.permute.xlu0 %427
      %429 = vrot.lane.b32.xlu0 %v377, 32
      %v430 = vpop.permute.xlu0 %429
      %431 = vrot.lane.b32.xlu0 %v379, 32
      %v432 = vpop.permute.xlu0 %431
      %433 = vrot.lane.b32.xlu0 %v378, 32
      %v434 = vpop.permute.xlu0 %433
      %435 = vrot.lane.b32.xlu0 %v380, 32
      %v436 = vpop.permute.xlu0 %435
      %437 = vrot.lane.b32.xlu0 %v382, 32
      %v438 = vpop.permute.xlu0 %437
      %439 = vrot.lane.b32.xlu0 %v381, 32
      %v440 = vpop.permute.xlu0 %439
      %441 = vrot.lane.b32.xlu0 %v383, 32
      %v442 = vpop.permute.xlu0 %441
      %443 = vrot.lane.b32.xlu0 %v385, 32
      %v444 = vpop.permute.xlu0 %443
      %445 = vrot.lane.b32.xlu0 %v384, 32
      %v446 = vpop.permute.xlu0 %445
      %447 = vrot.lane.b32.xlu0 %v386, 32
      %v448 = vpop.permute.xlu0 %447
      %449 = vrot.lane.b32.xlu0 %v388, 32
      %v450 = vpop.permute.xlu0 %449
      %451 = vrot.lane.b32.xlu0 %v387, 32
      %v452 = vpop.permute.xlu0 %451
      %453 = vrot.lane.b32.xlu0 %v389, 32
      %v454 = vpop.permute.xlu0 %453
      %455 = vrot.lane.b32.xlu0 %v391, 32
      %v456 = vpop.permute.xlu0 %455
      %457 = vrot.lane.b32.xlu0 %v390, 32
      %v458 = vpop.permute.xlu0 %457
      %459 = vrot.lane.b32.xlu0 %v392, 32
      %v460 = vpop.permute.xlu0 %459
      %461 = vrot.lane.b32.xlu0 %v394, 32
      %v462 = vpop.permute.xlu0 %461
      %463 = vrot.lane.b32.xlu0 %v393, 32
      %v464 = vpop.permute.xlu0 %463
      %465 = vrot.lane.b32.xlu0 %v395, 32
      %v466 = vpop.permute.xlu0 %465
      %467 = vrot.lane.b32.xlu0 %v397, 32
      %v468 = vpop.permute.xlu0 %467
      %469 = vrot.lane.b32.xlu0 %v396, 32
      %v470 = vpop.permute.xlu0 %469
      %471 = vrot.lane.b32.xlu0 %v398, 32
      %v472 = vpop.permute.xlu0 %471
      %473 = vrot.lane.b32.xlu0 %v400, 32
      %v474 = vpop.permute.xlu0 %473
      %475 = vrot.lane.b32.xlu0 %v399, 32
      %v476 = vpop.permute.xlu0 %475
      %477 = vrot.lane.b32.xlu0 %v401, 32
      %v478 = vpop.permute.xlu0 %477
      %479 = vrot.lane.b32.xlu0 %v403, 32
      %v480 = vpop.permute.xlu0 %479
      %481 = vrot.lane.b32.xlu0 %v402, 32
      %v482 = vpop.permute.xlu0 %481
      %483 = vrot.lane.b32.xlu0 %v404, 32
      %v484 = vpop.permute.xlu0 %483
      %485 = vrot.lane.b32.xlu0 %v406, 32
      %v486 = vpop.permute.xlu0 %485
      %487 = vrot.lane.b32.xlu0 %v405, 32
      %v488 = vpop.permute.xlu0 %487
      %489 = vrot.lane.b32.xlu0 %v407, 32
      %v490 = vpop.permute.xlu0 %489
      %491 = vrot.lane.b32.xlu0 %v409, 32
      %v492 = vpop.permute.xlu0 %491
      %493 = vrot.lane.b32.xlu0 %v408, 32
      %v494 = vpop.permute.xlu0 %493
      %495 = vrot.lane.b32.xlu0 %v410, 32
      %v496 = vpop.permute.xlu0 %495
      %497 = vrot.lane.b32.xlu0 %v412, 32
      %v498 = vpop.permute.xlu0 %497
      %499 = vrot.lane.b32.xlu0 %v411, 32
      %v500 = vpop.permute.xlu0 %499
      %501 = vrot.lane.b32.xlu0 %v413, 32
      %v502 = vpop.permute.xlu0 %501
      %503 = vrot.lane.b32.xlu0 %v415, 32
      %v504 = vpop.permute.xlu0 %503
      %505 = vrot.lane.b32.xlu0 %v414, 32
      %v506 = vpop.permute.xlu0 %505
      %507 = vrot.lane.b32.xlu0 %v416, 32
      %v508 = vpop.permute.xlu0 %507
      %509 = vrot.lane.b32.xlu0 %v418, 32
      %v510 = vpop.permute.xlu0 %509
      %511 = vrot.lane.b32.xlu0 %v417, 32
      %v512 = vpop.permute.xlu0 %511
      %vm560 = vcmask 1045504
      %v561 = vrot.slane 0.0, 2
      %v562 = vsel %vm560, %v561, %v561
      %v563 = vrot.slane %v308, 2
      %v564 = vrot.slane %v309, 2
      %v565 = vsel %vm560, %v563, %v564
      %v566 = vsel %vm560, %v564, %v561
      %v567 = vrot.slane %v310, 2
      %v568 = vrot.slane %v311, 2
      %v569 = vsel %vm560, %v567, %v568
      %v570 = vsel %vm560, %v568, %v561
      %v571 = vrot.slane %v312, 2
      %v572 = vrot.slane %v313, 2
      %v573 = vsel %vm560, %v571, %v572
      %v574 = vsel %vm560, %v572, %v561
      %v575 = vrot.slane %v314, 2
      %v576 = vrot.slane %v315, 2
      %v577 = vsel %vm560, %v575, %v576
      %v578 = vsel %vm560, %v576, %v561
      %v579 = vrot.slane %v316, 2
      %v580 = vrot.slane %v317, 2
      %v581 = vsel %vm560, %v579, %v580
      %v582 = vsel %vm560, %v580, %v561
      %v583 = vrot.slane %v318, 2
      %v584 = vrot.slane %v319, 2
      %v585 = vsel %vm560, %v583, %v584
      %v586 = vsel %vm560, %v584, %v561
      %v587 = vrot.slane %v320, 2
      %v588 = vrot.slane %v321, 2
      %v589 = vsel %vm560, %v587, %v588
      %v590 = vsel %vm560, %v588, %v561
      %v591 = vrot.slane %v322, 2
      %v592 = vrot.slane %v323, 2
      %v593 = vsel %vm560, %v591, %v592
      %v594 = vsel %vm560, %v592, %v561
      %v595 = vrot.slane %v324, 2
      %v596 = vrot.slane %v325, 2
      %v597 = vsel %vm560, %v595, %v596
      %v598 = vsel %vm560, %v596, %v561
      %v599 = vrot.slane %v326, 2
      %v600 = vrot.slane %v327, 2
      %v601 = vsel %vm560, %v599, %v600
      %v602 = vsel %vm560, %v600, %v561
      %v603 = vrot.slane %v328, 2
      %v604 = vrot.slane %v329, 2
      %v605 = vsel %vm560, %v603, %v604
      %v606 = vsel %vm560, %v604, %v561
      %v607 = vrot.slane %v330, 2
      %v608 = vrot.slane %v331, 2
      %v609 = vsel %vm560, %v607, %v608
      %v610 = vsel %vm560, %v608, %v561
      %v611 = vrot.slane %v332, 2
      %v612 = vrot.slane %v333, 2
      %v613 = vsel %vm560, %v611, %v612
      %v614 = vsel %vm560, %v612, %v561
      %v615 = vrot.slane %v334, 2
      %v616 = vrot.slane %v335, 2
      %v617 = vsel %vm560, %v615, %v616
      %v618 = vsel %vm560, %v616, %v561
      %v619 = vrot.slane %v336, 2
      %v620 = vrot.slane %v337, 2
      %v621 = vsel %vm560, %v619, %v620
      %v622 = vsel %vm560, %v620, %v561
      %623 = vrot.lane.b32.xlu0 %v561, 64
      %v624 = vpop.permute.xlu0 %623
      %625 = vrot.lane.b32.xlu0 %v562, 64
      %v626 = vpop.permute.xlu0 %625
      %627 = vrot.lane.b32.xlu0 %v563, 64
      %v628 = vpop.permute.xlu0 %627
      %629 = vrot.lane.b32.xlu0 %v565, 64
      %v630 = vpop.permute.xlu0 %629
      %631 = vrot.lane.b32.xlu0 %v566, 64
      %v632 = vpop.permute.xlu0 %631
      %633 = vrot.lane.b32.xlu0 %v567, 64
      %v634 = vpop.permute.xlu0 %633
      %635 = vrot.lane.b32.xlu0 %v569, 64
      %v636 = vpop.permute.xlu0 %635
      %637 = vrot.lane.b32.xlu0 %v570, 64
      %v638 = vpop.permute.xlu0 %637
      %639 = vrot.lane.b32.xlu0 %v571, 64
      %v640 = vpop.permute.xlu0 %639
      %641 = vrot.lane.b32.xlu0 %v573, 64
      %v642 = vpop.permute.xlu0 %641
      %643 = vrot.lane.b32.xlu0 %v574, 64
      %v644 = vpop.permute.xlu0 %643
      %645 = vrot.lane.b32.xlu0 %v575, 64
      %v646 = vpop.permute.xlu0 %645
      %647 = vrot.lane.b32.xlu0 %v577, 64
      %v648 = vpop.permute.xlu0 %647
      %649 = vrot.lane.b32.xlu0 %v578, 64
      %v650 = vpop.permute.xlu0 %649
      %651 = vrot.lane.b32.xlu0 %v579, 64
      %v652 = vpop.permute.xlu0 %651
      %653 = vrot.lane.b32.xlu0 %v581, 64
      %v654 = vpop.permute.xlu0 %653
      %655 = vrot.lane.b32.xlu0 %v582, 64
      %v656 = vpop.permute.xlu0 %655
      %657 = vrot.lane.b32.xlu0 %v583, 64
      %v658 = vpop.permute.xlu0 %657
      %659 = vrot.lane.b32.xlu0 %v585, 64
      %v660 = vpop.permute.xlu0 %659
      %661 = vrot.lane.b32.xlu0 %v586, 64
      %v662 = vpop.permute.xlu0 %661
      %663 = vrot.lane.b32.xlu0 %v587, 64
      %v664 = vpop.permute.xlu0 %663
      %665 = vrot.lane.b32.xlu0 %v589, 64
      %v666 = vpop.permute.xlu0 %665
      %667 = vrot.lane.b32.xlu0 %v590, 64
      %v668 = vpop.permute.xlu0 %667
      %669 = vrot.lane.b32.xlu0 %v591, 64
      %v670 = vpop.permute.xlu0 %669
      %671 = vrot.lane.b32.xlu0 %v593, 64
      %v672 = vpop.permute.xlu0 %671
      %673 = vrot.lane.b32.xlu0 %v594, 64
      %v674 = vpop.permute.xlu0 %673
      %675 = vrot.lane.b32.xlu0 %v595, 64
      %v676 = vpop.permute.xlu0 %675
      %677 = vrot.lane.b32.xlu0 %v597, 64
      %v678 = vpop.permute.xlu0 %677
      %679 = vrot.lane.b32.xlu0 %v598, 64
      %v680 = vpop.permute.xlu0 %679
      %681 = vrot.lane.b32.xlu0 %v599, 64
      %v682 = vpop.permute.xlu0 %681
      %683 = vrot.lane.b32.xlu0 %v601, 64
      %v684 = vpop.permute.xlu0 %683
      %685 = vrot.lane.b32.xlu0 %v602, 64
      %v686 = vpop.permute.xlu0 %685
      %687 = vrot.lane.b32.xlu0 %v603, 64
      %v688 = vpop.permute.xlu0 %687
      %689 = vrot.lane.b32.xlu0 %v605, 64
      %v690 = vpop.permute.xlu0 %689
      %691 = vrot.lane.b32.xlu0 %v606, 64
      %v692 = vpop.permute.xlu0 %691
      %693 = vrot.lane.b32.xlu0 %v607, 64
      %v694 = vpop.permute.xlu0 %693
      %695 = vrot.lane.b32.xlu0 %v609, 64
      %v696 = vpop.permute.xlu0 %695
      %697 = vrot.lane.b32.xlu0 %v610, 64
      %v698 = vpop.permute.xlu0 %697
      %699 = vrot.lane.b32.xlu0 %v611, 64
      %v700 = vpop.permute.xlu0 %699
      %701 = vrot.lane.b32.xlu0 %v613, 64
      %v702 = vpop.permute.xlu0 %701
      %703 = vrot.lane.b32.xlu0 %v614, 64
      %v704 = vpop.permute.xlu0 %703
      %705 = vrot.lane.b32.xlu0 %v615, 64
      %v706 = vpop.permute.xlu0 %705
      %707 = vrot.lane.b32.xlu0 %v617, 64
      %v708 = vpop.permute.xlu0 %707
      %709 = vrot.lane.b32.xlu0 %v618, 64
      %v710 = vpop.permute.xlu0 %709
      %711 = vrot.lane.b32.xlu0 %v619, 64
      %v712 = vpop.permute.xlu0 %711
      %713 = vrot.lane.b32.xlu0 %v621, 64
      %v714 = vpop.permute.xlu0 %713
      %715 = vrot.lane.b32.xlu0 %v622, 64
      %v716 = vpop.permute.xlu0 %715
      %vm764 = vcmask 261120
      %v765 = vsel %vm764, 0.0, %v420
      %v766 = vsel %vm764, 0.0, %v422
      %v767 = vsel %vm764, 0.0, %v424
      %v768 = vsel %vm764, %v308, %v426
      %v769 = vsel %vm764, %v309, %v428
      %v770 = vsel %vm764, 0.0, %v430
      %v771 = vsel %vm764, %v310, %v432
      %v772 = vsel %vm764, %v311, %v434
      %v773 = vsel %vm764, 0.0, %v436
      %v774 = vsel %vm764, %v312, %v438
      %v775 = vsel %vm764, %v313, %v440
      %v776 = vsel %vm764, 0.0, %v442
      %v777 = vsel %vm764, %v314, %v444
      %v778 = vsel %vm764, %v315, %v446
      %v779 = vsel %vm764, 0.0, %v448
      %v780 = vsel %vm764, %v316, %v450
      %v781 = vsel %vm764, %v317, %v452
      %v782 = vsel %vm764, 0.0, %v454
      %v783 = vsel %vm764, %v318, %v456
      %v784 = vsel %vm764, %v319, %v458
      %v785 = vsel %vm764, 0.0, %v460
      %v786 = vsel %vm764, %v320, %v462
      %v787 = vsel %vm764, %v321, %v464
      %v788 = vsel %vm764, 0.0, %v466
      %v789 = vsel %vm764, %v322, %v468
      %v790 = vsel %vm764, %v323, %v470
      %v791 = vsel %vm764, 0.0, %v472
      %v792 = vsel %vm764, %v324, %v474
      %v793 = vsel %vm764, %v325, %v476
      %v794 = vsel %vm764, 0.0, %v478
      %v795 = vsel %vm764, %v326, %v480
      %v796 = vsel %vm764, %v327, %v482
      %v797 = vsel %vm764, 0.0, %v484
      %v798 = vsel %vm764, %v328, %v486
      %v799 = vsel %vm764, %v329, %v488
      %v800 = vsel %vm764, 0.0, %v490
      %v801 = vsel %vm764, %v330, %v492
      %v802 = vsel %vm764, %v331, %v494
      %v803 = vsel %vm764, 0.0, %v496
      %v804 = vsel %vm764, %v332, %v498
      %v805 = vsel %vm764, %v333, %v500
      %v806 = vsel %vm764, 0.0, %v502
      %v807 = vsel %vm764, %v334, %v504
      %v808 = vsel %vm764, %v335, %v506
      %v809 = vsel %vm764, 0.0, %v508
      %v810 = vsel %vm764, %v336, %v510
      %v811 = vsel %vm764, %v337, %v512
      %vm812 = vcmask 523264
      %v813 = vsel %vm812, %v765, %v624
      %v814 = vsel %vm812, %v766, %v626
      %v815 = vsel %vm812, %v765, %v626
      %v816 = vsel %vm812, %v767, %v628
      %v817 = vsel %vm812, %v768, %v630
      %v818 = vsel %vm812, %v769, %v632
      %v819 = vsel %vm812, %v770, %v634
      %v820 = vsel %vm812, %v771, %v636
      %v821 = vsel %vm812, %v772, %v638
      %v822 = vsel %vm812, %v773, %v640
      %v823 = vsel %vm812, %v774, %v642
      %v824 = vsel %vm812, %v775, %v644
      %v825 = vsel %vm812, %v776, %v646
      %v826 = vsel %vm812, %v777, %v648
      %v827 = vsel %vm812, %v778, %v650
      %v828 = vsel %vm812, %v779, %v652
      %v829 = vsel %vm812, %v780, %v654
      %v830 = vsel %vm812, %v781, %v656
      %v831 = vsel %vm812, %v782, %v658
      %v832 = vsel %vm812, %v783, %v660
      %v833 = vsel %vm812, %v784, %v662
      %v834 = vsel %vm812, %v785, %v664
      %v835 = vsel %vm812, %v786, %v666
      %v836 = vsel %vm812, %v787, %v668
      %v837 = vsel %vm812, %v788, %v670
      %v838 = vsel %vm812, %v789, %v672
      %v839 = vsel %vm812, %v790, %v674
      %v840 = vsel %vm812, %v791, %v676
      %v841 = vsel %vm812, %v792, %v678
      %v842 = vsel %vm812, %v793, %v680
      %v843 = vsel %vm812, %v794, %v682
      %v844 = vsel %vm812, %v795, %v684
      %v845 = vsel %vm812, %v796, %v686
      %v846 = vsel %vm812, %v797, %v688
      %v847 = vsel %vm812, %v798, %v690
      %v848 = vsel %vm812, %v799, %v692
      %v849 = vsel %vm812, %v800, %v694
      %v850 = vsel %vm812, %v801, %v696
      %v851 = vsel %vm812, %v802, %v698
      %v852 = vsel %vm812, %v803, %v700
      %v853 = vsel %vm812, %v804, %v702
      %v854 = vsel %vm812, %v805, %v704
      %v855 = vsel %vm812, %v806, %v706
      %v856 = vsel %vm812, %v807, %v708
      %v857 = vsel %vm812, %v808, %v710
      %v858 = vsel %vm812, %v809, %v712
      %v859 = vsel %vm812, %v810, %v714
      %v860 = vsel %vm812, %v811, %v716
      %vm909 = vcmask 1040384
      %v910 = vrot.slane %v813, 7
      %v911 = vrot.slane %v814, 7
      %v912 = vsel %vm909, %v910, %v911
      %v913 = vrot.slane %v815, 7
      %v914 = vsel %vm909, %v911, %v913
      %v915 = vrot.slane %v816, 7
      %v916 = vrot.slane %v817, 7
      %v917 = vsel %vm909, %v915, %v916
      %v918 = vrot.slane %v818, 7
      %v919 = vsel %vm909, %v916, %v918
      %v920 = vrot.slane %v819, 7
      %v921 = vrot.slane %v820, 7
      %v922 = vsel %vm909, %v920, %v921
      %v923 = vrot.slane %v821, 7
      %v924 = vsel %vm909, %v921, %v923
      %v925 = vrot.slane %v822, 7
      %v926 = vrot.slane %v823, 7
      %v927 = vsel %vm909, %v925, %v926
      %v928 = vrot.slane %v824, 7
      %v929 = vsel %vm909, %v926, %v928
      %v930 = vrot.slane %v825, 7
      %v931 = vrot.slane %v826, 7
      %v932 = vsel %vm909, %v930, %v931
      %v933 = vrot.slane %v827, 7
      %v934 = vsel %vm909, %v931, %v933
      %v935 = vrot.slane %v828, 7
      %v936 = vrot.slane %v829, 7
      %v937 = vsel %vm909, %v935, %v936
      %v938 = vrot.slane %v830, 7
      %v939 = vsel %vm909, %v936, %v938
      %v940 = vrot.slane %v831, 7
      %v941 = vrot.slane %v832, 7
      %v942 = vsel %vm909, %v940, %v941
      %v943 = vrot.slane %v833, 7
      %v944 = vsel %vm909, %v941, %v943
      %v945 = vrot.slane %v834, 7
      %v946 = vrot.slane %v835, 7
      %v947 = vsel %vm909, %v945, %v946
      %v948 = vrot.slane %v836, 7
      %v949 = vsel %vm909, %v946, %v948
      %v950 = vrot.slane %v837, 7
      %v951 = vrot.slane %v838, 7
      %v952 = vsel %vm909, %v950, %v951
      %v953 = vrot.slane %v839, 7
      %v954 = vsel %vm909, %v951, %v953
      %v955 = vrot.slane %v840, 7
      %v956 = vrot.slane %v841, 7
      %v957 = vsel %vm909, %v955, %v956
      %v958 = vrot.slane %v842, 7
      %v959 = vsel %vm909, %v956, %v958
      %v960 = vrot.slane %v843, 7
      %v961 = vrot.slane %v844, 7
      %v962 = vsel %vm909, %v960, %v961
      %v963 = vrot.slane %v845, 7
      %v964 = vsel %vm909, %v961, %v963
      %v965 = vrot.slane %v846, 7
      %v966 = vrot.slane %v847, 7
      %v967 = vsel %vm909, %v965, %v966
      %v968 = vrot.slane %v848, 7
      %v969 = vsel %vm909, %v966, %v968
      %v970 = vrot.slane %v849, 7
      %v971 = vrot.slane %v850, 7
      %v972 = vsel %vm909, %v970, %v971
      %v973 = vrot.slane %v851, 7
      %v974 = vsel %vm909, %v971, %v973
      %v975 = vrot.slane %v852, 7
      %v976 = vrot.slane %v853, 7
      %v977 = vsel %vm909, %v975, %v976
      %v978 = vrot.slane %v854, 7
      %v979 = vsel %vm909, %v976, %v978
      %v980 = vrot.slane %v855, 7
      %v981 = vrot.slane %v856, 7
      %v982 = vsel %vm909, %v980, %v981
      %v983 = vrot.slane %v857, 7
      %v984 = vsel %vm909, %v981, %v983
      %v985 = vrot.slane %v858, 7
      %v986 = vrot.slane %v859, 7
      %v987 = vsel %vm909, %v985, %v986
      %v988 = vrot.slane %v860, 7
      %v989 = vsel %vm909, %v986, %v988
      %v1022 = vpack.c.bf16 %v914, %v912
      %v1023 = vpack.c.bf16 %v919, %v917
      %v1024 = vpack.c.bf16 %v924, %v922
      %v1025 = vpack.c.bf16 %v929, %v927
      %v1026 = vpack.c.bf16 %v934, %v932
      %v1027 = vpack.c.bf16 %v939, %v937
      %v1028 = vpack.c.bf16 %v944, %v942
      %v1029 = vpack.c.bf16 %v949, %v947
      %v1030 = vpack.c.bf16 %v954, %v952
      %v1031 = vpack.c.bf16 %v959, %v957
      %v1032 = vpack.c.bf16 %v964, %v962
      %v1033 = vpack.c.bf16 %v969, %v967
      %v1034 = vpack.c.bf16 %v974, %v972
      %v1035 = vpack.c.bf16 %v979, %v977
      %v1036 = vpack.c.bf16 %v984, %v982
      %v1037 = vpack.c.bf16 %v989, %v987
      %v1038 = vld [vmem:[%s1] sm:$0xf]
      %v1039 = vld [vmem:[%s1 + $0x4] sm:$0xf]
      %v1040 = vld [vmem:[%s1 + $0x8] sm:$0xf]
      %v1041 = vld [vmem:[%s1 + $0xc] sm:$0xf]
      %v1042 = vld [vmem:[%s1 + $0x10] sm:$0xf]
      %v1043 = vld [vmem:[%s1 + $0x14] sm:$0xf]
      %v1044 = vld [vmem:[%s1 + $0x18] sm:$0xf]
      %v1045 = vld [vmem:[%s1 + $0x1c] sm:$0xf]
      %v1046 = vld [vmem:[%s1 + $0x20] sm:$0xf]
      %v1047 = vld [vmem:[%s1 + $0x24] sm:$0xf]
      %v1048 = vld [vmem:[%s1 + $0x28] sm:$0xf]
      %v1049 = vld [vmem:[%s1 + $0x2c] sm:$0xf]
      %v1052 = vrot.slane %v338, 1
      %v1053 = vrot.slane %v339, 1
      %v1054 = vsel %vm371, %v1052, %v1053
      %1055 = vrot.lane.b32.xlu0 %v1052, 32
      %v1056 = vpop.permute.xlu0 %1055
      %1057 = vrot.lane.b32.xlu0 %v1054, 32
      %v1058 = vpop.permute.xlu0 %1057
      %1059 = vrot.lane.b32.xlu0 %v1053, 32
      %v1060 = vpop.permute.xlu0 %1059
      %v1064 = vrot.slane %v338, 2
      %v1065 = vrot.slane %v339, 2
      %v1066 = vsel %vm560, %v1064, %v1065
      %v1067 = vsel %vm560, %v1065, %v561
      %1068 = vrot.lane.b32.xlu0 %v1064, 64
      %v1069 = vpop.permute.xlu0 %1068
      %1070 = vrot.lane.b32.xlu0 %v1066, 64
      %v1071 = vpop.permute.xlu0 %1070
      %1072 = vrot.lane.b32.xlu0 %v1067, 64
      %v1073 = vpop.permute.xlu0 %1072
      %v1077 = vsel %vm764, 0.0, %v1056
      %v1078 = vsel %vm764, %v338, %v1058
      %v1079 = vsel %vm764, %v339, %v1060
      %v1080 = vsel %vm812, %v1077, %v1069
      %v1081 = vsel %vm812, %v1078, %v1071
      %v1082 = vsel %vm812, %v1079, %v1073
      %v1086 = vrot.slane %v1080, 7
      %v1087 = vrot.slane %v1081, 7
      %v1088 = vsel %vm909, %v1086, %v1087
      %v1089 = vrot.slane %v1082, 7
      %v1090 = vsel %vm909, %v1087, %v1089
      %v1093 = vpack.c.bf16 %v1090, %v1088
      %s1094 = scalar_lea.vmem %s1, 48
      %v1095 = vld [vmem:[%s1094] sm:$0xf]
      %v1096 = vld [vmem:[%s1094 + $0x4] sm:$0xf]
      %v1097 = vld [vmem:[%s1094 + $0x8] sm:$0xf]
      %v1098 = vld [vmem:[%s1094 + $0xc] sm:$0xf]
      %v1099 = vld [vmem:[%s1094 + $0x10] sm:$0xf]
      %v1100 = vld [vmem:[%s1094 + $0x14] sm:$0xf]
      %v1101 = vld [vmem:[%s1094 + $0x18] sm:$0xf]
      %v1102 = vld [vmem:[%s1094 + $0x1c] sm:$0xf]
      %v1103 = vld [vmem:[%s1094 + $0x20] sm:$0xf]
      %v1104 = vld [vmem:[%s1094 + $0x24] sm:$0xf]
      %v1105 = vld [vmem:[%s1094 + $0x28] sm:$0xf]
      %v1106 = vld [vmem:[%s1094 + $0x2c] sm:$0xf]
      %v1119 = vunpack.c.l.b16 %v1095
      %v1120 = vunpack.c.l.b16 %v1096
      %v1121 = vunpack.c.l.b16 %v1097
      %v1122 = vunpack.c.l.b16 %v1098
      %v1123 = vunpack.c.l.b16 %v1099
      %v1124 = vunpack.c.l.b16 %v1100
      %v1125 = vunpack.c.l.b16 %v1101
      %v1126 = vunpack.c.l.b16 %v1102
      %v1127 = vunpack.c.l.b16 %v1103
      %v1128 = vunpack.c.l.b16 %v1104
      %v1129 = vunpack.c.l.b16 %v1105
      %v1130 = vunpack.c.l.b16 %v1106
      %v1131 = vpack.c.b16 %v1120, %v1119
      %v1132 = vpack.c.b16 %v1122, %v1121
      %v1133 = vpack.c.b16 %v1124, %v1123
      %v1134 = vpack.c.b16 %v1126, %v1125
      %v1135 = vpack.c.b16 %v1128, %v1127
      %v1136 = vpack.c.b16 %v1130, %v1129
      %vm1143 = vcmask 785408
      %v1145 = vsel %vm1143, %v1023, 0
      %v1148 = vsel %vm1143, %v1024, 0
      %v1151 = vsel %vm1143, %v1025, 0
      %v1154 = vsel %vm1143, %v1026, 0
      %v1157 = vsel %vm1143, %v1027, 0
      %v1160 = vsel %vm1143, %v1028, 0
      %v1163 = vsel %vm1143, %v1029, 0
      %v1166 = vsel %vm1143, %v1030, 0
      %v1169 = vsel %vm1143, %v1031, 0
      %v1172 = vsel %vm1143, %v1032, 0
      %v1175 = vsel %vm1143, %v1033, 0
      %v1178 = vsel %vm1143, %v1034, 0
      %v1181 = vsel %vm1143, %v1035, 0
      %v1184 = vsel %vm1143, %v1036, 0
      %v1187 = vsel %vm1143, %v1037, 0
      %v1190 = vsel %vm1143, %v1093, 0
      %1192 = vmatprep.subr.bf16.mxu0 0
      %1193 = vmatpush1.bf16.msra.mxu0 %v1131
      %1194 = vmatprep.subr.bf16.mxu0 0
      %1195 = vmatpush1.bf16.msra.mxu0 %v1132
      %1196 = vmatprep.subr.bf16.mxu0 0
      %1197 = vmatpush1.bf16.msra.mxu0 %v1133
      %1198 = vmatprep.subr.bf16.mxu0 0
      %1199 = vmatpush1.bf16.msra.mxu0 %v1134
      %1200 = vmatprep.subr.bf16.mxu0 0
      %1201 = vmatpush1.bf16.msra.mxu0 %v1135
      %1202 = vmatprep.subr.bf16.mxu0 0
      %1203 = vmatpush1.bf16.msra.mxu0 %v1136
      %1204 = vmatprep.subr.bf16.mxu0 0
      %1205 = vmatpush1.bf16.msra.mxu0 0
      %1206 = vmatprep.subr.bf16.mxu0 0
      %1207 = vmatpush1.bf16.msra.mxu0 0
      %1208 = vmatprep.subr.bf16.mxu0 0
      %1209 = vmatpush1.bf16.msra.mxu0 0
      %1210 = vmatprep.subr.bf16.mxu0 0
      %1211 = vmatpush1.bf16.msra.mxu0 0
      %1212 = vmatprep.subr.bf16.mxu0 0
      %1213 = vmatpush1.bf16.msra.mxu0 0
      %1214 = vmatprep.subr.bf16.mxu0 0
      %1215 = vmatpush1.bf16.msra.mxu0 0
      %1216 = vmatprep.subr.bf16.mxu0 0
      %1217 = vmatpush1.bf16.msra.mxu0 0
      %1218 = vmatprep.subr.bf16.mxu0 0
      %1219 = vmatpush1.bf16.msra.mxu0 0
      %1220 = vmatprep.subr.bf16.mxu0 0
      %1221 = vmatpush1.bf16.msra.mxu0 0
      %1222 = vmatprep.subr.bf16.mxu0 0
      %1223 = vmatpush1.bf16.msra.mxu0 0
      %1224 = vmatprep.mubr.bf16.mxu0 0
      %1225 = vmatmul.mubr.bf16.gmra.mrb[0].mxu0 %v1145
      %v1226 = vpop.f32.mrb[0].mxu0
      %v1227 = vadd.f32 0.0, %v1226
      %v1228 = vpop.f32.mrb[0].mxu0
      %v1229 = vpop.f32.mrb[0].mxu0
      %v1230 = vadd.f32 0.0, %v1229
      %v1231 = vpop.f32.mrb[0].mxu0
      %1232 = vmatprep.mubr.bf16.mxu0 0
      %1233 = vmatmul.mubr.bf16.gmra.mrb[0].mxu0 %v1148
      %v1234 = vpop.f32.mrb[0].mxu0
      %v1235 = vadd.f32 0.0, %v1234
      %v1236 = vpop.f32.mrb[0].mxu0
      %v1237 = vpop.f32.mrb[0].mxu0
      %v1238 = vadd.f32 0.0, %v1237
      %v1239 = vpop.f32.mrb[0].mxu0
      %1240 = vmatprep.mubr.bf16.mxu0 0
      %1241 = vmatmul.mubr.bf16.gmra.mrb[0].mxu0 %v1151
      %v1242 = vpop.f32.mrb[0].mxu0
      %v1243 = vadd.f32 0.0, %v1242
      %v1244 = vpop.f32.mrb[0].mxu0
      %v1245 = vpop.f32.mrb[0].mxu0
      %v1246 = vadd.f32 0.0, %v1245
      %v1247 = vpop.f32.mrb[0].mxu0
      %1248 = vmatprep.mubr.bf16.mxu0 0
      %1249 = vmatmul.mubr.bf16.gmra.mrb[0].mxu0 %v1154
      %v1250 = vpop.f32.mrb[0].mxu0
      %v1251 = vadd.f32 0.0, %v1250
      %v1252 = vpop.f32.mrb[0].mxu0
      %v1253 = vpop.f32.mrb[0].mxu0
      %v1254 = vadd.f32 0.0, %v1253
      %v1255 = vpop.f32.mrb[0].mxu0
      %1256 = vmatprep.mubr.bf16.mxu0 0
      %1257 = vmatmul.mubr.bf16.gmra.mrb[0].mxu0 %v1157
      %v1258 = vpop.f32.mrb[0].mxu0
      %v1259 = vadd.f32 0.0, %v1258
      %v1260 = vpop.f32.mrb[0].mxu0
      %v1261 = vpop.f32.mrb[0].mxu0
      %v1262 = vadd.f32 0.0, %v1261
      %v1263 = vpop.f32.mrb[0].mxu0
      %1264 = vmatprep.mubr.bf16.mxu0 0
      %1265 = vmatmul.mubr.bf16.gmra.mrb[0].mxu0 %v1160
      %v1266 = vpop.f32.mrb[0].mxu0
      %v1267 = vadd.f32 0.0, %v1266
      %v1268 = vpop.f32.mrb[0].mxu0
      %v1269 = vpop.f32.mrb[0].mxu0
      %v1270 = vadd.f32 0.0, %v1269
      %v1271 = vpop.f32.mrb[0].mxu0
      %1272 = vmatprep.mubr.bf16.mxu0 0
      %1273 = vmatmul.mubr.bf16.gmra.mrb[0].mxu0 %v1163
      %v1274 = vpop.f32.mrb[0].mxu0
      %v1275 = vadd.f32 0.0, %v1274
      %v1276 = vpop.f32.mrb[0].mxu0
      %v1277 = vpop.f32.mrb[0].mxu0
      %v1278 = vadd.f32 0.0, %v1277
      %v1279 = vpop.f32.mrb[0].mxu0
      %1280 = vmatprep.mubr.bf16.mxu0 0
      %1281 = vmatmul.mubr.bf16.gmra.mrb[0].mxu0 %v1166
      %v1282 = vpop.f32.mrb[0].mxu0
      %v1283 = vadd.f32 0.0, %v1282
      %v1284 = vpop.f32.mrb[0].mxu0
      %v1285 = vpop.f32.mrb[0].mxu0
      %v1286 = vadd.f32 0.0, %v1285
      %v1287 = vpop.f32.mrb[0].mxu0
      %1288 = vmatprep.mubr.bf16.mxu0 0
      %1289 = vmatmul.mubr.bf16.gmra.mrb[0].mxu0 %v1169
      %v1290 = vpop.f32.mrb[0].mxu0
      %v1291 = vadd.f32 0.0, %v1290
      %v1292 = vpop.f32.mrb[0].mxu0
      %v1293 = vpop.f32.mrb[0].mxu0
      %v1294 = vadd.f32 0.0, %v1293
      %v1295 = vpop.f32.mrb[0].mxu0
      %1296 = vmatprep.mubr.bf16.mxu0 0
      %1297 = vmatmul.mubr.bf16.gmra.mrb[0].mxu0 %v1172
      %v1298 = vpop.f32.mrb[0].mxu0
      %v1299 = vadd.f32 0.0, %v1298
      %v1300 = vpop.f32.mrb[0].mxu0
      %v1301 = vpop.f32.mrb[0].mxu0
      %v1302 = vadd.f32 0.0, %v1301
      %v1303 = vpop.f32.mrb[0].mxu0
      %1304 = vmatprep.mubr.bf16.mxu0 0
      %1305 = vmatmul.mubr.bf16.gmra.mrb[0].mxu0 %v1175
      %v1306 = vpop.f32.mrb[0].mxu0
      %v1307 = vadd.f32 0.0, %v1306
      %v1308 = vpop.f32.mrb[0].mxu0
      %v1309 = vpop.f32.mrb[0].mxu0
      %v1310 = vadd.f32 0.0, %v1309
      %v1311 = vpop.f32.mrb[0].mxu0
      %1312 = vmatprep.mubr.bf16.mxu0 0
      %1313 = vmatmul.mubr.bf16.gmra.mrb[0].mxu0 %v1178
      %v1314 = vpop.f32.mrb[0].mxu0
      %v1315 = vadd.f32 0.0, %v1314
      %v1316 = vpop.f32.mrb[0].mxu0
      %v1317 = vpop.f32.mrb[0].mxu0
      %v1318 = vadd.f32 0.0, %v1317
      %v1319 = vpop.f32.mrb[0].mxu0
      %1320 = vmatprep.mubr.bf16.mxu0 0
      %1321 = vmatmul.mubr.bf16.gmra.mrb[0].mxu0 %v1181
      %v1322 = vpop.f32.mrb[0].mxu0
      %v1323 = vadd.f32 0.0, %v1322
      %v1324 = vpop.f32.mrb[0].mxu0
      %v1325 = vpop.f32.mrb[0].mxu0
      %v1326 = vadd.f32 0.0, %v1325
      %v1327 = vpop.f32.mrb[0].mxu0
      %1328 = vmatprep.mubr.bf16.mxu0 0
      %1329 = vmatmul.mubr.bf16.gmra.mrb[0].mxu0 %v1184
      %v1330 = vpop.f32.mrb[0].mxu0
      %v1331 = vadd.f32 0.0, %v1330
      %v1332 = vpop.f32.mrb[0].mxu0
      %v1333 = vpop.f32.mrb[0].mxu0
      %v1334 = vadd.f32 0.0, %v1333
      %v1335 = vpop.f32.mrb[0].mxu0
      %1336 = vmatprep.mubr.bf16.mxu0 0
      %1337 = vmatmul.mubr.bf16.gmra.mrb[0].mxu0 %v1187
      %v1338 = vpop.f32.mrb[0].mxu0
      %v1339 = vadd.f32 0.0, %v1338
      %v1340 = vpop.f32.mrb[0].mxu0
      %v1341 = vpop.f32.mrb[0].mxu0
      %v1342 = vadd.f32 0.0, %v1341
      %v1343 = vpop.f32.mrb[0].mxu0
      %1344 = vmatprep.mubr.bf16.mxu0 0
      %1345 = vmatmul.mubr.bf16.gmra.mrb[0].mxu0 %v1190
      %v1346 = vpop.f32.mrb[0].mxu0
      %v1347 = vadd.f32 0.0, %v1346
      %v1348 = vpop.f32.mrb[0].mxu0
      %v1349 = vpop.f32.mrb[0].mxu0
      %v1350 = vadd.f32 0.0, %v1349
      %v1351 = vpop.f32.mrb[0].mxu0
      %1352 = vdwg.mxu0
      %v1365 = vunpack.c.l.b16 %v1038
      %v1366 = vunpack.c.l.b16 %v1039
      %v1367 = vunpack.c.l.b16 %v1040
      %v1368 = vunpack.c.l.b16 %v1041
      %v1369 = vunpack.c.l.b16 %v1042
      %v1370 = vunpack.c.l.b16 %v1043
      %v1371 = vunpack.c.l.b16 %v1044
      %v1372 = vunpack.c.l.b16 %v1045
      %v1373 = vunpack.c.l.b16 %v1046
      %v1374 = vunpack.c.l.b16 %v1047
      %v1375 = vunpack.c.l.b16 %v1048
      %v1376 = vunpack.c.l.b16 %v1049
      %v1377 = vpack.c.b16 %v1366, %v1365
      %v1378 = vpack.c.b16 %v1368, %v1367
      %v1379 = vpack.c.b16 %v1370, %v1369
      %v1380 = vpack.c.b16 %v1372, %v1371
      %v1381 = vpack.c.b16 %v1374, %v1373
      %v1382 = vpack.c.b16 %v1376, %v1375
      %v1390 = vsel %vm1143, %v1022, 0
      %1392 = vmatprep.subr.bf16.mxu0 0
      %1393 = vmatpush1.bf16.msra.mxu0 %v1377
      %1394 = vmatprep.subr.bf16.mxu0 0
      %1395 = vmatpush1.bf16.msra.mxu0 %v1378
      %1396 = vmatprep.subr.bf16.mxu0 0
      %1397 = vmatpush1.bf16.msra.mxu0 %v1379
      %1398 = vmatprep.subr.bf16.mxu0 0
      %1399 = vmatpush1.bf16.msra.mxu0 %v1380
      %1400 = vmatprep.subr.bf16.mxu0 0
      %1401 = vmatpush1.bf16.msra.mxu0 %v1381
      %1402 = vmatprep.subr.bf16.mxu0 0
      %1403 = vmatpush1.bf16.msra.mxu0 %v1382
      %1404 = vmatprep.subr.bf16.mxu0 0
      %1405 = vmatpush1.bf16.msra.mxu0 0
      %1406 = vmatprep.subr.bf16.mxu0 0
      %1407 = vmatpush1.bf16.msra.mxu0 0
      %1408 = vmatprep.subr.bf16.mxu0 0
      %1409 = vmatpush1.bf16.msra.mxu0 0
      %1410 = vmatprep.subr.bf16.mxu0 0
      %1411 = vmatpush1.bf16.msra.mxu0 0
      %1412 = vmatprep.subr.bf16.mxu0 0
      %1413 = vmatpush1.bf16.msra.mxu0 0
      %1414 = vmatprep.subr.bf16.mxu0 0
      %1415 = vmatpush1.bf16.msra.mxu0 0
      %1416 = vmatprep.subr.bf16.mxu0 0
      %1417 = vmatpush1.bf16.msra.mxu0 0
      %1418 = vmatprep.subr.bf16.mxu0 0
      %1419 = vmatpush1.bf16.msra.mxu0 0
      %1420 = vmatprep.subr.bf16.mxu0 0
      %1421 = vmatpush1.bf16.msra.mxu0 0
      %1422 = vmatprep.subr.bf16.mxu0 0
      %1423 = vmatpush1.bf16.msra.mxu0 0
      %1424 = vmatprep.mubr.bf16.mxu0 0
      %1425 = vmatmul.mubr.bf16.gmra.mrb[0].mxu0 %v1390
      %v1426 = vpop.f32.mrb[0].mxu0
      %v1427 = vadd.f32 %v1227, %v1426
      %v1428 = vpop.f32.mrb[0].mxu0
      %v1429 = vpop.f32.mrb[0].mxu0
      %v1430 = vadd.f32 %v1230, %v1429
      %v1431 = vpop.f32.mrb[0].mxu0
      %1432 = vmatprep.mubr.bf16.mxu0 0
      %1433 = vmatmul.mubr.bf16.gmra.mrb[0].mxu0 %v1145
      %v1434 = vpop.f32.mrb[0].mxu0
      %v1435 = vadd.f32 %v1235, %v1434
      %v1436 = vpop.f32.mrb[0].mxu0
      %v1437 = vpop.f32.mrb[0].mxu0
      %v1438 = vadd.f32 %v1238, %v1437
      %v1439 = vpop.f32.mrb[0].mxu0
      %1440 = vmatprep.mubr.bf16.mxu0 0
      %1441 = vmatmul.mubr.bf16.gmra.mrb[0].mxu0 %v1148
      %v1442 = vpop.f32.mrb[0].mxu0
      %v1443 = vadd.f32 %v1243, %v1442
      %v1444 = vpop.f32.mrb[0].mxu0
      %v1445 = vpop.f32.mrb[0].mxu0
      %v1446 = vadd.f32 %v1246, %v1445
      %v1447 = vpop.f32.mrb[0].mxu0
      %1448 = vmatprep.mubr.bf16.mxu0 0
      %1449 = vmatmul.mubr.bf16.gmra.mrb[0].mxu0 %v1151
      %v1450 = vpop.f32.mrb[0].mxu0
      %v1451 = vadd.f32 %v1251, %v1450
      %v1452 = vpop.f32.mrb[0].mxu0
      %v1453 = vpop.f32.mrb[0].mxu0
      %v1454 = vadd.f32 %v1254, %v1453
      %v1455 = vpop.f32.mrb[0].mxu0
      %1456 = vmatprep.mubr.bf16.mxu0 0
      %1457 = vmatmul.mubr.bf16.gmra.mrb[0].mxu0 %v1154
      %v1458 = vpop.f32.mrb[0].mxu0
      %v1459 = vadd.f32 %v1259, %v1458
      %v1460 = vpop.f32.mrb[0].mxu0
      %v1461 = vpop.f32.mrb[0].mxu0
      %v1462 = vadd.f32 %v1262, %v1461
      %v1463 = vpop.f32.mrb[0].mxu0
      %1464 = vmatprep.mubr.bf16.mxu0 0
      %1465 = vmatmul.mubr.bf16.gmra.mrb[0].mxu0 %v1157
      %v1466 = vpop.f32.mrb[0].mxu0
      %v1467 = vadd.f32 %v1267, %v1466
      %v1468 = vpop.f32.mrb[0].mxu0
      %v1469 = vpop.f32.mrb[0].mxu0
      %v1470 = vadd.f32 %v1270, %v1469
      %v1471 = vpop.f32.mrb[0].mxu0
      %1472 = vmatprep.mubr.bf16.mxu0 0
      %1473 = vmatmul.mubr.bf16.gmra.mrb[0].mxu0 %v1160
      %v1474 = vpop.f32.mrb[0].mxu0
      %v1475 = vadd.f32 %v1275, %v1474
      %v1476 = vpop.f32.mrb[0].mxu0
      %v1477 = vpop.f32.mrb[0].mxu0
      %v1478 = vadd.f32 %v1278, %v1477
      %v1479 = vpop.f32.mrb[0].mxu0
      %1480 = vmatprep.mubr.bf16.mxu0 0
      %1481 = vmatmul.mubr.bf16.gmra.mrb[0].mxu0 %v1163
      %v1482 = vpop.f32.mrb[0].mxu0
      %v1483 = vadd.f32 %v1283, %v1482
      %v1484 = vpop.f32.mrb[0].mxu0
      %v1485 = vpop.f32.mrb[0].mxu0
      %v1486 = vadd.f32 %v1286, %v1485
      %v1487 = vpop.f32.mrb[0].mxu0
      %1488 = vmatprep.mubr.bf16.mxu0 0
      %1489 = vmatmul.mubr.bf16.gmra.mrb[0].mxu0 %v1166
      %v1490 = vpop.f32.mrb[0].mxu0
      %v1491 = vadd.f32 %v1291, %v1490
      %v1492 = vpop.f32.mrb[0].mxu0
      %v1493 = vpop.f32.mrb[0].mxu0
      %v1494 = vadd.f32 %v1294, %v1493
      %v1495 = vpop.f32.mrb[0].mxu0
      %1496 = vmatprep.mubr.bf16.mxu0 0
      %1497 = vmatmul.mubr.bf16.gmra.mrb[0].mxu0 %v1169
      %v1498 = vpop.f32.mrb[0].mxu0
      %v1499 = vadd.f32 %v1299, %v1498
      %v1500 = vpop.f32.mrb[0].mxu0
      %v1501 = vpop.f32.mrb[0].mxu0
      %v1502 = vadd.f32 %v1302, %v1501
      %v1503 = vpop.f32.mrb[0].mxu0
      %1504 = vmatprep.mubr.bf16.mxu0 0
      %1505 = vmatmul.mubr.bf16.gmra.mrb[0].mxu0 %v1172
      %v1506 = vpop.f32.mrb[0].mxu0
      %v1507 = vadd.f32 %v1307, %v1506
      %v1508 = vpop.f32.mrb[0].mxu0
      %v1509 = vpop.f32.mrb[0].mxu0
      %v1510 = vadd.f32 %v1310, %v1509
      %v1511 = vpop.f32.mrb[0].mxu0
      %1512 = vmatprep.mubr.bf16.mxu0 0
      %1513 = vmatmul.mubr.bf16.gmra.mrb[0].mxu0 %v1175
      %v1514 = vpop.f32.mrb[0].mxu0
      %v1515 = vadd.f32 %v1315, %v1514
      %v1516 = vpop.f32.mrb[0].mxu0
      %v1517 = vpop.f32.mrb[0].mxu0
      %v1518 = vadd.f32 %v1318, %v1517
      %v1519 = vpop.f32.mrb[0].mxu0
      %1520 = vmatprep.mubr.bf16.mxu0 0
      %1521 = vmatmul.mubr.bf16.gmra.mrb[0].mxu0 %v1178
      %v1522 = vpop.f32.mrb[0].mxu0
      %v1523 = vadd.f32 %v1323, %v1522
      %v1524 = vpop.f32.mrb[0].mxu0
      %v1525 = vpop.f32.mrb[0].mxu0
      %v1526 = vadd.f32 %v1326, %v1525
      %v1527 = vpop.f32.mrb[0].mxu0
      %1528 = vmatprep.mubr.bf16.mxu0 0
      %1529 = vmatmul.mubr.bf16.gmra.mrb[0].mxu0 %v1181
      %v1530 = vpop.f32.mrb[0].mxu0
      %v1531 = vadd.f32 %v1331, %v1530
      %v1532 = vpop.f32.mrb[0].mxu0
      %v1533 = vpop.f32.mrb[0].mxu0
      %v1534 = vadd.f32 %v1334, %v1533
      %v1535 = vpop.f32.mrb[0].mxu0
      %1536 = vmatprep.mubr.bf16.mxu0 0
      %1537 = vmatmul.mubr.bf16.gmra.mrb[0].mxu0 %v1184
      %v1538 = vpop.f32.mrb[0].mxu0
      %v1539 = vadd.f32 %v1339, %v1538
      %v1540 = vpop.f32.mrb[0].mxu0
      %v1541 = vpop.f32.mrb[0].mxu0
      %v1542 = vadd.f32 %v1342, %v1541
      %v1543 = vpop.f32.mrb[0].mxu0
      %1544 = vmatprep.mubr.bf16.mxu0 0
      %1545 = vmatmul.mubr.bf16.gmra.mrb[0].mxu0 %v1187
      %v1546 = vpop.f32.mrb[0].mxu0
      %v1547 = vadd.f32 %v1347, %v1546
      %v1548 = vpop.f32.mrb[0].mxu0
      %v1549 = vpop.f32.mrb[0].mxu0
      %v1550 = vadd.f32 %v1350, %v1549
      %v1551 = vpop.f32.mrb[0].mxu0
      %1552 = vdwg.mxu0
      %s1553 = scalar_lea.vmem %s1, 96
      %v1554 = vld [vmem:[%s1553] sm:$0xf]
      %v1555 = vld [vmem:[%s1553 + $0x4] sm:$0xf]
      %v1556 = vld [vmem:[%s1553 + $0x8] sm:$0xf]
      %v1557 = vld [vmem:[%s1553 + $0xc] sm:$0xf]
      %v1558 = vld [vmem:[%s1553 + $0x10] sm:$0xf]
      %v1559 = vld [vmem:[%s1553 + $0x14] sm:$0xf]
      %v1560 = vld [vmem:[%s1553 + $0x18] sm:$0xf]
      %v1561 = vld [vmem:[%s1553 + $0x1c] sm:$0xf]
      %v1562 = vld [vmem:[%s1553 + $0x20] sm:$0xf]
      %v1563 = vld [vmem:[%s1553 + $0x24] sm:$0xf]
      %v1564 = vld [vmem:[%s1553 + $0x28] sm:$0xf]
      %v1565 = vld [vmem:[%s1553 + $0x2c] sm:$0xf]
      %v1578 = vunpack.c.l.b16 %v1554
      %v1579 = vunpack.c.l.b16 %v1555
      %v1580 = vunpack.c.l.b16 %v1556
      %v1581 = vunpack.c.l.b16 %v1557
      %v1582 = vunpack.c.l.b16 %v1558
      %v1583 = vunpack.c.l.b16 %v1559
      %v1584 = vunpack.c.l.b16 %v1560
      %v1585 = vunpack.c.l.b16 %v1561
      %v1586 = vunpack.c.l.b16 %v1562
      %v1587 = vunpack.c.l.b16 %v1563
      %v1588 = vunpack.c.l.b16 %v1564
      %v1589 = vunpack.c.l.b16 %v1565
      %v1590 = vpack.c.b16 %v1579, %v1578
      %v1591 = vpack.c.b16 %v1581, %v1580
      %v1592 = vpack.c.b16 %v1583, %v1582
      %v1593 = vpack.c.b16 %v1585, %v1584
      %v1594 = vpack.c.b16 %v1587, %v1586
      %v1595 = vpack.c.b16 %v1589, %v1588
      %1602 = vmatprep.subr.bf16.mxu0 0
      %1603 = vmatpush1.bf16.msra.mxu0 %v1590
      %1604 = vmatprep.subr.bf16.mxu0 0
      %1605 = vmatpush1.bf16.msra.mxu0 %v1591
      %1606 = vmatprep.subr.bf16.mxu0 0
      %1607 = vmatpush1.bf16.msra.mxu0 %v1592
      %1608 = vmatprep.subr.bf16.mxu0 0
      %1609 = vmatpush1.bf16.msra.mxu0 %v1593
      %1610 = vmatprep.subr.bf16.mxu0 0
      %1611 = vmatpush1.bf16.msra.mxu0 %v1594
      %1612 = vmatprep.subr.bf16.mxu0 0
      %1613 = vmatpush1.bf16.msra.mxu0 %v1595
      %1614 = vmatprep.subr.bf16.mxu0 0
      %1615 = vmatpush1.bf16.msra.mxu0 0
      %1616 = vmatprep.subr.bf16.mxu0 0
      %1617 = vmatpush1.bf16.msra.mxu0 0
      %1618 = vmatprep.subr.bf16.mxu0 0
      %1619 = vmatpush1.bf16.msra.mxu0 0
      %1620 = vmatprep.subr.bf16.mxu0 0
      %1621 = vmatpush1.bf16.msra.mxu0 0
      %1622 = vmatprep.subr.bf16.mxu0 0
      %1623 = vmatpush1.bf16.msra.mxu0 0
      %1624 = vmatprep.subr.bf16.mxu0 0
      %1625 = vmatpush1.bf16.msra.mxu0 0
      %1626 = vmatprep.subr.bf16.mxu0 0
      %1627 = vmatpush1.bf16.msra.mxu0 0
      %1628 = vmatprep.subr.bf16.mxu0 0
      %1629 = vmatpush1.bf16.msra.mxu0 0
      %1630 = vmatprep.subr.bf16.mxu0 0
      %1631 = vmatpush1.bf16.msra.mxu0 0
      %1632 = vmatprep.subr.bf16.mxu0 0
      %1633 = vmatpush1.bf16.msra.mxu0 0
      %1634 = vmatprep.mubr.bf16.mxu0 0
      %1635 = vmatmul.mubr.bf16.gmra.mrb[0].mxu0 %v1148
      %v1636 = vpop.f32.mrb[0].mxu0
      %v1637 = vadd.f32 0.0, %v1636
      %v1638 = vpop.f32.mrb[0].mxu0
      %v1639 = vpop.f32.mrb[0].mxu0
      %v1640 = vadd.f32 0.0, %v1639
      %v1641 = vpop.f32.mrb[0].mxu0
      %1642 = vmatprep.mubr.bf16.mxu0 0
      %1643 = vmatmul.mubr.bf16.gmra.mrb[0].mxu0 %v1151
      %v1644 = vpop.f32.mrb[0].mxu0
      %v1645 = vadd.f32 0.0, %v1644
      %v1646 = vpop.f32.mrb[0].mxu0
      %v1647 = vpop.f32.mrb[0].mxu0
      %v1648 = vadd.f32 0.0, %v1647
      %v1649 = vpop.f32.mrb[0].mxu0
      %1650 = vmatprep.mubr.bf16.mxu0 0
      %1651 = vmatmul.mubr.bf16.gmra.mrb[0].mxu0 %v1154
      %v1652 = vpop.f32.mrb[0].mxu0
      %v1653 = vadd.f32 0.0, %v1652
      %v1654 = vpop.f32.mrb[0].mxu0
      %v1655 = vpop.f32.mrb[0].mxu0
      %v1656 = vadd.f32 0.0, %v1655
      %v1657 = vpop.f32.mrb[0].mxu0
      %1658 = vmatprep.mubr.bf16.mxu0 0
      %1659 = vmatmul.mubr.bf16.gmra.mrb[0].mxu0 %v1157
      %v1660 = vpop.f32.mrb[0].mxu0
      %v1661 = vadd.f32 0.0, %v1660
      %v1662 = vpop.f32.mrb[0].mxu0
      %v1663 = vpop.f32.mrb[0].mxu0
      %v1664 = vadd.f32 0.0, %v1663
      %v1665 = vpop.f32.mrb[0].mxu0
      %1666 = vmatprep.mubr.bf16.mxu0 0
      %1667 = vmatmul.mubr.bf16.gmra.mrb[0].mxu0 %v1160
      %v1668 = vpop.f32.mrb[0].mxu0
      %v1669 = vadd.f32 0.0, %v1668
      %v1670 = vpop.f32.mrb[0].mxu0
      %v1671 = vpop.f32.mrb[0].mxu0
      %v1672 = vadd.f32 0.0, %v1671
      %v1673 = vpop.f32.mrb[0].mxu0
      %1674 = vmatprep.mubr.bf16.mxu0 0
      %1675 = vmatmul.mubr.bf16.gmra.mrb[0].mxu0 %v1163
      %v1676 = vpop.f32.mrb[0].mxu0
      %v1677 = vadd.f32 0.0, %v1676
      %v1678 = vpop.f32.mrb[0].mxu0
      %v1679 = vpop.f32.mrb[0].mxu0
      %v1680 = vadd.f32 0.0, %v1679
      %v1681 = vpop.f32.mrb[0].mxu0
      %1682 = vmatprep.mubr.bf16.mxu0 0
      %1683 = vmatmul.mubr.bf16.gmra.mrb[0].mxu0 %v1166
      %v1684 = vpop.f32.mrb[0].mxu0
      %v1685 = vadd.f32 0.0, %v1684
      %v1686 = vpop.f32.mrb[0].mxu0
      %v1687 = vpop.f32.mrb[0].mxu0
      %v1688 = vadd.f32 0.0, %v1687
      %v1689 = vpop.f32.mrb[0].mxu0
      %1690 = vmatprep.mubr.bf16.mxu0 0
      %1691 = vmatmul.mubr.bf16.gmra.mrb[0].mxu0 %v1169
      %v1692 = vpop.f32.mrb[0].mxu0
      %v1693 = vadd.f32 0.0, %v1692
      %v1694 = vpop.f32.mrb[0].mxu0
      %v1695 = vpop.f32.mrb[0].mxu0
      %v1696 = vadd.f32 0.0, %v1695
      %v1697 = vpop.f32.mrb[0].mxu0
      %1698 = vmatprep.mubr.bf16.mxu0 0
      %1699 = vmatmul.mubr.bf16.gmra.mrb[0].mxu0 %v1172
      %v1700 = vpop.f32.mrb[0].mxu0
      %v1701 = vadd.f32 0.0, %v1700
      %v1702 = vpop.f32.mrb[0].mxu0
      %v1703 = vpop.f32.mrb[0].mxu0
      %v1704 = vadd.f32 0.0, %v1703
      %v1705 = vpop.f32.mrb[0].mxu0
      %1706 = vmatprep.mubr.bf16.mxu0 0
      %1707 = vmatmul.mubr.bf16.gmra.mrb[0].mxu0 %v1175
      %v1708 = vpop.f32.mrb[0].mxu0
      %v1709 = vadd.f32 0.0, %v1708
      %v1710 = vpop.f32.mrb[0].mxu0
      %v1711 = vpop.f32.mrb[0].mxu0
      %v1712 = vadd.f32 0.0, %v1711
      %v1713 = vpop.f32.mrb[0].mxu0
      %1714 = vmatprep.mubr.bf16.mxu0 0
      %1715 = vmatmul.mubr.bf16.gmra.mrb[0].mxu0 %v1178
      %v1716 = vpop.f32.mrb[0].mxu0
      %v1717 = vadd.f32 0.0, %v1716
      %v1718 = vpop.f32.mrb[0].mxu0
      %v1719 = vpop.f32.mrb[0].mxu0
      %v1720 = vadd.f32 0.0, %v1719
      %v1721 = vpop.f32.mrb[0].mxu0
      %1722 = vmatprep.mubr.bf16.mxu0 0
      %1723 = vmatmul.mubr.bf16.gmra.mrb[0].mxu0 %v1181
      %v1724 = vpop.f32.mrb[0].mxu0
      %v1725 = vadd.f32 0.0, %v1724
      %v1726 = vpop.f32.mrb[0].mxu0
      %v1727 = vpop.f32.mrb[0].mxu0
      %v1728 = vadd.f32 0.0, %v1727
      %v1729 = vpop.f32.mrb[0].mxu0
      %1730 = vmatprep.mubr.bf16.mxu0 0
      %1731 = vmatmul.mubr.bf16.gmra.mrb[0].mxu0 %v1184
      %v1732 = vpop.f32.mrb[0].mxu0
      %v1733 = vadd.f32 0.0, %v1732
      %v1734 = vpop.f32.mrb[0].mxu0
      %v1735 = vpop.f32.mrb[0].mxu0
      %v1736 = vadd.f32 0.0, %v1735
      %v1737 = vpop.f32.mrb[0].mxu0
      %1738 = vmatprep.mubr.bf16.mxu0 0
      %1739 = vmatmul.mubr.bf16.gmra.mrb[0].mxu0 %v1187
      %v1740 = vpop.f32.mrb[0].mxu0
      %v1741 = vadd.f32 0.0, %v1740
      %v1742 = vpop.f32.mrb[0].mxu0
      %v1743 = vpop.f32.mrb[0].mxu0
      %v1744 = vadd.f32 0.0, %v1743
      %v1745 = vpop.f32.mrb[0].mxu0
      %1746 = vmatprep.mubr.bf16.mxu0 0
      %1747 = vmatmul.mubr.bf16.gmra.mrb[0].mxu0 %v1190
      %v1748 = vpop.f32.mrb[0].mxu0
      %v1749 = vadd.f32 0.0, %v1748
      %v1750 = vpop.f32.mrb[0].mxu0
      %v1751 = vpop.f32.mrb[0].mxu0
      %v1752 = vadd.f32 0.0, %v1751
      %v1753 = vpop.f32.mrb[0].mxu0
      %1754 = vmatprep.mubr.bf16.mxu0 0
      %1755 = vmatmul.mubr.bf16.gmra.mrb[0].mxu0 %v1390
      %v1756 = vpop.f32.mrb[0].mxu0
      %v1757 = vadd.f32 0.0, %v1756
      %v1758 = vpop.f32.mrb[0].mxu0
      %v1759 = vpop.f32.mrb[0].mxu0
      %v1760 = vadd.f32 0.0, %v1759
      %v1761 = vpop.f32.mrb[0].mxu0
      %1762 = vdwg.mxu0
      %v1763 = vadd.f32 %v1427, %v1637
      %v1764 = vadd.f32 %v1430, %v1640
      %v1765 = vadd.f32 %v1435, %v1645
      %v1766 = vadd.f32 %v1438, %v1648
      %v1767 = vadd.f32 %v1443, %v1653
      %v1768 = vadd.f32 %v1446, %v1656
      %v1769 = vadd.f32 %v1451, %v1661
      %v1770 = vadd.f32 %v1454, %v1664
      %v1771 = vadd.f32 %v1459, %v1669
      %v1772 = vadd.f32 %v1462, %v1672
      %v1773 = vadd.f32 %v1467, %v1677
      %v1774 = vadd.f32 %v1470, %v1680
      %v1775 = vadd.f32 %v1475, %v1685
      %v1776 = vadd.f32 %v1478, %v1688
      %v1777 = vadd.f32 %v1483, %v1693
      %v1778 = vadd.f32 %v1486, %v1696
      %v1779 = vadd.f32 %v1491, %v1701
      %v1780 = vadd.f32 %v1494, %v1704
      %v1781 = vadd.f32 %v1499, %v1709
      %v1782 = vadd.f32 %v1502, %v1712
      %v1783 = vadd.f32 %v1507, %v1717
      %v1784 = vadd.f32 %v1510, %v1720
      %v1785 = vadd.f32 %v1515, %v1725
      %v1786 = vadd.f32 %v1518, %v1728
      %v1787 = vadd.f32 %v1523, %v1733
      %v1788 = vadd.f32 %v1526, %v1736
      %v1789 = vadd.f32 %v1531, %v1741
      %v1790 = vadd.f32 %v1534, %v1744
      %v1791 = vadd.f32 %v1539, %v1749
      %v1792 = vadd.f32 %v1542, %v1752
      %v1793 = vadd.f32 %v1547, %v1757
      %v1794 = vadd.f32 %v1550, %v1760
      %v1795 = vld [vmem:[%s2] sm:$0x1]
      %v1797 = vlaneseq
      %v1798 = vshrl.u32 %v1797, 7
      %v1799 = vsub.s32 0, %v1798
      %v1800 = vrot.slane %v1795, %v1799
      %v1802 = vadd.f32 %v1763, %v1800
      %v1803 = vadd.f32 %v1764, %v1800
      %v1804 = vadd.f32 %v1765, %v1800
      %v1805 = vadd.f32 %v1766, %v1800
      %v1806 = vadd.f32 %v1767, %v1800
      %v1807 = vadd.f32 %v1768, %v1800
      %v1808 = vadd.f32 %v1769, %v1800
      %v1809 = vadd.f32 %v1770, %v1800
      %v1810 = vadd.f32 %v1771, %v1800
      %v1811 = vadd.f32 %v1772, %v1800
      %v1812 = vadd.f32 %v1773, %v1800
      %v1813 = vadd.f32 %v1774, %v1800
      %v1814 = vadd.f32 %v1775, %v1800
      %v1815 = vadd.f32 %v1776, %v1800
      %v1816 = vadd.f32 %v1777, %v1800
      %v1817 = vadd.f32 %v1778, %v1800
      %v1818 = vadd.f32 %v1779, %v1800
      %v1819 = vadd.f32 %v1780, %v1800
      %v1820 = vadd.f32 %v1781, %v1800
      %v1821 = vadd.f32 %v1782, %v1800
      %v1822 = vadd.f32 %v1783, %v1800
      %v1823 = vadd.f32 %v1784, %v1800
      %v1824 = vadd.f32 %v1785, %v1800
      %v1825 = vadd.f32 %v1786, %v1800
      %v1826 = vadd.f32 %v1787, %v1800
      %v1827 = vadd.f32 %v1788, %v1800
      %v1828 = vadd.f32 %v1789, %v1800
      %v1829 = vadd.f32 %v1790, %v1800
      %v1830 = vadd.f32 %v1791, %v1800
      %v1831 = vadd.f32 %v1792, %v1800
      %v1832 = vadd.f32 %v1793, %v1800
      %v1833 = vadd.f32 %v1794, %v1800
      %v1834 = vld [vmem:[%s3] sm:$0x1]
      %v1835 = vld [vmem:[%s4] sm:$0x1]
      %v1836 = vsel %vm812, %v1802, 0.0
      %v1837 = vsel %vm812, %v1803, 0.0
      %v1838 = vadd.f32 %v1836, %v1837
      %v1839 = vsel %vm812, %v1804, 0.0
      %v1840 = vadd.f32 %v1838, %v1839
      %v1841 = vsel %vm812, %v1805, 0.0
      %v1842 = vadd.f32 %v1840, %v1841
      %v1843 = vsel %vm812, %v1806, 0.0
      %v1844 = vadd.f32 %v1842, %v1843
      %v1845 = vsel %vm812, %v1807, 0.0
      %v1846 = vadd.f32 %v1844, %v1845
      %v1847 = vsel %vm812, %v1808, 0.0
      %v1848 = vadd.f32 %v1846, %v1847
      %v1849 = vsel %vm812, %v1809, 0.0
      %v1850 = vadd.f32 %v1848, %v1849
      %v1851 = vsel %vm812, %v1810, 0.0
      %v1852 = vadd.f32 %v1850, %v1851
      %v1853 = vsel %vm812, %v1811, 0.0
      %v1854 = vadd.f32 %v1852, %v1853
      %v1855 = vsel %vm812, %v1812, 0.0
      %v1856 = vadd.f32 %v1854, %v1855
      %v1857 = vsel %vm812, %v1813, 0.0
      %v1858 = vadd.f32 %v1856, %v1857
      %v1859 = vsel %vm812, %v1814, 0.0
      %v1860 = vadd.f32 %v1858, %v1859
      %v1861 = vsel %vm812, %v1815, 0.0
      %v1862 = vadd.f32 %v1860, %v1861
      %v1863 = vsel %vm812, %v1816, 0.0
      %v1864 = vadd.f32 %v1862, %v1863
      %v1865 = vsel %vm812, %v1817, 0.0
      %v1866 = vadd.f32 %v1864, %v1865
      %v1867 = vsel %vm812, %v1818, 0.0
      %v1868 = vadd.f32 %v1866, %v1867
      %v1869 = vsel %vm812, %v1819, 0.0
      %v1870 = vadd.f32 %v1868, %v1869
      %v1871 = vsel %vm812, %v1820, 0.0
      %v1872 = vadd.f32 %v1870, %v1871
      %v1873 = vsel %vm812, %v1821, 0.0
      %v1874 = vadd.f32 %v1872, %v1873
      %v1875 = vsel %vm812, %v1822, 0.0
      %v1876 = vadd.f32 %v1874, %v1875
      %v1877 = vsel %vm812, %v1823, 0.0
      %v1878 = vadd.f32 %v1876, %v1877
      %v1879 = vsel %vm812, %v1824, 0.0
      %v1880 = vadd.f32 %v1878, %v1879
      %v1881 = vsel %vm812, %v1825, 0.0
      %v1882 = vadd.f32 %v1880, %v1881
      %v1883 = vsel %vm812, %v1826, 0.0
      %v1884 = vadd.f32 %v1882, %v1883
      %v1885 = vsel %vm812, %v1827, 0.0
      %v1886 = vadd.f32 %v1884, %v1885
      %v1887 = vsel %vm812, %v1828, 0.0
      %v1888 = vadd.f32 %v1886, %v1887
      %v1889 = vsel %vm812, %v1829, 0.0
      %v1890 = vadd.f32 %v1888, %v1889
      %v1891 = vsel %vm812, %v1830, 0.0
      %v1892 = vadd.f32 %v1890, %v1891
      %v1893 = vsel %vm812, %v1831, 0.0
      %v1894 = vadd.f32 %v1892, %v1893
      %v1895 = vsel %vm812, %v1832, 0.0
      %v1896 = vadd.f32 %v1894, %v1895
      %v1897 = vsel %vm812, %v1833, 0.0
      %v1898 = vadd.f32 %v1896, %v1897
      %v1899 = vrot.slane %v1898, 4
      %v1900 = vadd.f32 %v1898, %v1899
      %v1901 = vrot.slane %v1900, 2
      %v1902 = vadd.f32 %v1900, %v1901
      %v1903 = vrot.slane %v1902, 1
      %v1904 = vadd.f32 %v1902, %v1903
      %v1905 = vmul.f32 %v1802, %v1802
      %v1906 = vmul.f32 %v1803, %v1803
      %v1907 = vmul.f32 %v1804, %v1804
      %v1908 = vmul.f32 %v1805, %v1805
      %v1909 = vmul.f32 %v1806, %v1806
      %v1910 = vmul.f32 %v1807, %v1807
      %v1911 = vmul.f32 %v1808, %v1808
      %v1912 = vmul.f32 %v1809, %v1809
      %v1913 = vmul.f32 %v1810, %v1810
      %v1914 = vmul.f32 %v1811, %v1811
      %v1915 = vmul.f32 %v1812, %v1812
      %v1916 = vmul.f32 %v1813, %v1813
      %v1917 = vmul.f32 %v1814, %v1814
      %v1918 = vmul.f32 %v1815, %v1815
      %v1919 = vmul.f32 %v1816, %v1816
      %v1920 = vmul.f32 %v1817, %v1817
      %v1921 = vmul.f32 %v1818, %v1818
      %v1922 = vmul.f32 %v1819, %v1819
      %v1923 = vmul.f32 %v1820, %v1820
      %v1924 = vmul.f32 %v1821, %v1821
      %v1925 = vmul.f32 %v1822, %v1822
      %v1926 = vmul.f32 %v1823, %v1823
      %v1927 = vmul.f32 %v1824, %v1824
      %v1928 = vmul.f32 %v1825, %v1825
      %v1929 = vmul.f32 %v1826, %v1826
      %v1930 = vmul.f32 %v1827, %v1827
      %v1931 = vmul.f32 %v1828, %v1828
      %v1932 = vmul.f32 %v1829, %v1829
      %v1933 = vmul.f32 %v1830, %v1830
      %v1934 = vmul.f32 %v1831, %v1831
      %v1935 = vmul.f32 %v1832, %v1832
      %v1936 = vmul.f32 %v1833, %v1833
      %v1937 = vsel %vm812, %v1905, 0.0
      %v1938 = vsel %vm812, %v1906, 0.0
      %v1939 = vadd.f32 %v1937, %v1938
      %v1940 = vsel %vm812, %v1907, 0.0
      %v1941 = vadd.f32 %v1939, %v1940
      %v1942 = vsel %vm812, %v1908, 0.0
      %v1943 = vadd.f32 %v1941, %v1942
      %v1944 = vsel %vm812, %v1909, 0.0
      %v1945 = vadd.f32 %v1943, %v1944
      %v1946 = vsel %vm812, %v1910, 0.0
      %v1947 = vadd.f32 %v1945, %v1946
      %v1948 = vsel %vm812, %v1911, 0.0
      %v1949 = vadd.f32 %v1947, %v1948
      %v1950 = vsel %vm812, %v1912, 0.0
      %v1951 = vadd.f32 %v1949, %v1950
      %v1952 = vsel %vm812, %v1913, 0.0
      %v1953 = vadd.f32 %v1951, %v1952
      %v1954 = vsel %vm812, %v1914, 0.0
      %v1955 = vadd.f32 %v1953, %v1954
      %v1956 = vsel %vm812, %v1915, 0.0
      %v1957 = vadd.f32 %v1955, %v1956
      %v1958 = vsel %vm812, %v1916, 0.0
      %v1959 = vadd.f32 %v1957, %v1958
      %v1960 = vsel %vm812, %v1917, 0.0
      %v1961 = vadd.f32 %v1959, %v1960
      %v1962 = vsel %vm812, %v1918, 0.0
      %v1963 = vadd.f32 %v1961, %v1962
      %v1964 = vsel %vm812, %v1919, 0.0
      %v1965 = vadd.f32 %v1963, %v1964
      %v1966 = vsel %vm812, %v1920, 0.0
      %v1967 = vadd.f32 %v1965, %v1966
      %v1968 = vsel %vm812, %v1921, 0.0
      %v1969 = vadd.f32 %v1967, %v1968
      %v1970 = vsel %vm812, %v1922, 0.0
      %v1971 = vadd.f32 %v1969, %v1970
      %v1972 = vsel %vm812, %v1923, 0.0
      %v1973 = vadd.f32 %v1971, %v1972
      %v1974 = vsel %vm812, %v1924, 0.0
      %v1975 = vadd.f32 %v1973, %v1974
      %v1976 = vsel %vm812, %v1925, 0.0
      %v1977 = vadd.f32 %v1975, %v1976
      %v1978 = vsel %vm812, %v1926, 0.0
      %v1979 = vadd.f32 %v1977, %v1978
      %v1980 = vsel %vm812, %v1927, 0.0
      %v1981 = vadd.f32 %v1979, %v1980
      %v1982 = vsel %vm812, %v1928, 0.0
      %v1983 = vadd.f32 %v1981, %v1982
      %v1984 = vsel %vm812, %v1929, 0.0
      %v1985 = vadd.f32 %v1983, %v1984
      %v1986 = vsel %vm812, %v1930, 0.0
      %v1987 = vadd.f32 %v1985, %v1986
      %v1988 = vsel %vm812, %v1931, 0.0
      %v1989 = vadd.f32 %v1987, %v1988
      %v1990 = vsel %vm812, %v1932, 0.0
      %v1991 = vadd.f32 %v1989, %v1990
      %v1992 = vsel %vm812, %v1933, 0.0
      %v1993 = vadd.f32 %v1991, %v1992
      %v1994 = vsel %vm812, %v1934, 0.0
      %v1995 = vadd.f32 %v1993, %v1994
      %v1996 = vsel %vm812, %v1935, 0.0
      %v1997 = vadd.f32 %v1995, %v1996
      %v1998 = vsel %vm812, %v1936, 0.0
      %v1999 = vadd.f32 %v1997, %v1998
      %v2000 = vrot.slane %v1999, 4
      %v2001 = vadd.f32 %v1999, %v2000
      %v2002 = vrot.slane %v2001, 2
      %v2003 = vadd.f32 %v2001, %v2002
      %v2004 = vrot.slane %v2003, 1
      %v2005 = vadd.f32 %v2003, %v2004
      %v2006 = vrcp.pop 256.0
      %v2007 = vmul.f32 %v1904, %v2006
      %v2008 = vmul.f32 %v2005, %v2006
      %v2009 = vmul.f32 %v2007, %v2007
      %v2010 = vsub.f32 %v2008, %v2009
      %v2011 = vadd.f32 %v2010, 1e-05
      %v2012 = vrsqrt.pop %v2011
      %v2013 = vsub.f32 %v1802, %v2007
      %v2014 = vsub.f32 %v1803, %v2007
      %v2015 = vsub.f32 %v1804, %v2007
      %v2016 = vsub.f32 %v1805, %v2007
      %v2017 = vsub.f32 %v1806, %v2007
      %v2018 = vsub.f32 %v1807, %v2007
      %v2019 = vsub.f32 %v1808, %v2007
      %v2020 = vsub.f32 %v1809, %v2007
      %v2021 = vsub.f32 %v1810, %v2007
      %v2022 = vsub.f32 %v1811, %v2007
      %v2023 = vsub.f32 %v1812, %v2007
      %v2024 = vsub.f32 %v1813, %v2007
      %v2025 = vsub.f32 %v1814, %v2007
      %v2026 = vsub.f32 %v1815, %v2007
      %v2027 = vsub.f32 %v1816, %v2007
      %v2028 = vsub.f32 %v1817, %v2007
      %v2029 = vsub.f32 %v1818, %v2007
      %v2030 = vsub.f32 %v1819, %v2007
      %v2031 = vsub.f32 %v1820, %v2007
      %v2032 = vsub.f32 %v1821, %v2007
      %v2033 = vsub.f32 %v1822, %v2007
      %v2034 = vsub.f32 %v1823, %v2007
      %v2035 = vsub.f32 %v1824, %v2007
      %v2036 = vsub.f32 %v1825, %v2007
      %v2037 = vsub.f32 %v1826, %v2007
      %v2038 = vsub.f32 %v1827, %v2007
      %v2039 = vsub.f32 %v1828, %v2007
      %v2040 = vsub.f32 %v1829, %v2007
      %v2041 = vsub.f32 %v1830, %v2007
      %v2042 = vsub.f32 %v1831, %v2007
      %v2043 = vsub.f32 %v1832, %v2007
      %v2044 = vsub.f32 %v1833, %v2007
      %v2045 = vmul.f32 %v2012, %v1834
      %v2046 = vlaneseq
      %v2047 = vshrl.u32 %v2046, 7
      %v2048 = vsub.s32 0, %v2047
      %v2049 = vrot.slane %v2045, %v2048
      %v2050 = vmul.f32 %v2013, %v2049
      %v2051 = vmul.f32 %v2014, %v2049
      %v2052 = vmul.f32 %v2015, %v2049
      %v2053 = vmul.f32 %v2016, %v2049
      %v2054 = vmul.f32 %v2017, %v2049
      %v2055 = vmul.f32 %v2018, %v2049
      %v2056 = vmul.f32 %v2019, %v2049
      %v2057 = vmul.f32 %v2020, %v2049
      %v2058 = vmul.f32 %v2021, %v2049
      %v2059 = vmul.f32 %v2022, %v2049
      %v2060 = vmul.f32 %v2023, %v2049
      %v2061 = vmul.f32 %v2024, %v2049
      %v2062 = vmul.f32 %v2025, %v2049
      %v2063 = vmul.f32 %v2026, %v2049
      %v2064 = vmul.f32 %v2027, %v2049
      %v2065 = vmul.f32 %v2028, %v2049
      %v2066 = vmul.f32 %v2029, %v2049
      %v2067 = vmul.f32 %v2030, %v2049
      %v2068 = vmul.f32 %v2031, %v2049
      %v2069 = vmul.f32 %v2032, %v2049
      %v2070 = vmul.f32 %v2033, %v2049
      %v2071 = vmul.f32 %v2034, %v2049
      %v2072 = vmul.f32 %v2035, %v2049
      %v2073 = vmul.f32 %v2036, %v2049
      %v2074 = vmul.f32 %v2037, %v2049
      %v2075 = vmul.f32 %v2038, %v2049
      %v2076 = vmul.f32 %v2039, %v2049
      %v2077 = vmul.f32 %v2040, %v2049
      %v2078 = vmul.f32 %v2041, %v2049
      %v2079 = vmul.f32 %v2042, %v2049
      %v2080 = vmul.f32 %v2043, %v2049
      %v2081 = vmul.f32 %v2044, %v2049
      %v2083 = vlaneseq
      %v2084 = vshrl.u32 %v2083, 7
      %v2085 = vsub.s32 0, %v2084
      %v2086 = vrot.slane %v1835, %v2085
      %v2088 = vadd.f32 %v2050, %v2086
      %v2089 = vadd.f32 %v2051, %v2086
      %v2090 = vadd.f32 %v2052, %v2086
      %v2091 = vadd.f32 %v2053, %v2086
      %v2092 = vadd.f32 %v2054, %v2086
      %v2093 = vadd.f32 %v2055, %v2086
      %v2094 = vadd.f32 %v2056, %v2086
      %v2095 = vadd.f32 %v2057, %v2086
      %v2096 = vadd.f32 %v2058, %v2086
      %v2097 = vadd.f32 %v2059, %v2086
      %v2098 = vadd.f32 %v2060, %v2086
      %v2099 = vadd.f32 %v2061, %v2086
      %v2100 = vadd.f32 %v2062, %v2086
      %v2101 = vadd.f32 %v2063, %v2086
      %v2102 = vadd.f32 %v2064, %v2086
      %v2103 = vadd.f32 %v2065, %v2086
      %v2104 = vadd.f32 %v2066, %v2086
      %v2105 = vadd.f32 %v2067, %v2086
      %v2106 = vadd.f32 %v2068, %v2086
      %v2107 = vadd.f32 %v2069, %v2086
      %v2108 = vadd.f32 %v2070, %v2086
      %v2109 = vadd.f32 %v2071, %v2086
      %v2110 = vadd.f32 %v2072, %v2086
      %v2111 = vadd.f32 %v2073, %v2086
      %v2112 = vadd.f32 %v2074, %v2086
      %v2113 = vadd.f32 %v2075, %v2086
      %v2114 = vadd.f32 %v2076, %v2086
      %v2115 = vadd.f32 %v2077, %v2086
      %v2116 = vadd.f32 %v2078, %v2086
      %v2117 = vadd.f32 %v2079, %v2086
      %v2118 = vadd.f32 %v2080, %v2086
      %v2119 = vadd.f32 %v2081, %v2086
      %v2120 = vmax.f32 %v2088, 0.0
      %v2121 = vmax.f32 %v2089, 0.0
      %v2122 = vmax.f32 %v2090, 0.0
      %v2123 = vmax.f32 %v2091, 0.0
      %v2124 = vmax.f32 %v2092, 0.0
      %v2125 = vmax.f32 %v2093, 0.0
      %v2126 = vmax.f32 %v2094, 0.0
      %v2127 = vmax.f32 %v2095, 0.0
      %v2128 = vmax.f32 %v2096, 0.0
      %v2129 = vmax.f32 %v2097, 0.0
      %v2130 = vmax.f32 %v2098, 0.0
      %v2131 = vmax.f32 %v2099, 0.0
      %v2132 = vmax.f32 %v2100, 0.0
      %v2133 = vmax.f32 %v2101, 0.0
      %v2134 = vmax.f32 %v2102, 0.0
      %v2135 = vmax.f32 %v2103, 0.0
      %v2136 = vmax.f32 %v2104, 0.0
      %v2137 = vmax.f32 %v2105, 0.0
      %v2138 = vmax.f32 %v2106, 0.0
      %v2139 = vmax.f32 %v2107, 0.0
      %v2140 = vmax.f32 %v2108, 0.0
      %v2141 = vmax.f32 %v2109, 0.0
      %v2142 = vmax.f32 %v2110, 0.0
      %v2143 = vmax.f32 %v2111, 0.0
      %v2144 = vmax.f32 %v2112, 0.0
      %v2145 = vmax.f32 %v2113, 0.0
      %v2146 = vmax.f32 %v2114, 0.0
      %v2147 = vmax.f32 %v2115, 0.0
      %v2148 = vmax.f32 %v2116, 0.0
      %v2149 = vmax.f32 %v2117, 0.0
      %v2150 = vmax.f32 %v2118, 0.0
      %v2151 = vmax.f32 %v2119, 0.0
      %v2182 = vrot.slane %v2120, 1
      %v2183 = vrot.slane %v2121, 1
      %v2184 = vsel %vm371, %v2182, %v2183
      %v2185 = vrot.slane %v2122, 1
      %v2186 = vrot.slane %v2123, 1
      %v2187 = vsel %vm371, %v2185, %v2186
      %v2188 = vrot.slane %v2124, 1
      %v2189 = vrot.slane %v2125, 1
      %v2190 = vsel %vm371, %v2188, %v2189
      %v2191 = vrot.slane %v2126, 1
      %v2192 = vrot.slane %v2127, 1
      %v2193 = vsel %vm371, %v2191, %v2192
      %v2194 = vrot.slane %v2128, 1
      %v2195 = vrot.slane %v2129, 1
      %v2196 = vsel %vm371, %v2194, %v2195
      %v2197 = vrot.slane %v2130, 1
      %v2198 = vrot.slane %v2131, 1
      %v2199 = vsel %vm371, %v2197, %v2198
      %v2200 = vrot.slane %v2132, 1
      %v2201 = vrot.slane %v2133, 1
      %v2202 = vsel %vm371, %v2200, %v2201
      %v2203 = vrot.slane %v2134, 1
      %v2204 = vrot.slane %v2135, 1
      %v2205 = vsel %vm371, %v2203, %v2204
      %v2206 = vrot.slane %v2136, 1
      %v2207 = vrot.slane %v2137, 1
      %v2208 = vsel %vm371, %v2206, %v2207
      %v2209 = vrot.slane %v2138, 1
      %v2210 = vrot.slane %v2139, 1
      %v2211 = vsel %vm371, %v2209, %v2210
      %v2212 = vrot.slane %v2140, 1
      %v2213 = vrot.slane %v2141, 1
      %v2214 = vsel %vm371, %v2212, %v2213
      %v2215 = vrot.slane %v2142, 1
      %v2216 = vrot.slane %v2143, 1
      %v2217 = vsel %vm371, %v2215, %v2216
      %v2218 = vrot.slane %v2144, 1
      %v2219 = vrot.slane %v2145, 1
      %v2220 = vsel %vm371, %v2218, %v2219
      %v2221 = vrot.slane %v2146, 1
      %v2222 = vrot.slane %v2147, 1
      %v2223 = vsel %vm371, %v2221, %v2222
      %v2224 = vrot.slane %v2148, 1
      %v2225 = vrot.slane %v2149, 1
      %v2226 = vsel %vm371, %v2224, %v2225
      %2227 = vrot.lane.b32.xlu0 %v372, 64
      %v2228 = vpop.permute.xlu0 %2227
      %2229 = vrot.lane.b32.xlu0 %v373, 64
      %v2230 = vpop.permute.xlu0 %2229
      %2231 = vrot.lane.b32.xlu0 %v2182, 64
      %v2232 = vpop.permute.xlu0 %2231
      %2233 = vrot.lane.b32.xlu0 %v2184, 64
      %v2234 = vpop.permute.xlu0 %2233
      %2235 = vrot.lane.b32.xlu0 %v2183, 64
      %v2236 = vpop.permute.xlu0 %2235
      %2237 = vrot.lane.b32.xlu0 %v2185, 64
      %v2238 = vpop.permute.xlu0 %2237
      %2239 = vrot.lane.b32.xlu0 %v2187, 64
      %v2240 = vpop.permute.xlu0 %2239
      %2241 = vrot.lane.b32.xlu0 %v2186, 64
      %v2242 = vpop.permute.xlu0 %2241
      %2243 = vrot.lane.b32.xlu0 %v2188, 64
      %v2244 = vpop.permute.xlu0 %2243
      %2245 = vrot.lane.b32.xlu0 %v2190, 64
      %v2246 = vpop.permute.xlu0 %2245
      %2247 = vrot.lane.b32.xlu0 %v2189, 64
      %v2248 = vpop.permute.xlu0 %2247
      %2249 = vrot.lane.b32.xlu0 %v2191, 64
      %v2250 = vpop.permute.xlu0 %2249
      %2251 = vrot.lane.b32.xlu0 %v2193, 64
      %v2252 = vpop.permute.xlu0 %2251
      %2253 = vrot.lane.b32.xlu0 %v2192, 64
      %v2254 = vpop.permute.xlu0 %2253
      %2255 = vrot.lane.b32.xlu0 %v2194, 64
      %v2256 = vpop.permute.xlu0 %2255
      %2257 = vrot.lane.b32.xlu0 %v2196, 64
      %v2258 = vpop.permute.xlu0 %2257
      %2259 = vrot.lane.b32.xlu0 %v2195, 64
      %v2260 = vpop.permute.xlu0 %2259
      %2261 = vrot.lane.b32.xlu0 %v2197, 64
      %v2262 = vpop.permute.xlu0 %2261
      %2263 = vrot.lane.b32.xlu0 %v2199, 64
      %v2264 = vpop.permute.xlu0 %2263
      %2265 = vrot.lane.b32.xlu0 %v2198, 64
      %v2266 = vpop.permute.xlu0 %2265
      %2267 = vrot.lane.b32.xlu0 %v2200, 64
      %v2268 = vpop.permute.xlu0 %2267
      %2269 = vrot.lane.b32.xlu0 %v2202, 64
      %v2270 = vpop.permute.xlu0 %2269
      %2271 = vrot.lane.b32.xlu0 %v2201, 64
      %v2272 = vpop.permute.xlu0 %2271
      %2273 = vrot.lane.b32.xlu0 %v2203, 64
      %v2274 = vpop.permute.xlu0 %2273
      %2275 = vrot.lane.b32.xlu0 %v2205, 64
      %v2276 = vpop.permute.xlu0 %2275
      %2277 = vrot.lane.b32.xlu0 %v2204, 64
      %v2278 = vpop.permute.xlu0 %2277
      %2279 = vrot.lane.b32.xlu0 %v2206, 64
      %v2280 = vpop.permute.xlu0 %2279
      %2281 = vrot.lane.b32.xlu0 %v2208, 64
      %v2282 = vpop.permute.xlu0 %2281
      %2283 = vrot.lane.b32.xlu0 %v2207, 64
      %v2284 = vpop.permute.xlu0 %2283
      %2285 = vrot.lane.b32.xlu0 %v2209, 64
      %v2286 = vpop.permute.xlu0 %2285
      %2287 = vrot.lane.b32.xlu0 %v2211, 64
      %v2288 = vpop.permute.xlu0 %2287
      %2289 = vrot.lane.b32.xlu0 %v2210, 64
      %v2290 = vpop.permute.xlu0 %2289
      %2291 = vrot.lane.b32.xlu0 %v2212, 64
      %v2292 = vpop.permute.xlu0 %2291
      %2293 = vrot.lane.b32.xlu0 %v2214, 64
      %v2294 = vpop.permute.xlu0 %2293
      %2295 = vrot.lane.b32.xlu0 %v2213, 64
      %v2296 = vpop.permute.xlu0 %2295
      %2297 = vrot.lane.b32.xlu0 %v2215, 64
      %v2298 = vpop.permute.xlu0 %2297
      %2299 = vrot.lane.b32.xlu0 %v2217, 64
      %v2300 = vpop.permute.xlu0 %2299
      %2301 = vrot.lane.b32.xlu0 %v2216, 64
      %v2302 = vpop.permute.xlu0 %2301
      %2303 = vrot.lane.b32.xlu0 %v2218, 64
      %v2304 = vpop.permute.xlu0 %2303
      %2305 = vrot.lane.b32.xlu0 %v2220, 64
      %v2306 = vpop.permute.xlu0 %2305
      %2307 = vrot.lane.b32.xlu0 %v2219, 64
      %v2308 = vpop.permute.xlu0 %2307
      %2309 = vrot.lane.b32.xlu0 %v2221, 64
      %v2310 = vpop.permute.xlu0 %2309
      %2311 = vrot.lane.b32.xlu0 %v2223, 64
      %v2312 = vpop.permute.xlu0 %2311
      %2313 = vrot.lane.b32.xlu0 %v2222, 64
      %v2314 = vpop.permute.xlu0 %2313
      %2315 = vrot.lane.b32.xlu0 %v2224, 64
      %v2316 = vpop.permute.xlu0 %2315
      %2317 = vrot.lane.b32.xlu0 %v2226, 64
      %v2318 = vpop.permute.xlu0 %2317
      %2319 = vrot.lane.b32.xlu0 %v2225, 64
      %v2320 = vpop.permute.xlu0 %2319
      %v2368 = vrot.slane %v2120, 2
      %v2369 = vrot.slane %v2121, 2
      %v2370 = vsel %vm560, %v2368, %v2369
      %v2371 = vsel %vm560, %v2369, %v561
      %v2372 = vrot.slane %v2122, 2
      %v2373 = vrot.slane %v2123, 2
      %v2374 = vsel %vm560, %v2372, %v2373
      %v2375 = vsel %vm560, %v2373, %v561
      %v2376 = vrot.slane %v2124, 2
      %v2377 = vrot.slane %v2125, 2
      %v2378 = vsel %vm560, %v2376, %v2377
      %v2379 = vsel %vm560, %v2377, %v561
      %v2380 = vrot.slane %v2126, 2
      %v2381 = vrot.slane %v2127, 2
      %v2382 = vsel %vm560, %v2380, %v2381
      %v2383 = vsel %vm560, %v2381, %v561
      %v2384 = vrot.slane %v2128, 2
      %v2385 = vrot.slane %v2129, 2
      %v2386 = vsel %vm560, %v2384, %v2385
      %v2387 = vsel %vm560, %v2385, %v561
      %v2388 = vrot.slane %v2130, 2
      %v2389 = vrot.slane %v2131, 2
      %v2390 = vsel %vm560, %v2388, %v2389
      %v2391 = vsel %vm560, %v2389, %v561
      %v2392 = vrot.slane %v2132, 2
      %v2393 = vrot.slane %v2133, 2
      %v2394 = vsel %vm560, %v2392, %v2393
      %v2395 = vsel %vm560, %v2393, %v561
      %v2396 = vrot.slane %v2134, 2
      %v2397 = vrot.slane %v2135, 2
      %v2398 = vsel %vm560, %v2396, %v2397
      %v2399 = vsel %vm560, %v2397, %v561
      %v2400 = vrot.slane %v2136, 2
      %v2401 = vrot.slane %v2137, 2
      %v2402 = vsel %vm560, %v2400, %v2401
      %v2403 = vsel %vm560, %v2401, %v561
      %v2404 = vrot.slane %v2138, 2
      %v2405 = vrot.slane %v2139, 2
      %v2406 = vsel %vm560, %v2404, %v2405
      %v2407 = vsel %vm560, %v2405, %v561
      %v2408 = vrot.slane %v2140, 2
      %v2409 = vrot.slane %v2141, 2
      %v2410 = vsel %vm560, %v2408, %v2409
      %v2411 = vsel %vm560, %v2409, %v561
      %v2412 = vrot.slane %v2142, 2
      %v2413 = vrot.slane %v2143, 2
      %v2414 = vsel %vm560, %v2412, %v2413
      %v2415 = vsel %vm560, %v2413, %v561
      %v2416 = vrot.slane %v2144, 2
      %v2417 = vrot.slane %v2145, 2
      %v2418 = vsel %vm560, %v2416, %v2417
      %v2419 = vsel %vm560, %v2417, %v561
      %v2420 = vrot.slane %v2146, 2
      %v2421 = vrot.slane %v2147, 2
      %v2422 = vsel %vm560, %v2420, %v2421
      %v2423 = vsel %vm560, %v2421, %v561
      %v2424 = vrot.slane %v2148, 2
      %v2425 = vrot.slane %v2149, 2
      %v2426 = vsel %vm560, %v2424, %v2425
      %v2427 = vsel %vm560, %v2425, %v561
      %v2428 = vsel %vm812, 0.0, %v2228
      %v2429 = vsel %vm812, 0.0, %v2230
      %v2430 = vsel %vm812, 0.0, %v2232
      %v2431 = vsel %vm812, %v2120, %v2234
      %v2432 = vsel %vm812, %v2121, %v2236
      %v2433 = vsel %vm812, 0.0, %v2238
      %v2434 = vsel %vm812, %v2122, %v2240
      %v2435 = vsel %vm812, %v2123, %v2242
      %v2436 = vsel %vm812, 0.0, %v2244
      %v2437 = vsel %vm812, %v2124, %v2246
      %v2438 = vsel %vm812, %v2125, %v2248
      %v2439 = vsel %vm812, 0.0, %v2250
      %v2440 = vsel %vm812, %v2126, %v2252
      %v2441 = vsel %vm812, %v2127, %v2254
      %v2442 = vsel %vm812, 0.0, %v2256
      %v2443 = vsel %vm812, %v2128, %v2258
      %v2444 = vsel %vm812, %v2129, %v2260
      %v2445 = vsel %vm812, 0.0, %v2262
      %v2446 = vsel %vm812, %v2130, %v2264
      %v2447 = vsel %vm812, %v2131, %v2266
      %v2448 = vsel %vm812, 0.0, %v2268
      %v2449 = vsel %vm812, %v2132, %v2270
      %v2450 = vsel %vm812, %v2133, %v2272
      %v2451 = vsel %vm812, 0.0, %v2274
      %v2452 = vsel %vm812, %v2134, %v2276
      %v2453 = vsel %vm812, %v2135, %v2278
      %v2454 = vsel %vm812, 0.0, %v2280
      %v2455 = vsel %vm812, %v2136, %v2282
      %v2456 = vsel %vm812, %v2137, %v2284
      %v2457 = vsel %vm812, 0.0, %v2286
      %v2458 = vsel %vm812, %v2138, %v2288
      %v2459 = vsel %vm812, %v2139, %v2290
      %v2460 = vsel %vm812, 0.0, %v2292
      %v2461 = vsel %vm812, %v2140, %v2294
      %v2462 = vsel %vm812, %v2141, %v2296
      %v2463 = vsel %vm812, 0.0, %v2298
      %v2464 = vsel %vm812, %v2142, %v2300
      %v2465 = vsel %vm812, %v2143, %v2302
      %v2466 = vsel %vm812, 0.0, %v2304
      %v2467 = vsel %vm812, %v2144, %v2306
      %v2468 = vsel %vm812, %v2145, %v2308
      %v2469 = vsel %vm812, 0.0, %v2310
      %v2470 = vsel %vm812, %v2146, %v2312
      %v2471 = vsel %vm812, %v2147, %v2314
      %v2472 = vsel %vm812, 0.0, %v2316
      %v2473 = vsel %vm812, %v2148, %v2318
      %v2474 = vsel %vm812, %v2149, %v2320
      %v2522 = vrot.slane %v2428, 7
      %v2523 = vrot.slane %v2429, 7
      %v2524 = vsel %vm909, %v2522, %v2523
      %v2525 = vrot.slane %v561, 7
      %v2526 = vrot.slane %v562, 7
      %v2527 = vsel %vm909, %v2525, %v2526
      %v2528 = vsel %vm909, %v2523, %v2522
      %v2529 = vsel %vm909, %v2526, %v2526
      %v2530 = vrot.slane %v2430, 7
      %v2531 = vrot.slane %v2431, 7
      %v2532 = vsel %vm909, %v2530, %v2531
      %v2533 = vrot.slane %v2368, 7
      %v2534 = vrot.slane %v2370, 7
      %v2535 = vsel %vm909, %v2533, %v2534
      %v2536 = vrot.slane %v2432, 7
      %v2537 = vsel %vm909, %v2531, %v2536
      %v2538 = vrot.slane %v2371, 7
      %v2539 = vsel %vm909, %v2534, %v2538
      %v2540 = vrot.slane %v2433, 7
      %v2541 = vrot.slane %v2434, 7
      %v2542 = vsel %vm909, %v2540, %v2541
      %v2543 = vrot.slane %v2372, 7
      %v2544 = vrot.slane %v2374, 7
      %v2545 = vsel %vm909, %v2543, %v2544
      %v2546 = vrot.slane %v2435, 7
      %v2547 = vsel %vm909, %v2541, %v2546
      %v2548 = vrot.slane %v2375, 7
      %v2549 = vsel %vm909, %v2544, %v2548
      %v2550 = vrot.slane %v2436, 7
      %v2551 = vrot.slane %v2437, 7
      %v2552 = vsel %vm909, %v2550, %v2551
      %v2553 = vrot.slane %v2376, 7
      %v2554 = vrot.slane %v2378, 7
      %v2555 = vsel %vm909, %v2553, %v2554
      %v2556 = vrot.slane %v2438, 7
      %v2557 = vsel %vm909, %v2551, %v2556
      %v2558 = vrot.slane %v2379, 7
      %v2559 = vsel %vm909, %v2554, %v2558
      %v2560 = vrot.slane %v2439, 7
      %v2561 = vrot.slane %v2440, 7
      %v2562 = vsel %vm909, %v2560, %v2561
      %v2563 = vrot.slane %v2380, 7
      %v2564 = vrot.slane %v2382, 7
      %v2565 = vsel %vm909, %v2563, %v2564
      %v2566 = vrot.slane %v2441, 7
      %v2567 = vsel %vm909, %v2561, %v2566
      %v2568 = vrot.slane %v2383, 7
      %v2569 = vsel %vm909, %v2564, %v2568
      %v2570 = vrot.slane %v2442, 7
      %v2571 = vrot.slane %v2443, 7
      %v2572 = vsel %vm909, %v2570, %v2571
      %v2573 = vrot.slane %v2384, 7
      %v2574 = vrot.slane %v2386, 7
      %v2575 = vsel %vm909, %v2573, %v2574
      %v2576 = vrot.slane %v2444, 7
      %v2577 = vsel %vm909, %v2571, %v2576
      %v2578 = vrot.slane %v2387, 7
      %v2579 = vsel %vm909, %v2574, %v2578
      %v2580 = vrot.slane %v2445, 7
      %v2581 = vrot.slane %v2446, 7
      %v2582 = vsel %vm909, %v2580, %v2581
      %v2583 = vrot.slane %v2388, 7
      %v2584 = vrot.slane %v2390, 7
      %v2585 = vsel %vm909, %v2583, %v2584
      %v2586 = vrot.slane %v2447, 7
      %v2587 = vsel %vm909, %v2581, %v2586
      %v2588 = vrot.slane %v2391, 7
      %v2589 = vsel %vm909, %v2584, %v2588
      %v2590 = vrot.slane %v2448, 7
      %v2591 = vrot.slane %v2449, 7
      %v2592 = vsel %vm909, %v2590, %v2591
      %v2593 = vrot.slane %v2392, 7
      %v2594 = vrot.slane %v2394, 7
      %v2595 = vsel %vm909, %v2593, %v2594
      %v2596 = vrot.slane %v2450, 7
      %v2597 = vsel %vm909, %v2591, %v2596
      %v2598 = vrot.slane %v2395, 7
      %v2599 = vsel %vm909, %v2594, %v2598
      %v2600 = vrot.slane %v2451, 7
      %v2601 = vrot.slane %v2452, 7
      %v2602 = vsel %vm909, %v2600, %v2601
      %v2603 = vrot.slane %v2396, 7
      %v2604 = vrot.slane %v2398, 7
      %v2605 = vsel %vm909, %v2603, %v2604
      %v2606 = vrot.slane %v2453, 7
      %v2607 = vsel %vm909, %v2601, %v2606
      %v2608 = vrot.slane %v2399, 7
      %v2609 = vsel %vm909, %v2604, %v2608
      %v2610 = vrot.slane %v2454, 7
      %v2611 = vrot.slane %v2455, 7
      %v2612 = vsel %vm909, %v2610, %v2611
      %v2613 = vrot.slane %v2400, 7
      %v2614 = vrot.slane %v2402, 7
      %v2615 = vsel %vm909, %v2613, %v2614
      %v2616 = vrot.slane %v2456, 7
      %v2617 = vsel %vm909, %v2611, %v2616
      %v2618 = vrot.slane %v2403, 7
      %v2619 = vsel %vm909, %v2614, %v2618
      %v2620 = vrot.slane %v2457, 7
      %v2621 = vrot.slane %v2458, 7
      %v2622 = vsel %vm909, %v2620, %v2621
      %v2623 = vrot.slane %v2404, 7
      %v2624 = vrot.slane %v2406, 7
      %v2625 = vsel %vm909, %v2623, %v2624
      %v2626 = vrot.slane %v2459, 7
      %v2627 = vsel %vm909, %v2621, %v2626
      %v2628 = vrot.slane %v2407, 7
      %v2629 = vsel %vm909, %v2624, %v2628
      %v2630 = vrot.slane %v2460, 7
      %v2631 = vrot.slane %v2461, 7
      %v2632 = vsel %vm909, %v2630, %v2631
      %v2633 = vrot.slane %v2408, 7
      %v2634 = vrot.slane %v2410, 7
      %v2635 = vsel %vm909, %v2633, %v2634
      %v2636 = vrot.slane %v2462, 7
      %v2637 = vsel %vm909, %v2631, %v2636
      %v2638 = vrot.slane %v2411, 7
      %v2639 = vsel %vm909, %v2634, %v2638
      %v2640 = vrot.slane %v2463, 7
      %v2641 = vrot.slane %v2464, 7
      %v2642 = vsel %vm909, %v2640, %v2641
      %v2643 = vrot.slane %v2412, 7
      %v2644 = vrot.slane %v2414, 7
      %v2645 = vsel %vm909, %v2643, %v2644
      %v2646 = vrot.slane %v2465, 7
      %v2647 = vsel %vm909, %v2641, %v2646
      %v2648 = vrot.slane %v2415, 7
      %v2649 = vsel %vm909, %v2644, %v2648
      %v2650 = vrot.slane %v2466, 7
      %v2651 = vrot.slane %v2467, 7
      %v2652 = vsel %vm909, %v2650, %v2651
      %v2653 = vrot.slane %v2416, 7
      %v2654 = vrot.slane %v2418, 7
      %v2655 = vsel %vm909, %v2653, %v2654
      %v2656 = vrot.slane %v2468, 7
      %v2657 = vsel %vm909, %v2651, %v2656
      %v2658 = vrot.slane %v2419, 7
      %v2659 = vsel %vm909, %v2654, %v2658
      %v2660 = vrot.slane %v2469, 7
      %v2661 = vrot.slane %v2470, 7
      %v2662 = vsel %vm909, %v2660, %v2661
      %v2663 = vrot.slane %v2420, 7
      %v2664 = vrot.slane %v2422, 7
      %v2665 = vsel %vm909, %v2663, %v2664
      %v2666 = vrot.slane %v2471, 7
      %v2667 = vsel %vm909, %v2661, %v2666
      %v2668 = vrot.slane %v2423, 7
      %v2669 = vsel %vm909, %v2664, %v2668
      %v2670 = vrot.slane %v2472, 7
      %v2671 = vrot.slane %v2473, 7
      %v2672 = vsel %vm909, %v2670, %v2671
      %v2673 = vrot.slane %v2424, 7
      %v2674 = vrot.slane %v2426, 7
      %v2675 = vsel %vm909, %v2673, %v2674
      %v2676 = vrot.slane %v2474, 7
      %v2677 = vsel %vm909, %v2671, %v2676
      %v2678 = vrot.slane %v2427, 7
      %v2679 = vsel %vm909, %v2674, %v2678
      %v2744 = vpack.c.bf16 %v2528, %v2524
      %v2745 = vpack.c.bf16 %v2529, %v2527
      %v2746 = vpack.c.bf16 %v2537, %v2532
      %v2747 = vpack.c.bf16 %v2539, %v2535
      %v2748 = vpack.c.bf16 %v2547, %v2542
      %v2749 = vpack.c.bf16 %v2549, %v2545
      %v2750 = vpack.c.bf16 %v2557, %v2552
      %v2751 = vpack.c.bf16 %v2559, %v2555
      %v2752 = vpack.c.bf16 %v2567, %v2562
      %v2753 = vpack.c.bf16 %v2569, %v2565
      %v2754 = vpack.c.bf16 %v2577, %v2572
      %v2755 = vpack.c.bf16 %v2579, %v2575
      %v2756 = vpack.c.bf16 %v2587, %v2582
      %v2757 = vpack.c.bf16 %v2589, %v2585
      %v2758 = vpack.c.bf16 %v2597, %v2592
      %v2759 = vpack.c.bf16 %v2599, %v2595
      %v2760 = vpack.c.bf16 %v2607, %v2602
      %v2761 = vpack.c.bf16 %v2609, %v2605
      %v2762 = vpack.c.bf16 %v2617, %v2612
      %v2763 = vpack.c.bf16 %v2619, %v2615
      %v2764 = vpack.c.bf16 %v2627, %v2622
      %v2765 = vpack.c.bf16 %v2629, %v2625
      %v2766 = vpack.c.bf16 %v2637, %v2632
      %v2767 = vpack.c.bf16 %v2639, %v2635
      %v2768 = vpack.c.bf16 %v2647, %v2642
      %v2769 = vpack.c.bf16 %v2649, %v2645
      %v2770 = vpack.c.bf16 %v2657, %v2652
      %v2771 = vpack.c.bf16 %v2659, %v2655
      %v2772 = vpack.c.bf16 %v2667, %v2662
      %v2773 = vpack.c.bf16 %v2669, %v2665
      %v2774 = vpack.c.bf16 %v2677, %v2672
      %v2775 = vpack.c.bf16 %v2679, %v2675
      %v2776 = vld [vmem:[%s5] sm:$0xf]
      %v2777 = vld [vmem:[%s5 + $0x4] sm:$0xf]
      %v2778 = vld [vmem:[%s5 + $0x8] sm:$0xf]
      %v2779 = vld [vmem:[%s5 + $0xc] sm:$0xf]
      %v2780 = vld [vmem:[%s5 + $0x10] sm:$0xf]
      %v2781 = vld [vmem:[%s5 + $0x14] sm:$0xf]
      %v2782 = vld [vmem:[%s5 + $0x18] sm:$0xf]
      %v2783 = vld [vmem:[%s5 + $0x1c] sm:$0xf]
      %v2784 = vld [vmem:[%s5 + $0x20] sm:$0xf]
      %v2785 = vld [vmem:[%s5 + $0x24] sm:$0xf]
      %v2786 = vld [vmem:[%s5 + $0x28] sm:$0xf]
      %v2787 = vld [vmem:[%s5 + $0x2c] sm:$0xf]
      %v2788 = vld [vmem:[%s5 + $0x30] sm:$0xf]
      %v2789 = vld [vmem:[%s5 + $0x34] sm:$0xf]
      %v2790 = vld [vmem:[%s5 + $0x38] sm:$0xf]
      %v2791 = vld [vmem:[%s5 + $0x3c] sm:$0xf]
      %v2792 = vld [vmem:[%s5 + $0x40] sm:$0xf]
      %v2793 = vld [vmem:[%s5 + $0x44] sm:$0xf]
      %v2794 = vld [vmem:[%s5 + $0x48] sm:$0xf]
      %v2795 = vld [vmem:[%s5 + $0x4c] sm:$0xf]
      %v2796 = vld [vmem:[%s5 + $0x50] sm:$0xf]
      %v2797 = vld [vmem:[%s5 + $0x54] sm:$0xf]
      %v2798 = vld [vmem:[%s5 + $0x58] sm:$0xf]
      %v2799 = vld [vmem:[%s5 + $0x5c] sm:$0xf]
      %v2802 = vrot.slane %v2150, 1
      %v2803 = vrot.slane %v2151, 1
      %v2804 = vsel %vm371, %v2802, %v2803
      %2805 = vrot.lane.b32.xlu0 %v2802, 64
      %v2806 = vpop.permute.xlu0 %2805
      %2807 = vrot.lane.b32.xlu0 %v2804, 64
      %v2808 = vpop.permute.xlu0 %2807
      %2809 = vrot.lane.b32.xlu0 %v2803, 64
      %v2810 = vpop.permute.xlu0 %2809
      %v2814 = vrot.slane %v2150, 2
      %v2815 = vrot.slane %v2151, 2
      %v2816 = vsel %vm560, %v2814, %v2815
      %v2817 = vsel %vm560, %v2815, %v561
      %v2818 = vsel %vm812, 0.0, %v2806
      %v2819 = vsel %vm812, %v2150, %v2808
      %v2820 = vsel %vm812, %v2151, %v2810
      %v2824 = vrot.slane %v2818, 7
      %v2825 = vrot.slane %v2819, 7
      %v2826 = vsel %vm909, %v2824, %v2825
      %v2827 = vrot.slane %v2814, 7
      %v2828 = vrot.slane %v2816, 7
      %v2829 = vsel %vm909, %v2827, %v2828
      %v2830 = vrot.slane %v2820, 7
      %v2831 = vsel %vm909, %v2825, %v2830
      %v2832 = vrot.slane %v2817, 7
      %v2833 = vsel %vm909, %v2828, %v2832
      %v2838 = vpack.c.bf16 %v2831, %v2826
      %v2839 = vpack.c.bf16 %v2833, %v2829
      %s2840 = scalar_lea.vmem %s5, 96
      %v2841 = vld [vmem:[%s2840] sm:$0xf]
      %v2842 = vld [vmem:[%s2840 + $0x4] sm:$0xf]
      %v2843 = vld [vmem:[%s2840 + $0x8] sm:$0xf]
      %v2844 = vld [vmem:[%s2840 + $0xc] sm:$0xf]
      %v2845 = vld [vmem:[%s2840 + $0x10] sm:$0xf]
      %v2846 = vld [vmem:[%s2840 + $0x14] sm:$0xf]
      %v2847 = vld [vmem:[%s2840 + $0x18] sm:$0xf]
      %v2848 = vld [vmem:[%s2840 + $0x1c] sm:$0xf]
      %v2849 = vld [vmem:[%s2840 + $0x20] sm:$0xf]
      %v2850 = vld [vmem:[%s2840 + $0x24] sm:$0xf]
      %v2851 = vld [vmem:[%s2840 + $0x28] sm:$0xf]
      %v2852 = vld [vmem:[%s2840 + $0x2c] sm:$0xf]
      %v2853 = vld [vmem:[%s2840 + $0x30] sm:$0xf]
      %v2854 = vld [vmem:[%s2840 + $0x34] sm:$0xf]
      %v2855 = vld [vmem:[%s2840 + $0x38] sm:$0xf]
      %v2856 = vld [vmem:[%s2840 + $0x3c] sm:$0xf]
      %v2857 = vld [vmem:[%s2840 + $0x40] sm:$0xf]
      %v2858 = vld [vmem:[%s2840 + $0x44] sm:$0xf]
      %v2859 = vld [vmem:[%s2840 + $0x48] sm:$0xf]
      %v2860 = vld [vmem:[%s2840 + $0x4c] sm:$0xf]
      %v2861 = vld [vmem:[%s2840 + $0x50] sm:$0xf]
      %v2862 = vld [vmem:[%s2840 + $0x54] sm:$0xf]
      %v2863 = vld [vmem:[%s2840 + $0x58] sm:$0xf]
      %v2864 = vld [vmem:[%s2840 + $0x5c] sm:$0xf]
      %v2889 = vunpack.c.l.b16 %v2841
      %v2890 = vunpack.c.l.b16 %v2842
      %v2891 = vunpack.c.l.b16 %v2843
      %v2892 = vunpack.c.l.b16 %v2844
      %v2893 = vunpack.c.l.b16 %v2845
      %v2894 = vunpack.c.l.b16 %v2846
      %v2895 = vunpack.c.l.b16 %v2847
      %v2896 = vunpack.c.l.b16 %v2848
      %v2897 = vunpack.c.l.b16 %v2849
      %v2898 = vunpack.c.l.b16 %v2850
      %v2899 = vunpack.c.l.b16 %v2851
      %v2900 = vunpack.c.l.b16 %v2852
      %v2901 = vunpack.c.l.b16 %v2853
      %v2902 = vunpack.c.l.b16 %v2854
      %v2903 = vunpack.c.l.b16 %v2855
      %v2904 = vunpack.c.l.b16 %v2856
      %v2905 = vunpack.c.l.b16 %v2857
      %v2906 = vunpack.c.l.b16 %v2858
      %v2907 = vunpack.c.l.b16 %v2859
      %v2908 = vunpack.c.l.b16 %v2860
      %v2909 = vunpack.c.l.b16 %v2861
      %v2910 = vunpack.c.l.b16 %v2862
      %v2911 = vunpack.c.l.b16 %v2863
      %v2912 = vunpack.c.l.b16 %v2864
      %v2913 = vpack.c.b16 %v2890, %v2889
      %v2914 = vpack.c.b16 %v2892, %v2891
      %v2915 = vpack.c.b16 %v2894, %v2893
      %v2916 = vpack.c.b16 %v2896, %v2895
      %v2917 = vpack.c.b16 %v2898, %v2897
      %v2918 = vpack.c.b16 %v2900, %v2899
      %v2919 = vpack.c.b16 %v2902, %v2901
      %v2920 = vpack.c.b16 %v2904, %v2903
      %v2921 = vpack.c.b16 %v2906, %v2905
      %v2922 = vpack.c.b16 %v2908, %v2907
      %v2923 = vpack.c.b16 %v2910, %v2909
      %v2924 = vpack.c.b16 %v2912, %v2911
      %v2938 = vsel %vm812, %v2747, 0
      %v2941 = vsel %vm812, %v2749, 0
      %v2944 = vsel %vm812, %v2751, 0
      %v2947 = vsel %vm812, %v2753, 0
      %v2950 = vsel %vm812, %v2755, 0
      %v2953 = vsel %vm812, %v2757, 0
      %v2956 = vsel %vm812, %v2759, 0
      %v2959 = vsel %vm812, %v2761, 0
      %v2962 = vsel %vm812, %v2763, 0
      %v2965 = vsel %vm812, %v2765, 0
      %v2968 = vsel %vm812, %v2767, 0
      %v2971 = vsel %vm812, %v2769, 0
      %v2974 = vsel %vm812, %v2771, 0
      %v2977 = vsel %vm812, %v2773, 0
      %v2980 = vsel %vm812, %v2775, 0
      %v2983 = vsel %vm812, %v2839, 0
      %2985 = vmatprep.subr.bf16.mxu0 0
      %2986 = vmatpush1.bf16.msra.mxu0 %v2913
      %2987 = vmatprep.subr.bf16.mxu0 0
      %2988 = vmatpush1.bf16.msra.mxu0 %v2914
      %2989 = vmatprep.subr.bf16.mxu0 0
      %2990 = vmatpush1.bf16.msra.mxu0 %v2915
      %2991 = vmatprep.subr.bf16.mxu0 0
      %2992 = vmatpush1.bf16.msra.mxu0 %v2916
      %2993 = vmatprep.subr.bf16.mxu0 0
      %2994 = vmatpush1.bf16.msra.mxu0 %v2917
      %2995 = vmatprep.subr.bf16.mxu0 0
      %2996 = vmatpush1.bf16.msra.mxu0 %v2918
      %2997 = vmatprep.subr.bf16.mxu0 0
      %2998 = vmatpush1.bf16.msra.mxu0 %v2919
      %2999 = vmatprep.subr.bf16.mxu0 0
      %3000 = vmatpush1.bf16.msra.mxu0 %v2920
      %3001 = vmatprep.subr.bf16.mxu0 0
      %3002 = vmatpush1.bf16.msra.mxu0 %v2921
      %3003 = vmatprep.subr.bf16.mxu0 0
      %3004 = vmatpush1.bf16.msra.mxu0 %v2922
      %3005 = vmatprep.subr.bf16.mxu0 0
      %3006 = vmatpush1.bf16.msra.mxu0 %v2923
      %3007 = vmatprep.subr.bf16.mxu0 0
      %3008 = vmatpush1.bf16.msra.mxu0 %v2924
      %3009 = vmatprep.subr.bf16.mxu0 0
      %3010 = vmatpush1.bf16.msra.mxu0 0
      %3011 = vmatprep.subr.bf16.mxu0 0
      %3012 = vmatpush1.bf16.msra.mxu0 0
      %3013 = vmatprep.subr.bf16.mxu0 0
      %3014 = vmatpush1.bf16.msra.mxu0 0
      %3015 = vmatprep.subr.bf16.mxu0 0
      %3016 = vmatpush1.bf16.msra.mxu0 0
      %3017 = vmatprep.mubr.bf16.mxu0 %v2938
      %3018 = vmatmul.mubr.bf16.gmra.mrb[0].mxu0 %v2746
      %v3019 = vpop.f32.mrb[0].mxu0
      %v3020 = vadd.f32 0.0, %v3019
      %v3021 = vpop.f32.mrb[0].mxu0
      %v3022 = vpop.f32.mrb[0].mxu0
      %v3023 = vadd.f32 0.0, %v3022
      %v3024 = vpop.f32.mrb[0].mxu0
      %3025 = vmatprep.mubr.bf16.mxu0 %v2941
      %3026 = vmatmul.mubr.bf16.gmra.mrb[0].mxu0 %v2748
      %v3027 = vpop.f32.mrb[0].mxu0
      %v3028 = vadd.f32 0.0, %v3027
      %v3029 = vpop.f32.mrb[0].mxu0
      %v3030 = vpop.f32.mrb[0].mxu0
      %v3031 = vadd.f32 0.0, %v3030
      %v3032 = vpop.f32.mrb[0].mxu0
      %3033 = vmatprep.mubr.bf16.mxu0 %v2944
      %3034 = vmatmul.mubr.bf16.gmra.mrb[0].mxu0 %v2750
      %v3035 = vpop.f32.mrb[0].mxu0
      %v3036 = vadd.f32 0.0, %v3035
      %v3037 = vpop.f32.mrb[0].mxu0
      %v3038 = vpop.f32.mrb[0].mxu0
      %v3039 = vadd.f32 0.0, %v3038
      %v3040 = vpop.f32.mrb[0].mxu0
      %3041 = vmatprep.mubr.bf16.mxu0 %v2947
      %3042 = vmatmul.mubr.bf16.gmra.mrb[0].mxu0 %v2752
      %v3043 = vpop.f32.mrb[0].mxu0
      %v3044 = vadd.f32 0.0, %v3043
      %v3045 = vpop.f32.mrb[0].mxu0
      %v3046 = vpop.f32.mrb[0].mxu0
      %v3047 = vadd.f32 0.0, %v3046
      %v3048 = vpop.f32.mrb[0].mxu0
      %3049 = vmatprep.mubr.bf16.mxu0 %v2950
      %3050 = vmatmul.mubr.bf16.gmra.mrb[0].mxu0 %v2754
      %v3051 = vpop.f32.mrb[0].mxu0
      %v3052 = vadd.f32 0.0, %v3051
      %v3053 = vpop.f32.mrb[0].mxu0
      %v3054 = vpop.f32.mrb[0].mxu0
      %v3055 = vadd.f32 0.0, %v3054
      %v3056 = vpop.f32.mrb[0].mxu0
      %3057 = vmatprep.mubr.bf16.mxu0 %v2953
      %3058 = vmatmul.mubr.bf16.gmra.mrb[0].mxu0 %v2756
      %v3059 = vpop.f32.mrb[0].mxu0
      %v3060 = vadd.f32 0.0, %v3059
      %v3061 = vpop.f32.mrb[0].mxu0
      %v3062 = vpop.f32.mrb[0].mxu0
      %v3063 = vadd.f32 0.0, %v3062
      %v3064 = vpop.f32.mrb[0].mxu0
      %3065 = vmatprep.mubr.bf16.mxu0 %v2956
      %3066 = vmatmul.mubr.bf16.gmra.mrb[0].mxu0 %v2758
      %v3067 = vpop.f32.mrb[0].mxu0
      %v3068 = vadd.f32 0.0, %v3067
      %v3069 = vpop.f32.mrb[0].mxu0
      %v3070 = vpop.f32.mrb[0].mxu0
      %v3071 = vadd.f32 0.0, %v3070
      %v3072 = vpop.f32.mrb[0].mxu0
      %3073 = vmatprep.mubr.bf16.mxu0 %v2959
      %3074 = vmatmul.mubr.bf16.gmra.mrb[0].mxu0 %v2760
      %v3075 = vpop.f32.mrb[0].mxu0
      %v3076 = vadd.f32 0.0, %v3075
      %v3077 = vpop.f32.mrb[0].mxu0
      %v3078 = vpop.f32.mrb[0].mxu0
      %v3079 = vadd.f32 0.0, %v3078
      %v3080 = vpop.f32.mrb[0].mxu0
      %3081 = vmatprep.mubr.bf16.mxu0 %v2962
      %3082 = vmatmul.mubr.bf16.gmra.mrb[0].mxu0 %v2762
      %v3083 = vpop.f32.mrb[0].mxu0
      %v3084 = vadd.f32 0.0, %v3083
      %v3085 = vpop.f32.mrb[0].mxu0
      %v3086 = vpop.f32.mrb[0].mxu0
      %v3087 = vadd.f32 0.0, %v3086
      %v3088 = vpop.f32.mrb[0].mxu0
      %3089 = vmatprep.mubr.bf16.mxu0 %v2965
      %3090 = vmatmul.mubr.bf16.gmra.mrb[0].mxu0 %v2764
      %v3091 = vpop.f32.mrb[0].mxu0
      %v3092 = vadd.f32 0.0, %v3091
      %v3093 = vpop.f32.mrb[0].mxu0
      %v3094 = vpop.f32.mrb[0].mxu0
      %v3095 = vadd.f32 0.0, %v3094
      %v3096 = vpop.f32.mrb[0].mxu0
      %3097 = vmatprep.mubr.bf16.mxu0 %v2968
      %3098 = vmatmul.mubr.bf16.gmra.mrb[0].mxu0 %v2766
      %v3099 = vpop.f32.mrb[0].mxu0
      %v3100 = vadd.f32 0.0, %v3099
      %v3101 = vpop.f32.mrb[0].mxu0
      %v3102 = vpop.f32.mrb[0].mxu0
      %v3103 = vadd.f32 0.0, %v3102
      %v3104 = vpop.f32.mrb[0].mxu0
      %3105 = vmatprep.mubr.bf16.mxu0 %v2971
      %3106 = vmatmul.mubr.bf16.gmra.mrb[0].mxu0 %v2768
      %v3107 = vpop.f32.mrb[0].mxu0
      %v3108 = vadd.f32 0.0, %v3107
      %v3109 = vpop.f32.mrb[0].mxu0
      %v3110 = vpop.f32.mrb[0].mxu0
      %v3111 = vadd.f32 0.0, %v3110
      %v3112 = vpop.f32.mrb[0].mxu0
      %3113 = vmatprep.mubr.bf16.mxu0 %v2974
      %3114 = vmatmul.mubr.bf16.gmra.mrb[0].mxu0 %v2770
      %v3115 = vpop.f32.mrb[0].mxu0
      %v3116 = vadd.f32 0.0, %v3115
      %v3117 = vpop.f32.mrb[0].mxu0
      %v3118 = vpop.f32.mrb[0].mxu0
      %v3119 = vadd.f32 0.0, %v3118
      %v3120 = vpop.f32.mrb[0].mxu0
      %3121 = vmatprep.mubr.bf16.mxu0 %v2977
      %3122 = vmatmul.mubr.bf16.gmra.mrb[0].mxu0 %v2772
      %v3123 = vpop.f32.mrb[0].mxu0
      %v3124 = vadd.f32 0.0, %v3123
      %v3125 = vpop.f32.mrb[0].mxu0
      %v3126 = vpop.f32.mrb[0].mxu0
      %v3127 = vadd.f32 0.0, %v3126
      %v3128 = vpop.f32.mrb[0].mxu0
      %3129 = vmatprep.mubr.bf16.mxu0 %v2980
      %3130 = vmatmul.mubr.bf16.gmra.mrb[0].mxu0 %v2774
      %v3131 = vpop.f32.mrb[0].mxu0
      %v3132 = vadd.f32 0.0, %v3131
      %v3133 = vpop.f32.mrb[0].mxu0
      %v3134 = vpop.f32.mrb[0].mxu0
      %v3135 = vadd.f32 0.0, %v3134
      %v3136 = vpop.f32.mrb[0].mxu0
      %3137 = vmatprep.mubr.bf16.mxu0 %v2983
      %3138 = vmatmul.mubr.bf16.gmra.mrb[0].mxu0 %v2838
      %v3139 = vpop.f32.mrb[0].mxu0
      %v3140 = vadd.f32 0.0, %v3139
      %v3141 = vpop.f32.mrb[0].mxu0
      %v3142 = vpop.f32.mrb[0].mxu0
      %v3143 = vadd.f32 0.0, %v3142
      %v3144 = vpop.f32.mrb[0].mxu0
      %3145 = vdwg.mxu0
      %v3170 = vunpack.c.l.b16 %v2776
      %v3171 = vunpack.c.l.b16 %v2777
      %v3172 = vunpack.c.l.b16 %v2778
      %v3173 = vunpack.c.l.b16 %v2779
      %v3174 = vunpack.c.l.b16 %v2780
      %v3175 = vunpack.c.l.b16 %v2781
      %v3176 = vunpack.c.l.b16 %v2782
      %v3177 = vunpack.c.l.b16 %v2783
      %v3178 = vunpack.c.l.b16 %v2784
      %v3179 = vunpack.c.l.b16 %v2785
      %v3180 = vunpack.c.l.b16 %v2786
      %v3181 = vunpack.c.l.b16 %v2787
      %v3182 = vunpack.c.l.b16 %v2788
      %v3183 = vunpack.c.l.b16 %v2789
      %v3184 = vunpack.c.l.b16 %v2790
      %v3185 = vunpack.c.l.b16 %v2791
      %v3186 = vunpack.c.l.b16 %v2792
      %v3187 = vunpack.c.l.b16 %v2793
      %v3188 = vunpack.c.l.b16 %v2794
      %v3189 = vunpack.c.l.b16 %v2795
      %v3190 = vunpack.c.l.b16 %v2796
      %v3191 = vunpack.c.l.b16 %v2797
      %v3192 = vunpack.c.l.b16 %v2798
      %v3193 = vunpack.c.l.b16 %v2799
      %v3194 = vpack.c.b16 %v3171, %v3170
      %v3195 = vpack.c.b16 %v3173, %v3172
      %v3196 = vpack.c.b16 %v3175, %v3174
      %v3197 = vpack.c.b16 %v3177, %v3176
      %v3198 = vpack.c.b16 %v3179, %v3178
      %v3199 = vpack.c.b16 %v3181, %v3180
      %v3200 = vpack.c.b16 %v3183, %v3182
      %v3201 = vpack.c.b16 %v3185, %v3184
      %v3202 = vpack.c.b16 %v3187, %v3186
      %v3203 = vpack.c.b16 %v3189, %v3188
      %v3204 = vpack.c.b16 %v3191, %v3190
      %v3205 = vpack.c.b16 %v3193, %v3192
      %v3219 = vsel %vm812, %v2745, 0
      %3221 = vmatprep.subr.bf16.mxu0 0
      %3222 = vmatpush1.bf16.msra.mxu0 %v3194
      %3223 = vmatprep.subr.bf16.mxu0 0
      %3224 = vmatpush1.bf16.msra.mxu0 %v3195
      %3225 = vmatprep.subr.bf16.mxu0 0
      %3226 = vmatpush1.bf16.msra.mxu0 %v3196
      %3227 = vmatprep.subr.bf16.mxu0 0
      %3228 = vmatpush1.bf16.msra.mxu0 %v3197
      %3229 = vmatprep.subr.bf16.mxu0 0
      %3230 = vmatpush1.bf16.msra.mxu0 %v3198
      %3231 = vmatprep.subr.bf16.mxu0 0
      %3232 = vmatpush1.bf16.msra.mxu0 %v3199
      %3233 = vmatprep.subr.bf16.mxu0 0
      %3234 = vmatpush1.bf16.msra.mxu0 %v3200
      %3235 = vmatprep.subr.bf16.mxu0 0
      %3236 = vmatpush1.bf16.msra.mxu0 %v3201
      %3237 = vmatprep.subr.bf16.mxu0 0
      %3238 = vmatpush1.bf16.msra.mxu0 %v3202
      %3239 = vmatprep.subr.bf16.mxu0 0
      %3240 = vmatpush1.bf16.msra.mxu0 %v3203
      %3241 = vmatprep.subr.bf16.mxu0 0
      %3242 = vmatpush1.bf16.msra.mxu0 %v3204
      %3243 = vmatprep.subr.bf16.mxu0 0
      %3244 = vmatpush1.bf16.msra.mxu0 %v3205
      %3245 = vmatprep.subr.bf16.mxu0 0
      %3246 = vmatpush1.bf16.msra.mxu0 0
      %3247 = vmatprep.subr.bf16.mxu0 0
      %3248 = vmatpush1.bf16.msra.mxu0 0
      %3249 = vmatprep.subr.bf16.mxu0 0
      %3250 = vmatpush1.bf16.msra.mxu0 0
      %3251 = vmatprep.subr.bf16.mxu0 0
      %3252 = vmatpush1.bf16.msra.mxu0 0
      %3253 = vmatprep.mubr.bf16.mxu0 %v3219
      %3254 = vmatmul.mubr.bf16.gmra.mrb[0].mxu0 %v2744
      %v3255 = vpop.f32.mrb[0].mxu0
      %v3256 = vadd.f32 %v3020, %v3255
      %v3257 = vpop.f32.mrb[0].mxu0
      %v3258 = vpop.f32.mrb[0].mxu0
      %v3259 = vadd.f32 %v3023, %v3258
      %v3260 = vpop.f32.mrb[0].mxu0
      %3261 = vmatprep.mubr.bf16.mxu0 %v2938
      %3262 = vmatmul.mubr.bf16.gmra.mrb[0].mxu0 %v2746
      %v3263 = vpop.f32.mrb[0].mxu0
      %v3264 = vadd.f32 %v3028, %v3263
      %v3265 = vpop.f32.mrb[0].mxu0
      %v3266 = vpop.f32.mrb[0].mxu0
      %v3267 = vadd.f32 %v3031, %v3266
      %v3268 = vpop.f32.mrb[0].mxu0
      %3269 = vmatprep.mubr.bf16.mxu0 %v2941
      %3270 = vmatmul.mubr.bf16.gmra.mrb[0].mxu0 %v2748
      %v3271 = vpop.f32.mrb[0].mxu0
      %v3272 = vadd.f32 %v3036, %v3271
      %v3273 = vpop.f32.mrb[0].mxu0
      %v3274 = vpop.f32.mrb[0].mxu0
      %v3275 = vadd.f32 %v3039, %v3274
      %v3276 = vpop.f32.mrb[0].mxu0
      %3277 = vmatprep.mubr.bf16.mxu0 %v2944
      %3278 = vmatmul.mubr.bf16.gmra.mrb[0].mxu0 %v2750
      %v3279 = vpop.f32.mrb[0].mxu0
      %v3280 = vadd.f32 %v3044, %v3279
      %v3281 = vpop.f32.mrb[0].mxu0
      %v3282 = vpop.f32.mrb[0].mxu0
      %v3283 = vadd.f32 %v3047, %v3282
      %v3284 = vpop.f32.mrb[0].mxu0
      %3285 = vmatprep.mubr.bf16.mxu0 %v2947
      %3286 = vmatmul.mubr.bf16.gmra.mrb[0].mxu0 %v2752
      %v3287 = vpop.f32.mrb[0].mxu0
      %v3288 = vadd.f32 %v3052, %v3287
      %v3289 = vpop.f32.mrb[0].mxu0
      %v3290 = vpop.f32.mrb[0].mxu0
      %v3291 = vadd.f32 %v3055, %v3290
      %v3292 = vpop.f32.mrb[0].mxu0
      %3293 = vmatprep.mubr.bf16.mxu0 %v2950
      %3294 = vmatmul.mubr.bf16.gmra.mrb[0].mxu0 %v2754
      %v3295 = vpop.f32.mrb[0].mxu0
      %v3296 = vadd.f32 %v3060, %v3295
      %v3297 = vpop.f32.mrb[0].mxu0
      %v3298 = vpop.f32.mrb[0].mxu0
      %v3299 = vadd.f32 %v3063, %v3298
      %v3300 = vpop.f32.mrb[0].mxu0
      %3301 = vmatprep.mubr.bf16.mxu0 %v2953
      %3302 = vmatmul.mubr.bf16.gmra.mrb[0].mxu0 %v2756
      %v3303 = vpop.f32.mrb[0].mxu0
      %v3304 = vadd.f32 %v3068, %v3303
      %v3305 = vpop.f32.mrb[0].mxu0
      %v3306 = vpop.f32.mrb[0].mxu0
      %v3307 = vadd.f32 %v3071, %v3306
      %v3308 = vpop.f32.mrb[0].mxu0
      %3309 = vmatprep.mubr.bf16.mxu0 %v2956
      %3310 = vmatmul.mubr.bf16.gmra.mrb[0].mxu0 %v2758
      %v3311 = vpop.f32.mrb[0].mxu0
      %v3312 = vadd.f32 %v3076, %v3311
      %v3313 = vpop.f32.mrb[0].mxu0
      %v3314 = vpop.f32.mrb[0].mxu0
      %v3315 = vadd.f32 %v3079, %v3314
      %v3316 = vpop.f32.mrb[0].mxu0
      %3317 = vmatprep.mubr.bf16.mxu0 %v2959
      %3318 = vmatmul.mubr.bf16.gmra.mrb[0].mxu0 %v2760
      %v3319 = vpop.f32.mrb[0].mxu0
      %v3320 = vadd.f32 %v3084, %v3319
      %v3321 = vpop.f32.mrb[0].mxu0
      %v3322 = vpop.f32.mrb[0].mxu0
      %v3323 = vadd.f32 %v3087, %v3322
      %v3324 = vpop.f32.mrb[0].mxu0
      %3325 = vmatprep.mubr.bf16.mxu0 %v2962
      %3326 = vmatmul.mubr.bf16.gmra.mrb[0].mxu0 %v2762
      %v3327 = vpop.f32.mrb[0].mxu0
      %v3328 = vadd.f32 %v3092, %v3327
      %v3329 = vpop.f32.mrb[0].mxu0
      %v3330 = vpop.f32.mrb[0].mxu0
      %v3331 = vadd.f32 %v3095, %v3330
      %v3332 = vpop.f32.mrb[0].mxu0
      %3333 = vmatprep.mubr.bf16.mxu0 %v2965
      %3334 = vmatmul.mubr.bf16.gmra.mrb[0].mxu0 %v2764
      %v3335 = vpop.f32.mrb[0].mxu0
      %v3336 = vadd.f32 %v3100, %v3335
      %v3337 = vpop.f32.mrb[0].mxu0
      %v3338 = vpop.f32.mrb[0].mxu0
      %v3339 = vadd.f32 %v3103, %v3338
      %v3340 = vpop.f32.mrb[0].mxu0
      %3341 = vmatprep.mubr.bf16.mxu0 %v2968
      %3342 = vmatmul.mubr.bf16.gmra.mrb[0].mxu0 %v2766
      %v3343 = vpop.f32.mrb[0].mxu0
      %v3344 = vadd.f32 %v3108, %v3343
      %v3345 = vpop.f32.mrb[0].mxu0
      %v3346 = vpop.f32.mrb[0].mxu0
      %v3347 = vadd.f32 %v3111, %v3346
      %v3348 = vpop.f32.mrb[0].mxu0
      %3349 = vmatprep.mubr.bf16.mxu0 %v2971
      %3350 = vmatmul.mubr.bf16.gmra.mrb[0].mxu0 %v2768
      %v3351 = vpop.f32.mrb[0].mxu0
      %v3352 = vadd.f32 %v3116, %v3351
      %v3353 = vpop.f32.mrb[0].mxu0
      %v3354 = vpop.f32.mrb[0].mxu0
      %v3355 = vadd.f32 %v3119, %v3354
      %v3356 = vpop.f32.mrb[0].mxu0
      %3357 = vmatprep.mubr.bf16.mxu0 %v2974
      %3358 = vmatmul.mubr.bf16.gmra.mrb[0].mxu0 %v2770
      %v3359 = vpop.f32.mrb[0].mxu0
      %v3360 = vadd.f32 %v3124, %v3359
      %v3361 = vpop.f32.mrb[0].mxu0
      %v3362 = vpop.f32.mrb[0].mxu0
      %v3363 = vadd.f32 %v3127, %v3362
      %v3364 = vpop.f32.mrb[0].mxu0
      %3365 = vmatprep.mubr.bf16.mxu0 %v2977
      %3366 = vmatmul.mubr.bf16.gmra.mrb[0].mxu0 %v2772
      %v3367 = vpop.f32.mrb[0].mxu0
      %v3368 = vadd.f32 %v3132, %v3367
      %v3369 = vpop.f32.mrb[0].mxu0
      %v3370 = vpop.f32.mrb[0].mxu0
      %v3371 = vadd.f32 %v3135, %v3370
      %v3372 = vpop.f32.mrb[0].mxu0
      %3373 = vmatprep.mubr.bf16.mxu0 %v2980
      %3374 = vmatmul.mubr.bf16.gmra.mrb[0].mxu0 %v2774
      %v3375 = vpop.f32.mrb[0].mxu0
      %v3376 = vadd.f32 %v3140, %v3375
      %v3377 = vpop.f32.mrb[0].mxu0
      %v3378 = vpop.f32.mrb[0].mxu0
      %v3379 = vadd.f32 %v3143, %v3378
      %v3380 = vpop.f32.mrb[0].mxu0
      %3381 = vdwg.mxu0
      %s3382 = scalar_lea.vmem %s5, 192
      %v3383 = vld [vmem:[%s3382] sm:$0xf]
      %v3384 = vld [vmem:[%s3382 + $0x4] sm:$0xf]
      %v3385 = vld [vmem:[%s3382 + $0x8] sm:$0xf]
      %v3386 = vld [vmem:[%s3382 + $0xc] sm:$0xf]
      %v3387 = vld [vmem:[%s3382 + $0x10] sm:$0xf]
      %v3388 = vld [vmem:[%s3382 + $0x14] sm:$0xf]
      %v3389 = vld [vmem:[%s3382 + $0x18] sm:$0xf]
      %v3390 = vld [vmem:[%s3382 + $0x1c] sm:$0xf]
      %v3391 = vld [vmem:[%s3382 + $0x20] sm:$0xf]
      %v3392 = vld [vmem:[%s3382 + $0x24] sm:$0xf]
      %v3393 = vld [vmem:[%s3382 + $0x28] sm:$0xf]
      %v3394 = vld [vmem:[%s3382 + $0x2c] sm:$0xf]
      %v3395 = vld [vmem:[%s3382 + $0x30] sm:$0xf]
      %v3396 = vld [vmem:[%s3382 + $0x34] sm:$0xf]
      %v3397 = vld [vmem:[%s3382 + $0x38] sm:$0xf]
      %v3398 = vld [vmem:[%s3382 + $0x3c] sm:$0xf]
      %v3399 = vld [vmem:[%s3382 + $0x40] sm:$0xf]
      %v3400 = vld [vmem:[%s3382 + $0x44] sm:$0xf]
      %v3401 = vld [vmem:[%s3382 + $0x48] sm:$0xf]
      %v3402 = vld [vmem:[%s3382 + $0x4c] sm:$0xf]
      %v3403 = vld [vmem:[%s3382 + $0x50] sm:$0xf]
      %v3404 = vld [vmem:[%s3382 + $0x54] sm:$0xf]
      %v3405 = vld [vmem:[%s3382 + $0x58] sm:$0xf]
      %v3406 = vld [vmem:[%s3382 + $0x5c] sm:$0xf]
      %v3431 = vunpack.c.l.b16 %v3383
      %v3432 = vunpack.c.l.b16 %v3384
      %v3433 = vunpack.c.l.b16 %v3385
      %v3434 = vunpack.c.l.b16 %v3386
      %v3435 = vunpack.c.l.b16 %v3387
      %v3436 = vunpack.c.l.b16 %v3388
      %v3437 = vunpack.c.l.b16 %v3389
      %v3438 = vunpack.c.l.b16 %v3390
      %v3439 = vunpack.c.l.b16 %v3391
      %v3440 = vunpack.c.l.b16 %v3392
      %v3441 = vunpack.c.l.b16 %v3393
      %v3442 = vunpack.c.l.b16 %v3394
      %v3443 = vunpack.c.l.b16 %v3395
      %v3444 = vunpack.c.l.b16 %v3396
      %v3445 = vunpack.c.l.b16 %v3397
      %v3446 = vunpack.c.l.b16 %v3398
      %v3447 = vunpack.c.l.b16 %v3399
      %v3448 = vunpack.c.l.b16 %v3400
      %v3449 = vunpack.c.l.b16 %v3401
      %v3450 = vunpack.c.l.b16 %v3402
      %v3451 = vunpack.c.l.b16 %v3403
      %v3452 = vunpack.c.l.b16 %v3404
      %v3453 = vunpack.c.l.b16 %v3405
      %v3454 = vunpack.c.l.b16 %v3406
      %v3455 = vpack.c.b16 %v3432, %v3431
      %v3456 = vpack.c.b16 %v3434, %v3433
      %v3457 = vpack.c.b16 %v3436, %v3435
      %v3458 = vpack.c.b16 %v3438, %v3437
      %v3459 = vpack.c.b16 %v3440, %v3439
      %v3460 = vpack.c.b16 %v3442, %v3441
      %v3461 = vpack.c.b16 %v3444, %v3443
      %v3462 = vpack.c.b16 %v3446, %v3445
      %v3463 = vpack.c.b16 %v3448, %v3447
      %v3464 = vpack.c.b16 %v3450, %v3449
      %v3465 = vpack.c.b16 %v3452, %v3451
      %v3466 = vpack.c.b16 %v3454, %v3453
      %3479 = vmatprep.subr.bf16.mxu0 0
      %3480 = vmatpush1.bf16.msra.mxu0 %v3455
      %3481 = vmatprep.subr.bf16.mxu0 0
      %3482 = vmatpush1.bf16.msra.mxu0 %v3456
      %3483 = vmatprep.subr.bf16.mxu0 0
      %3484 = vmatpush1.bf16.msra.mxu0 %v3457
      %3485 = vmatprep.subr.bf16.mxu0 0
      %3486 = vmatpush1.bf16.msra.mxu0 %v3458
      %3487 = vmatprep.subr.bf16.mxu0 0
      %3488 = vmatpush1.bf16.msra.mxu0 %v3459
      %3489 = vmatprep.subr.bf16.mxu0 0
      %3490 = vmatpush1.bf16.msra.mxu0 %v3460
      %3491 = vmatprep.subr.bf16.mxu0 0
      %3492 = vmatpush1.bf16.msra.mxu0 %v3461
      %3493 = vmatprep.subr.bf16.mxu0 0
      %3494 = vmatpush1.bf16.msra.mxu0 %v3462
      %3495 = vmatprep.subr.bf16.mxu0 0
      %3496 = vmatpush1.bf16.msra.mxu0 %v3463
      %3497 = vmatprep.subr.bf16.mxu0 0
      %3498 = vmatpush1.bf16.msra.mxu0 %v3464
      %3499 = vmatprep.subr.bf16.mxu0 0
      %3500 = vmatpush1.bf16.msra.mxu0 %v3465
      %3501 = vmatprep.subr.bf16.mxu0 0
      %3502 = vmatpush1.bf16.msra.mxu0 %v3466
      %3503 = vmatprep.subr.bf16.mxu0 0
      %3504 = vmatpush1.bf16.msra.mxu0 0
      %3505 = vmatprep.subr.bf16.mxu0 0
      %3506 = vmatpush1.bf16.msra.mxu0 0
      %3507 = vmatprep.subr.bf16.mxu0 0
      %3508 = vmatpush1.bf16.msra.mxu0 0
      %3509 = vmatprep.subr.bf16.mxu0 0
      %3510 = vmatpush1.bf16.msra.mxu0 0
      %3511 = vmatprep.mubr.bf16.mxu0 %v2941
      %3512 = vmatmul.mubr.bf16.gmra.mrb[0].mxu0 %v2748
      %v3513 = vpop.f32.mrb[0].mxu0
      %v3514 = vadd.f32 0.0, %v3513
      %v3515 = vpop.f32.mrb[0].mxu0
      %v3516 = vpop.f32.mrb[0].mxu0
      %v3517 = vadd.f32 0.0, %v3516
      %v3518 = vpop.f32.mrb[0].mxu0
      %3519 = vmatprep.mubr.bf16.mxu0 %v2944
      %3520 = vmatmul.mubr.bf16.gmra.mrb[0].mxu0 %v2750
      %v3521 = vpop.f32.mrb[0].mxu0
      %v3522 = vadd.f32 0.0, %v3521
      %v3523 = vpop.f32.mrb[0].mxu0
      %v3524 = vpop.f32.mrb[0].mxu0
      %v3525 = vadd.f32 0.0, %v3524
      %v3526 = vpop.f32.mrb[0].mxu0
      %3527 = vmatprep.mubr.bf16.mxu0 %v2947
      %3528 = vmatmul.mubr.bf16.gmra.mrb[0].mxu0 %v2752
      %v3529 = vpop.f32.mrb[0].mxu0
      %v3530 = vadd.f32 0.0, %v3529
      %v3531 = vpop.f32.mrb[0].mxu0
      %v3532 = vpop.f32.mrb[0].mxu0
      %v3533 = vadd.f32 0.0, %v3532
      %v3534 = vpop.f32.mrb[0].mxu0
      %3535 = vmatprep.mubr.bf16.mxu0 %v2950
      %3536 = vmatmul.mubr.bf16.gmra.mrb[0].mxu0 %v2754
      %v3537 = vpop.f32.mrb[0].mxu0
      %v3538 = vadd.f32 0.0, %v3537
      %v3539 = vpop.f32.mrb[0].mxu0
      %v3540 = vpop.f32.mrb[0].mxu0
      %v3541 = vadd.f32 0.0, %v3540
      %v3542 = vpop.f32.mrb[0].mxu0
      %3543 = vmatprep.mubr.bf16.mxu0 %v2953
      %3544 = vmatmul.mubr.bf16.gmra.mrb[0].mxu0 %v2756
      %v3545 = vpop.f32.mrb[0].mxu0
      %v3546 = vadd.f32 0.0, %v3545
      %v3547 = vpop.f32.mrb[0].mxu0
      %v3548 = vpop.f32.mrb[0].mxu0
      %v3549 = vadd.f32 0.0, %v3548
      %v3550 = vpop.f32.mrb[0].mxu0
      %3551 = vmatprep.mubr.bf16.mxu0 %v2956
      %3552 = vmatmul.mubr.bf16.gmra.mrb[0].mxu0 %v2758
      %v3553 = vpop.f32.mrb[0].mxu0
      %v3554 = vadd.f32 0.0, %v3553
      %v3555 = vpop.f32.mrb[0].mxu0
      %v3556 = vpop.f32.mrb[0].mxu0
      %v3557 = vadd.f32 0.0, %v3556
      %v3558 = vpop.f32.mrb[0].mxu0
      %3559 = vmatprep.mubr.bf16.mxu0 %v2959
      %3560 = vmatmul.mubr.bf16.gmra.mrb[0].mxu0 %v2760
      %v3561 = vpop.f32.mrb[0].mxu0
      %v3562 = vadd.f32 0.0, %v3561
      %v3563 = vpop.f32.mrb[0].mxu0
      %v3564 = vpop.f32.mrb[0].mxu0
      %v3565 = vadd.f32 0.0, %v3564
      %v3566 = vpop.f32.mrb[0].mxu0
      %3567 = vmatprep.mubr.bf16.mxu0 %v2962
      %3568 = vmatmul.mubr.bf16.gmra.mrb[0].mxu0 %v2762
      %v3569 = vpop.f32.mrb[0].mxu0
      %v3570 = vadd.f32 0.0, %v3569
      %v3571 = vpop.f32.mrb[0].mxu0
      %v3572 = vpop.f32.mrb[0].mxu0
      %v3573 = vadd.f32 0.0, %v3572
      %v3574 = vpop.f32.mrb[0].mxu0
      %3575 = vmatprep.mubr.bf16.mxu0 %v2965
      %3576 = vmatmul.mubr.bf16.gmra.mrb[0].mxu0 %v2764
      %v3577 = vpop.f32.mrb[0].mxu0
      %v3578 = vadd.f32 0.0, %v3577
      %v3579 = vpop.f32.mrb[0].mxu0
      %v3580 = vpop.f32.mrb[0].mxu0
      %v3581 = vadd.f32 0.0, %v3580
      %v3582 = vpop.f32.mrb[0].mxu0
      %3583 = vmatprep.mubr.bf16.mxu0 %v2968
      %3584 = vmatmul.mubr.bf16.gmra.mrb[0].mxu0 %v2766
      %v3585 = vpop.f32.mrb[0].mxu0
      %v3586 = vadd.f32 0.0, %v3585
      %v3587 = vpop.f32.mrb[0].mxu0
      %v3588 = vpop.f32.mrb[0].mxu0
      %v3589 = vadd.f32 0.0, %v3588
      %v3590 = vpop.f32.mrb[0].mxu0
      %3591 = vmatprep.mubr.bf16.mxu0 %v2971
      %3592 = vmatmul.mubr.bf16.gmra.mrb[0].mxu0 %v2768
      %v3593 = vpop.f32.mrb[0].mxu0
      %v3594 = vadd.f32 0.0, %v3593
      %v3595 = vpop.f32.mrb[0].mxu0
      %v3596 = vpop.f32.mrb[0].mxu0
      %v3597 = vadd.f32 0.0, %v3596
      %v3598 = vpop.f32.mrb[0].mxu0
      %3599 = vmatprep.mubr.bf16.mxu0 %v2974
      %3600 = vmatmul.mubr.bf16.gmra.mrb[0].mxu0 %v2770
      %v3601 = vpop.f32.mrb[0].mxu0
      %v3602 = vadd.f32 0.0, %v3601
      %v3603 = vpop.f32.mrb[0].mxu0
      %v3604 = vpop.f32.mrb[0].mxu0
      %v3605 = vadd.f32 0.0, %v3604
      %v3606 = vpop.f32.mrb[0].mxu0
      %3607 = vmatprep.mubr.bf16.mxu0 %v2977
      %3608 = vmatmul.mubr.bf16.gmra.mrb[0].mxu0 %v2772
      %v3609 = vpop.f32.mrb[0].mxu0
      %v3610 = vadd.f32 0.0, %v3609
      %v3611 = vpop.f32.mrb[0].mxu0
      %v3612 = vpop.f32.mrb[0].mxu0
      %v3613 = vadd.f32 0.0, %v3612
      %v3614 = vpop.f32.mrb[0].mxu0
      %3615 = vmatprep.mubr.bf16.mxu0 %v2980
      %3616 = vmatmul.mubr.bf16.gmra.mrb[0].mxu0 %v2774
      %v3617 = vpop.f32.mrb[0].mxu0
      %v3618 = vadd.f32 0.0, %v3617
      %v3619 = vpop.f32.mrb[0].mxu0
      %v3620 = vpop.f32.mrb[0].mxu0
      %v3621 = vadd.f32 0.0, %v3620
      %v3622 = vpop.f32.mrb[0].mxu0
      %3623 = vmatprep.mubr.bf16.mxu0 %v2983
      %3624 = vmatmul.mubr.bf16.gmra.mrb[0].mxu0 %v2838
      %v3625 = vpop.f32.mrb[0].mxu0
      %v3626 = vadd.f32 0.0, %v3625
      %v3627 = vpop.f32.mrb[0].mxu0
      %v3628 = vpop.f32.mrb[0].mxu0
      %v3629 = vadd.f32 0.0, %v3628
      %v3630 = vpop.f32.mrb[0].mxu0
      %3631 = vmatprep.mubr.bf16.mxu0 %v3219
      %3632 = vmatmul.mubr.bf16.gmra.mrb[0].mxu0 %v2744
      %v3633 = vpop.f32.mrb[0].mxu0
      %v3634 = vadd.f32 0.0, %v3633
      %v3635 = vpop.f32.mrb[0].mxu0
      %v3636 = vpop.f32.mrb[0].mxu0
      %v3637 = vadd.f32 0.0, %v3636
      %v3638 = vpop.f32.mrb[0].mxu0
      %3639 = vdwg.mxu0
      %v3640 = vadd.f32 %v3256, %v3514
      %v3641 = vadd.f32 %v3259, %v3517
      %v3642 = vadd.f32 %v3264, %v3522
      %v3643 = vadd.f32 %v3267, %v3525
      %v3644 = vadd.f32 %v3272, %v3530
      %v3645 = vadd.f32 %v3275, %v3533
      %v3646 = vadd.f32 %v3280, %v3538
      %v3647 = vadd.f32 %v3283, %v3541
      %v3648 = vadd.f32 %v3288, %v3546
      %v3649 = vadd.f32 %v3291, %v3549
      %v3650 = vadd.f32 %v3296, %v3554
      %v3651 = vadd.f32 %v3299, %v3557
      %v3652 = vadd.f32 %v3304, %v3562
      %v3653 = vadd.f32 %v3307, %v3565
      %v3654 = vadd.f32 %v3312, %v3570
      %v3655 = vadd.f32 %v3315, %v3573
      %v3656 = vadd.f32 %v3320, %v3578
      %v3657 = vadd.f32 %v3323, %v3581
      %v3658 = vadd.f32 %v3328, %v3586
      %v3659 = vadd.f32 %v3331, %v3589
      %v3660 = vadd.f32 %v3336, %v3594
      %v3661 = vadd.f32 %v3339, %v3597
      %v3662 = vadd.f32 %v3344, %v3602
      %v3663 = vadd.f32 %v3347, %v3605
      %v3664 = vadd.f32 %v3352, %v3610
      %v3665 = vadd.f32 %v3355, %v3613
      %v3666 = vadd.f32 %v3360, %v3618
      %v3667 = vadd.f32 %v3363, %v3621
      %v3668 = vadd.f32 %v3368, %v3626
      %v3669 = vadd.f32 %v3371, %v3629
      %v3670 = vadd.f32 %v3376, %v3634
      %v3671 = vadd.f32 %v3379, %v3637
      %v3672 = vld [vmem:[%s6] sm:$0x1]
      %v3674 = vlaneseq
      %v3675 = vshrl.u32 %v3674, 7
      %v3676 = vsub.s32 0, %v3675
      %v3677 = vrot.slane %v3672, %v3676
      %v3679 = vadd.f32 %v3640, %v3677
      %v3680 = vadd.f32 %v3641, %v3677
      %v3681 = vadd.f32 %v3642, %v3677
      %v3682 = vadd.f32 %v3643, %v3677
      %v3683 = vadd.f32 %v3644, %v3677
      %v3684 = vadd.f32 %v3645, %v3677
      %v3685 = vadd.f32 %v3646, %v3677
      %v3686 = vadd.f32 %v3647, %v3677
      %v3687 = vadd.f32 %v3648, %v3677
      %v3688 = vadd.f32 %v3649, %v3677
      %v3689 = vadd.f32 %v3650, %v3677
      %v3690 = vadd.f32 %v3651, %v3677
      %v3691 = vadd.f32 %v3652, %v3677
      %v3692 = vadd.f32 %v3653, %v3677
      %v3693 = vadd.f32 %v3654, %v3677
      %v3694 = vadd.f32 %v3655, %v3677
      %v3695 = vadd.f32 %v3656, %v3677
      %v3696 = vadd.f32 %v3657, %v3677
      %v3697 = vadd.f32 %v3658, %v3677
      %v3698 = vadd.f32 %v3659, %v3677
      %v3699 = vadd.f32 %v3660, %v3677
      %v3700 = vadd.f32 %v3661, %v3677
      %v3701 = vadd.f32 %v3662, %v3677
      %v3702 = vadd.f32 %v3663, %v3677
      %v3703 = vadd.f32 %v3664, %v3677
      %v3704 = vadd.f32 %v3665, %v3677
      %v3705 = vadd.f32 %v3666, %v3677
      %v3706 = vadd.f32 %v3667, %v3677
      %v3707 = vadd.f32 %v3668, %v3677
      %v3708 = vadd.f32 %v3669, %v3677
      %v3709 = vadd.f32 %v3670, %v3677
      %v3710 = vadd.f32 %v3671, %v3677
      %s3711 = sld [smem:[#allocation2]]
      %v3712 = vlaneseq
      %v3713 = vand.u32 %v3712, 127
      %vm3714 = vcmp.ge.s32.totalorder %v3713, 2
      %vm3715 = vcmp.lt.s32.totalorder %v3713, 6
      %vm3716 = vmand %vm3714, %vm3715
      %v3717 = vstv %s3711
      %v3718 = vsel %vm3716, %v3717, 1.0
      %v3719 = vmul.f32 %v3679, %v3718
      %v3720 = vmul.f32 %v3680, %v3718
      %v3721 = vmul.f32 %v3681, %v3718
      %v3722 = vmul.f32 %v3682, %v3718
      %v3723 = vmul.f32 %v3683, %v3718
      %v3724 = vmul.f32 %v3684, %v3718
      %v3725 = vmul.f32 %v3685, %v3718
      %v3726 = vmul.f32 %v3686, %v3718
      %v3727 = vmul.f32 %v3687, %v3718
      %v3728 = vmul.f32 %v3688, %v3718
      %v3729 = vmul.f32 %v3689, %v3718
      %v3730 = vmul.f32 %v3690, %v3718
      %v3731 = vmul.f32 %v3691, %v3718
      %v3732 = vmul.f32 %v3692, %v3718
      %v3733 = vmul.f32 %v3693, %v3718
      %v3734 = vmul.f32 %v3694, %v3718
      %v3735 = vmul.f32 %v3695, %v3718
      %v3736 = vmul.f32 %v3696, %v3718
      %v3737 = vmul.f32 %v3697, %v3718
      %v3738 = vmul.f32 %v3698, %v3718
      %v3739 = vmul.f32 %v3699, %v3718
      %v3740 = vmul.f32 %v3700, %v3718
      %v3741 = vmul.f32 %v3701, %v3718
      %v3742 = vmul.f32 %v3702, %v3718
      %v3743 = vmul.f32 %v3703, %v3718
      %v3744 = vmul.f32 %v3704, %v3718
      %v3745 = vmul.f32 %v3705, %v3718
      %v3746 = vmul.f32 %v3706, %v3718
      %v3747 = vmul.f32 %v3707, %v3718
      %v3748 = vmul.f32 %v3708, %v3718
      %v3749 = vmul.f32 %v3709, %v3718
      %v3750 = vmul.f32 %v3710, %v3718
      %v3751 = vmul.f32 %v3719, 1.442695
      %v3752 = vpow.pop %v3751
      %v3753 = vmul.f32 %v3720, 1.442695
      %v3754 = vpow.pop %v3753
      %v3755 = vmul.f32 %v3721, 1.442695
      %v3756 = vpow.pop %v3755
      %v3757 = vmul.f32 %v3722, 1.442695
      %v3758 = vpow.pop %v3757
      %v3759 = vmul.f32 %v3723, 1.442695
      %v3760 = vpow.pop %v3759
      %v3761 = vmul.f32 %v3724, 1.442695
      %v3762 = vpow.pop %v3761
      %v3763 = vmul.f32 %v3725, 1.442695
      %v3764 = vpow.pop %v3763
      %v3765 = vmul.f32 %v3726, 1.442695
      %v3766 = vpow.pop %v3765
      %v3767 = vmul.f32 %v3727, 1.442695
      %v3768 = vpow.pop %v3767
      %v3769 = vmul.f32 %v3728, 1.442695
      %v3770 = vpow.pop %v3769
      %v3771 = vmul.f32 %v3729, 1.442695
      %v3772 = vpow.pop %v3771
      %v3773 = vmul.f32 %v3730, 1.442695
      %v3774 = vpow.pop %v3773
      %v3775 = vmul.f32 %v3731, 1.442695
      %v3776 = vpow.pop %v3775
      %v3777 = vmul.f32 %v3732, 1.442695
      %v3778 = vpow.pop %v3777
      %v3779 = vmul.f32 %v3733, 1.442695
      %v3780 = vpow.pop %v3779
      %v3781 = vmul.f32 %v3734, 1.442695
      %v3782 = vpow.pop %v3781
      %v3783 = vmul.f32 %v3735, 1.442695
      %v3784 = vpow.pop %v3783
      %v3785 = vmul.f32 %v3736, 1.442695
      %v3786 = vpow.pop %v3785
      %v3787 = vmul.f32 %v3737, 1.442695
      %v3788 = vpow.pop %v3787
      %v3789 = vmul.f32 %v3738, 1.442695
      %v3790 = vpow.pop %v3789
      %v3791 = vmul.f32 %v3739, 1.442695
      %v3792 = vpow.pop %v3791
      %v3793 = vmul.f32 %v3740, 1.442695
      %v3794 = vpow.pop %v3793
      %v3795 = vmul.f32 %v3741, 1.442695
      %v3796 = vpow.pop %v3795
      %v3797 = vmul.f32 %v3742, 1.442695
      %v3798 = vpow.pop %v3797
      %v3799 = vmul.f32 %v3743, 1.442695
      %v3800 = vpow.pop %v3799
      %v3801 = vmul.f32 %v3744, 1.442695
      %v3802 = vpow.pop %v3801
      %v3803 = vmul.f32 %v3745, 1.442695
      %v3804 = vpow.pop %v3803
      %v3805 = vmul.f32 %v3746, 1.442695
      %v3806 = vpow.pop %v3805
      %v3807 = vmul.f32 %v3747, 1.442695
      %v3808 = vpow.pop %v3807
      %v3809 = vmul.f32 %v3748, 1.442695
      %v3810 = vpow.pop %v3809
      %v3811 = vmul.f32 %v3749, 1.442695
      %v3812 = vpow.pop %v3811
      %v3813 = vmul.f32 %v3750, 1.442695
      %v3814 = vpow.pop %v3813
      %v3815 = vsel %vm3716, %v3752, %v3719
      %v3816 = vsel %vm3716, %v3754, %v3720
      %v3817 = vsel %vm3716, %v3756, %v3721
      %v3818 = vsel %vm3716, %v3758, %v3722
      %v3819 = vsel %vm3716, %v3760, %v3723
      %v3820 = vsel %vm3716, %v3762, %v3724
      %v3821 = vsel %vm3716, %v3764, %v3725
      %v3822 = vsel %vm3716, %v3766, %v3726
      %v3823 = vsel %vm3716, %v3768, %v3727
      %v3824 = vsel %vm3716, %v3770, %v3728
      %v3825 = vsel %vm3716, %v3772, %v3729
      %v3826 = vsel %vm3716, %v3774, %v3730
      %v3827 = vsel %vm3716, %v3776, %v3731
      %v3828 = vsel %vm3716, %v3778, %v3732
      %v3829 = vsel %vm3716, %v3780, %v3733
      %v3830 = vsel %vm3716, %v3782, %v3734
      %v3831 = vsel %vm3716, %v3784, %v3735
      %v3832 = vsel %vm3716, %v3786, %v3736
      %v3833 = vsel %vm3716, %v3788, %v3737
      %v3834 = vsel %vm3716, %v3790, %v3738
      %v3835 = vsel %vm3716, %v3792, %v3739
      %v3836 = vsel %vm3716, %v3794, %v3740
      %v3837 = vsel %vm3716, %v3796, %v3741
      %v3838 = vsel %vm3716, %v3798, %v3742
      %v3839 = vsel %vm3716, %v3800, %v3743
      %v3840 = vsel %vm3716, %v3802, %v3744
      %v3841 = vsel %vm3716, %v3804, %v3745
      %v3842 = vsel %vm3716, %v3806, %v3746
      %v3843 = vsel %vm3716, %v3808, %v3747
      %v3844 = vsel %vm3716, %v3810, %v3748
      %v3845 = vsel %vm3716, %v3812, %v3749
      %v3846 = vsel %vm3716, %v3814, %v3750
      %vm3847 = vcmask 64512
      %3848 = vst.msk [vmem:[%s306] sm:$0xff] %vm3847, %v3815
      %3849 = vst.msk [vmem:[%s306 + $0x8] sm:$0xff] %vm3847, %v3816
      %3850 = vst.msk [vmem:[%s306 + $0x10] sm:$0xff] %vm3847, %v3817
      %3851 = vst.msk [vmem:[%s306 + $0x18] sm:$0xff] %vm3847, %v3818
      %3852 = vst.msk [vmem:[%s306 + $0x20] sm:$0xff] %vm3847, %v3819
      %3853 = vst.msk [vmem:[%s306 + $0x28] sm:$0xff] %vm3847, %v3820
      %3854 = vst.msk [vmem:[%s306 + $0x30] sm:$0xff] %vm3847, %v3821
      %3855 = vst.msk [vmem:[%s306 + $0x38] sm:$0xff] %vm3847, %v3822
      %3856 = vst.msk [vmem:[%s306 + $0x40] sm:$0xff] %vm3847, %v3823
      %3857 = vst.msk [vmem:[%s306 + $0x48] sm:$0xff] %vm3847, %v3824
      %3858 = vst.msk [vmem:[%s306 + $0x50] sm:$0xff] %vm3847, %v3825
      %3859 = vst.msk [vmem:[%s306 + $0x58] sm:$0xff] %vm3847, %v3826
      %3860 = vst.msk [vmem:[%s306 + $0x60] sm:$0xff] %vm3847, %v3827
      %3861 = vst.msk [vmem:[%s306 + $0x68] sm:$0xff] %vm3847, %v3828
      %3862 = vst.msk [vmem:[%s306 + $0x70] sm:$0xff] %vm3847, %v3829
      %3863 = vst.msk [vmem:[%s306 + $0x78] sm:$0xff] %vm3847, %v3830
      %3864 = vst.msk [vmem:[%s306 + $0x80] sm:$0xff] %vm3847, %v3831
      %3865 = vst.msk [vmem:[%s306 + $0x88] sm:$0xff] %vm3847, %v3832
      %3866 = vst.msk [vmem:[%s306 + $0x90] sm:$0xff] %vm3847, %v3833
      %3867 = vst.msk [vmem:[%s306 + $0x98] sm:$0xff] %vm3847, %v3834
      %3868 = vst.msk [vmem:[%s306 + $0xa0] sm:$0xff] %vm3847, %v3835
      %3869 = vst.msk [vmem:[%s306 + $0xa8] sm:$0xff] %vm3847, %v3836
      %3870 = vst.msk [vmem:[%s306 + $0xb0] sm:$0xff] %vm3847, %v3837
      %3871 = vst.msk [vmem:[%s306 + $0xb8] sm:$0xff] %vm3847, %v3838
      %3872 = vst.msk [vmem:[%s306 + $0xc0] sm:$0xff] %vm3847, %v3839
      %3873 = vst.msk [vmem:[%s306 + $0xc8] sm:$0xff] %vm3847, %v3840
      %3874 = vst.msk [vmem:[%s306 + $0xd0] sm:$0xff] %vm3847, %v3841
      %3875 = vst.msk [vmem:[%s306 + $0xd8] sm:$0xff] %vm3847, %v3842
      %3876 = vst.msk [vmem:[%s306 + $0xe0] sm:$0xff] %vm3847, %v3843
      %3877 = vst.msk [vmem:[%s306 + $0xe8] sm:$0xff] %vm3847, %v3844
      %3878 = vst.msk [vmem:[%s306 + $0xf0] sm:$0xff] %vm3847, %v3845
      %3879 = vst.msk [vmem:[%s306 + $0xf8] sm:$0xff] %vm3847, %v3846
      %p3880 = scmp.lt.s32.totalorder %s20, 1
      %s3881 = scalar_select %p3880, %s20, 1
      %s3882 = smul.addr %s3881, 32
      %s3883 = smul.addr %s3882, 8
      %s3884 = scalar_lea.vmem %s8, %s3883
      // Predicated region
      $region53: #{tpu_custom_call.1} parent=51 // pred_check
        %p3885 = pneg %p211
      $region54: #{tpu_custom_call.1} parent=51 // pred_check_branch
        %3887 = sbr.rel (%p3885) target = $region56
      $region55: #{tpu_custom_call.1} parent=51 // pred_region
        _
      $region56: #{tpu_custom_call.1} parent=51 // pred_fallthru
        _
    $region52: #{tpu_custom_call.1} parent=5 // pred_fallthru
      _
    %p3888 = scmp.le.s32.totalorder 2, %s15
    // Predicated region
    $region57: #{tpu_custom_call.1} parent=5 // pred_check
      %p3889 = pneg %p3888
    $region58: #{tpu_custom_call.1} parent=5 // pred_check_branch
      %3891 = sbr.rel (%p3889) target = $region60
    $region59: #{tpu_custom_call.1} parent=5 // pred_region
      %s3892 = ssub.s32 %s15, 2
      // Predicated region
      $region61: #{tpu_custom_call.1} parent=59 // pred_check
        %p3893 = pneg %p217
      $region62: #{tpu_custom_call.1} parent=59 // pred_check_branch
        %3895 = sbr.rel (%p3893) target = $region64
      $region63: #{tpu_custom_call.1} parent=59 // pred_region
        %p3896 = scmp.lt.s32.totalorder %s21, 1
        %s3897 = scalar_select %p3896, %s21, 1
        %s3898 = smul.addr %s3897, 32
        %s3899 = smul.addr %s3898, 8
        %s3900 = scalar_lea.vmem %s8, %s3899
      $region64: #{tpu_custom_call.1} parent=59 // pred_fallthru
        _
    $region60: #{tpu_custom_call.1} parent=5 // pred_fallthru
      _
  $region6: #{tpu_custom_call.1} parent=0 // loop_footer
    %s19 = sadd.s32 1, %s15
  $region7: #{tpu_custom_call.1} parent=0 // loop_footer_branch
    %14 = sbr.rel target = $region3
  $region8: #{tpu_custom_call.1} parent=0 // loop_exit
    _

</llo_original>
